<compile_context>
chip_gen: v7x
topology: tpu7x:2x2x1
jax: 0.10.0
libtpu: 0.0.40
codegen_flags: <defaults>
</compile_context>

<pallas_src>
import jax
import jax.numpy as jnp
from jax.experimental import pallas as pl
from jax.experimental.pallas import tpu as pltpu


# ----------------------------- in-kernel helpers -----------------------------

def _layernorm(h, gamma, beta, eps=1e-5):
    # PyTorch nn.LayerNorm: biased variance over last dim, eps=1e-5.
    mean = jnp.mean(h, axis=-1, keepdims=True)
    var = jnp.mean((h - mean) ** 2, axis=-1, keepdims=True)
    return (h - mean) * jax.lax.rsqrt(var + eps) * gamma + beta


def _gelu_tanh(x):
    # tanh-form GELU: tanh is a single EUP op (VALU slot stays free).
    # ~1e-3 max abs deviation from PyTorch's exact erf GELU.
    c = 0.7978845608028654  # sqrt(2/pi)
    return 0.5 * x * (1.0 + jnp.tanh(c * (x + 0.044715 * (x * x * x))))


# --------------------------------- kernel ------------------------------------

def fnet_kernel(x_ref, csd_ref, cs_ref, nss_ref, dw_ref, db_ref,
                w1_ref, w2_ref, vec_ref, o_ref, act_ref):
    layer = pl.program_id(0)
    S, D = act_ref.shape

    @pl.when(layer == 0)
    def _():
        act_ref[...] = x_ref[...].astype(jnp.float32)

    x = act_ref[...]

    # ---- Fourier mixing: Re(fft(fft(x, dim=-1), dim=0))
    #   stage 1: xcs = x @ [C_D | S_D]                       (S, 2D)
    #   stage 2: x_fft = C_S @ xc + (-S_S) @ xs              (S, D)
    xcs = jnp.dot(x.astype(jnp.bfloat16), csd_ref[...],
                  preferred_element_type=jnp.float32)          # (S, 2D) f32
    xcs_bf = xcs.astype(jnp.bfloat16)                          # cast before slice
    xc = xcs_bf[:, :D]                                         # lane-aligned slice
    xs = xcs_bf[:, D:]
    x_fft = (jnp.dot(cs_ref[...], xc, preferred_element_type=jnp.float32)
             + jnp.dot(nss_ref[...], xs, preferred_element_type=jnp.float32))

    # Packed per-layer vectors (rows of vec_ref, padded to width H=4D):
    #   0: ln1_g  1: ln1_b  2: b1  3: b2  4: ln2_g  5: ln2_b
    h = _layernorm(x + x_fft, vec_ref[0:1, :D], vec_ref[1:2, :D])

    # ---- FeedForward: Linear(D, 4D) -> GELU -> Linear(4D, D)
    ff = jnp.dot(h.astype(jnp.bfloat16), w1_ref[...],
                 preferred_element_type=jnp.float32) + vec_ref[2:3, :]
    ff = _gelu_tanh(ff.astype(jnp.bfloat16))                   # bf16 intermediate
    ff = (jnp.dot(ff, w2_ref[...], preferred_element_type=jnp.float32)
          + vec_ref[3:4, :D])
    # Dropout(p=0.1) is identity at inference.
    # TODO(synk): training-mode stochastic dropout not implemented.

    act_ref[...] = _layernorm(h + ff, vec_ref[4:5, :D], vec_ref[5:6, :D])

    # ---- final Linear(D, D) fused onto the last layer iteration
    @pl.when(layer == pl.num_programs(0) - 1)
    def _():
        a = act_ref[...]
        o_ref[...] = (jnp.dot(a.astype(jnp.bfloat16), dw_ref[...],
                              preferred_element_type=jnp.float32)
                      + db_ref[...]).astype(o_ref.dtype)


# -------------------------------- wrapper ------------------------------------

def _vmem_limit_bytes():
    """Generation-aware VMEM budget: ~0.7x of per-core capacity, clamped."""
    cap = None
    try:
        info = pltpu.get_tpu_info()
        cap = getattr(info, "vmem_capacity_bytes", None)
    except Exception:
        cap = None
    if not cap:
        cap = 64 * 1024 * 1024          # conservative fallback (v7x per-TC VMEM)
    return max(32 * 1024 * 1024, min(int(0.7 * cap), 100 * 1024 * 1024))


def fnet_forward(x, stacked, dense_w, dense_b, csd, cs, nss):
    S, D = x.shape
    N = stacked["w1"].shape[0]
    H = 4 * D

    if N == 0:
        # Empty encoder stack: only the final dense layer (guard against an
        # empty grid leaving the output unwritten).
        return (jnp.dot(x, dense_w.astype(jnp.float32)) + dense_b).astype(x.dtype)

    def build(single_buffer_consts):
        def const_spec(shape):
            nd = len(shape)
            kwargs = {}
            if single_buffer_consts:
                # Constant block index -> a second pipeline buffer is wasted VMEM.
                kwargs["pipeline_mode"] = pl.Buffered(1)
            return pl.BlockSpec(shape, lambda l, _nd=nd: (0,) * _nd, **kwargs)

        def per_layer(shape):
            # Leading (layer) dim streamed: one layer per grid step, squeezed out.
            nd = len(shape)
            return pl.BlockSpec((None,) + shape,
                                lambda l, _nd=nd: (l,) + (0,) * _nd)

        in_specs = [
            const_spec((S, D)),          # x
            const_spec((D, 2 * D)),      # [C_D | S_D]
            const_spec((S, S)),          # C_S
            const_spec((S, S)),          # -S_S
            const_spec((D, D)),          # dense_w (bf16)
            const_spec((1, D)),          # dense_b
            per_layer((D, H)),           # w1 (bf16)
            per_layer((H, D)),           # w2 (bf16)
            per_layer((8, H)),           # packed ln/bias vectors (f32)
        ]

        return pl.pallas_call(
            fnet_kernel,
            out_shape=jax.ShapeDtypeStruct((S, D), x.dtype),
            grid_spec=pltpu.PrefetchScalarGridSpec(
                num_scalar_prefetch=0,
                grid=(N,),
                in_specs=in_specs,
                out_specs=pl.BlockSpec((S, D), lambda l: (0, 0)),
                scratch_shapes=[pltpu.VMEM((S, D), jnp.float32)],
            ),
            compiler_params=pltpu.CompilerParams(
                # Layer axis is a sequential dependency chain.
                dimension_semantics=("arbitrary",),
                vmem_limit_bytes=_vmem_limit_bytes(),
            ),
        )

    args = (x, csd, cs, nss, dense_w, dense_b,
            stacked["w1"], stacked["w2"], stacked["vecs"])
    try:
        return build(True)(*args)
    except Exception:
        # pl.Buffered(1) single-buffering not supported in this JAX build ->
        # fall back to default (double-buffered) constant inputs.
        return build(False)(*args)


# ----------------------------- parameter init ---------------------------------

def init_params(key, N, D):
    layer_params = []
    for _ in range(N):
        keys = jax.random.split(key, 5)
        key = keys[0]
        p = {
            "ln1_g": jnp.ones((1, D), jnp.float32),
            "ln1_b": jnp.zeros((1, D), jnp.float32),
            # Linear weights stored transposed: (in, out)
            "w1": 0.02 * jax.random.normal(keys[1], (D, 4 * D), jnp.float32),
            "b1": 0.02 * jax.random.normal(keys[2], (1, 4 * D), jnp.float32),
            "w2": 0.02 * jax.random.normal(keys[3], (4 * D, D), jnp.float32),
            "b2": 0.02 * jax.random.normal(keys[4], (1, D), jnp.float32),
            "ln2_g": jnp.ones((1, D), jnp.float32),
            "ln2_b": jnp.zeros((1, D), jnp.float32),
        }
        layer_params.append(p)
    k1, k2 = jax.random.split(key)
    dense_w = 0.02 * jax.random.normal(k1, (D, D), jnp.float32)
    dense_b = 0.02 * jax.random.normal(k2, (1, D), jnp.float32)
    return layer_params, dense_w, dense_b


def stack_layer_params(layer_params, D):
    """Stack per-layer params to (N, ...); pack the 6 small vectors into one
    (N, 8, 4D) f32 slab (rows: ln1_g, ln1_b, b1, b2, ln2_g, ln2_b, pad, pad);
    matmul weights cast to bf16."""
    H = 4 * D
    w1 = jnp.stack([p["w1"] for p in layer_params]).astype(jnp.bfloat16)
    w2 = jnp.stack([p["w2"] for p in layer_params]).astype(jnp.bfloat16)

    def pad_to_h(v):
        return jnp.pad(v, ((0, 0), (0, H - v.shape[1])))

    vec_slabs = []
    for p in layer_params:
        rows = jnp.concatenate([
            pad_to_h(p["ln1_g"]), pad_to_h(p["ln1_b"]),
            p["b1"],
            pad_to_h(p["b2"]), pad_to_h(p["ln2_g"]), pad_to_h(p["ln2_b"]),
            jnp.zeros((2, H), jnp.float32),
        ], axis=0)                                   # (8, H)
        vec_slabs.append(rows)
    vecs = jnp.stack(vec_slabs)                      # (N, 8, H)
    return {"w1": w1, "w2": w2, "vecs": vecs}


def dft_matrices(S, D):
    s = jnp.arange(S, dtype=jnp.float32)
    ang_s = 2.0 * jnp.pi * jnp.outer(s, s) / S
    d = jnp.arange(D, dtype=jnp.float32)
    ang_d = 2.0 * jnp.pi * jnp.outer(d, d) / D
    cs, ss = jnp.cos(ang_s), jnp.sin(ang_s)
    cd, sd = jnp.cos(ang_d), jnp.sin(ang_d)
    csd = jnp.concatenate([cd, sd], axis=1).astype(jnp.bfloat16)   # (D, 2D)
    cs_b = cs.astype(jnp.bfloat16)                                 # (S, S)
    nss_b = (-ss).astype(jnp.bfloat16)                             # (S, S)
    return csd, cs_b, nss_b


# ------------------------------ pure-JAX reference -----------------------------

def ref_forward(x, layer_params, dense_w, dense_b):
    for p in layer_params:
        x_fft = jnp.real(jnp.fft.fft(jnp.fft.fft(x, axis=-1), axis=0))
        h = _layernorm(x + x_fft, p["ln1_g"], p["ln1_b"])
        ff = h @ p["w1"] + p["b1"]
        ff = 0.5 * ff * (1.0 + jax.scipy.special.erf(ff / jnp.sqrt(2.0)))
        ff = ff @ p["w2"] + p["b2"]
        x = _layernorm(h + ff, p["ln2_g"], p["ln2_b"])
    return x @ dense_w + dense_b


# ----------------------------------- main --------------------------------------

if __name__ == "__main__":
    # seq=8, dhidden=128 (lane-dense last dim), N=2 encoder layers.
    S, D, N = 8, 128, 2

    key = jax.random.PRNGKey(0)
    kx, kp = jax.random.split(key)
    x = jax.random.normal(kx, (S, D), jnp.float32)

    layer_params, dense_w, dense_b = init_params(kp, N, D)
    stacked = stack_layer_params(layer_params, D)
    csd, cs, nss = dft_matrices(S, D)

    out = fnet_forward(x, stacked,
                       dense_w.astype(jnp.bfloat16), dense_b, csd, cs, nss)
    out = jax.block_until_ready(out)

    ref = jax.block_until_ready(ref_forward(x, layer_params, dense_w, dense_b))
    assert out.shape == (S, D)
    # bf16 matmuls (incl. bf16 DFT matrices) + tanh GELU vs fp32 FFT / erf
    # reference -> relaxed tolerance.
    err = float(jnp.max(jnp.abs(out - ref)))
    assert jnp.allclose(out, ref, atol=5e-2, rtol=5e-2), err

    print("KERNEL_OK")
</pallas_src>

<mosaic_0001>
module attributes {stable_mosaic.version = 11 : i64} {
  func.func @fnet_kernel(%arg0: i32, %arg1: memref<8x128xf32, #tpu.memory_space<vmem>>, %arg2: memref<128x256xbf16, #tpu.memory_space<vmem>>, %arg3: memref<8x8xbf16, #tpu.memory_space<vmem>>, %arg4: memref<8x8xbf16, #tpu.memory_space<vmem>>, %arg5: memref<128x128xbf16, #tpu.memory_space<vmem>>, %arg6: memref<1x128xf32, #tpu.memory_space<vmem>>, %arg7: memref<1x128x512xbf16, #tpu.memory_space<vmem>>, %arg8: memref<1x512x128xbf16, #tpu.memory_space<vmem>>, %arg9: memref<1x8x512xf32, #tpu.memory_space<vmem>>, %arg10: memref<8x128xf32, #tpu.memory_space<vmem>>, %arg11: memref<8x128xf32, #tpu.memory_space<vmem>>) attributes {dimension_semantics = [#tpu.dimension_semantics<arbitrary>], iteration_bounds = array<i64: 2>, scalar_prefetch = 0 : i64, scratch_operands = 1 : i64, tpu.core_type = #tpu.core_type<tc>, window_params = [{pipeline_mode = #tpu.pipeline_mode<synchronous>, transform_indices = @transform_0, window_bounds = array<i64: 8, 128>}, {pipeline_mode = #tpu.pipeline_mode<synchronous>, transform_indices = @transform_1, window_bounds = array<i64: 128, 256>}, {pipeline_mode = #tpu.pipeline_mode<synchronous>, transform_indices = @transform_2, window_bounds = array<i64: 8, 8>}, {pipeline_mode = #tpu.pipeline_mode<synchronous>, transform_indices = @transform_3, window_bounds = array<i64: 8, 8>}, {pipeline_mode = #tpu.pipeline_mode<synchronous>, transform_indices = @transform_4, window_bounds = array<i64: 128, 128>}, {pipeline_mode = #tpu.pipeline_mode<synchronous>, transform_indices = @transform_5, window_bounds = array<i64: 1, 128>}, {transform_indices = @transform_6, window_bounds = array<i64: 1, 128, 512>}, {transform_indices = @transform_7, window_bounds = array<i64: 1, 512, 128>}, {transform_indices = @transform_8, window_bounds = array<i64: 1, 8, 512>}, {pipeline_mode = #tpu.pipeline_mode<synchronous>, transform_indices = @transform_9, window_bounds = array<i64: 8, 128>}]} {
    %c0_i32 = arith.constant 0 : i32
    %0 = arith.cmpi eq, %arg0, %c0_i32 : i32
    %1 = arith.extui %0 : i1 to i32
    %c0_i32_0 = arith.constant 0 : i32
    %2 = arith.cmpi ne, %1, %c0_i32_0 : i32
    scf.if %2 {
      %c0_48 = arith.constant 0 : index
      %c0_49 = arith.constant 0 : index
      %102 = vector.load %arg1[%c0_48, %c0_49] : memref<8x128xf32, #tpu.memory_space<vmem>>, vector<8x128xf32>
      %c0_50 = arith.constant 0 : index
      %c0_51 = arith.constant 0 : index
      %103 = vector.load %arg11[%c0_50, %c0_51] : memref<8x128xf32, #tpu.memory_space<vmem>>, vector<8x128xf32>
      tpu.vector_store %arg11[%c0_50, %c0_51], %102 {strides = array<i32>} : memref<8x128xf32, #tpu.memory_space<vmem>>, vector<8x128xf32>,
    } else {
    }
    %c0 = arith.constant 0 : index
    %c0_1 = arith.constant 0 : index
    %3 = vector.load %arg11[%c0, %c0_1] : memref<8x128xf32, #tpu.memory_space<vmem>>, vector<8x128xf32>
    %4 = arith.truncf %3 : vector<8x128xf32> to vector<8x128xbf16>
    %c0_2 = arith.constant 0 : index
    %c0_3 = arith.constant 0 : index
    %5 = vector.load %arg2[%c0_2, %c0_3] : memref<128x256xbf16, #tpu.memory_space<vmem>>, vector<128x256xbf16>
    %cst = arith.constant dense<0.000000e+00> : vector<8x256xf32>
    %6 = tpu.matmul %4, %5, %cst {dimension_numbers = #tpu.dot_dimension_numbers<[1], [0], [0], [1], [0, 0, 1, 1], [], []>} : vector<8x128xbf16>, vector<128x256xbf16>, vector<8x256xf32> -> vector<8x256xf32>
    %7 = arith.truncf %6 : vector<8x256xf32> to vector<8x256xbf16>
    %8 = vector.extract_strided_slice %7 {offsets = [0, 0], sizes = [8, 128], strides = [1, 1]} : vector<8x256xbf16> to vector<8x128xbf16>
    %9 = vector.extract_strided_slice %7 {offsets = [0, 128], sizes = [8, 128], strides = [1, 1]} : vector<8x256xbf16> to vector<8x128xbf16>
    %c0_4 = arith.constant 0 : index
    %c0_5 = arith.constant 0 : index
    %10 = vector.load %arg3[%c0_4, %c0_5] : memref<8x8xbf16, #tpu.memory_space<vmem>>, vector<8x8xbf16>
    %cst_6 = arith.constant dense<0.000000e+00> : vector<8x128xf32>
    %11 = tpu.matmul %10, %8, %cst_6 {dimension_numbers = #tpu.dot_dimension_numbers<[1], [0], [0], [1], [0, 0, 1, 1], [], []>} : vector<8x8xbf16>, vector<8x128xbf16>, vector<8x128xf32> -> vector<8x128xf32>
    %c0_7 = arith.constant 0 : index
    %c0_8 = arith.constant 0 : index
    %12 = vector.load %arg4[%c0_7, %c0_8] : memref<8x8xbf16, #tpu.memory_space<vmem>>, vector<8x8xbf16>
    %cst_9 = arith.constant dense<0.000000e+00> : vector<8x128xf32>
    %13 = tpu.matmul %12, %9, %cst_9 {dimension_numbers = #tpu.dot_dimension_numbers<[1], [0], [0], [1], [0, 0, 1, 1], [], []>} : vector<8x8xbf16>, vector<8x128xbf16>, vector<8x128xf32> -> vector<8x128xf32>
    %14 = arith.addf %11, %13 : vector<8x128xf32>
    %15 = arith.addf %3, %14 : vector<8x128xf32>
    %c0_10 = arith.constant 0 : index
    %c0_11 = arith.constant 0 : index
    %c0_12 = arith.constant 0 : index
    %16 = vector.load %arg9[%c0_10, %c0_11, %c0_12] : memref<1x8x512xf32, #tpu.memory_space<vmem>>, vector<1x1x128xf32>
    %17 = vector.shape_cast %16 : vector<1x1x128xf32> to vector<1x128xf32>
    %c0_13 = arith.constant 0 : index
    %c1 = arith.constant 1 : index
    %c0_14 = arith.constant 0 : index
    %18 = vector.load %arg9[%c0_13, %c1, %c0_14] : memref<1x8x512xf32, #tpu.memory_space<vmem>>, vector<1x1x128xf32>
    %19 = vector.shape_cast %18 : vector<1x1x128xf32> to vector<1x128xf32>
    %cst_15 = arith.constant dense<0.000000e+00> : vector<8xf32>
    %20 = vector.multi_reduction <add>, %15, %cst_15 [1] : vector<8x128xf32> to vector<8xf32>
    %21 = vector.shape_cast %20 : vector<8xf32> to vector<8x1xf32>
    %cst_16 = arith.constant 1.280000e+02 : f32
    %22 = vector.broadcast %cst_16 : f32 to vector<8x1xf32>
    %23 = arith.divf %21, %22 : vector<8x1xf32>
    %24 = vector.broadcast %23 : vector<8x1xf32> to vector<8x128xf32>
    %25 = arith.subf %15, %24 : vector<8x128xf32>
    %26 = arith.mulf %25, %25 : vector<8x128xf32>
    %cst_17 = arith.constant dense<0.000000e+00> : vector<8xf32>
    %27 = vector.multi_reduction <add>, %26, %cst_17 [1] : vector<8x128xf32> to vector<8xf32>
    %28 = vector.shape_cast %27 : vector<8xf32> to vector<8x1xf32>
    %cst_18 = arith.constant 1.280000e+02 : f32
    %29 = vector.broadcast %cst_18 : f32 to vector<8x1xf32>
    %30 = arith.divf %28, %29 : vector<8x1xf32>
    %31 = vector.broadcast %23 : vector<8x1xf32> to vector<8x128xf32>
    %32 = arith.subf %15, %31 : vector<8x128xf32>
    %cst_19 = arith.constant 9.99999974E-6 : f32
    %33 = vector.broadcast %cst_19 : f32 to vector<8x1xf32>
    %34 = arith.addf %30, %33 : vector<8x1xf32>
    %35 = math.rsqrt %34 : vector<8x1xf32>
    %36 = vector.broadcast %35 : vector<8x1xf32> to vector<8x128xf32>
    %37 = arith.mulf %32, %36 : vector<8x128xf32>
    %38 = vector.broadcast %17 : vector<1x128xf32> to vector<8x128xf32>
    %39 = arith.mulf %37, %38 : vector<8x128xf32>
    %40 = vector.broadcast %19 : vector<1x128xf32> to vector<8x128xf32>
    %41 = arith.addf %39, %40 : vector<8x128xf32>
    %42 = arith.truncf %41 : vector<8x128xf32> to vector<8x128xbf16>
    %c0_20 = arith.constant 0 : index
    %c0_21 = arith.constant 0 : index
    %c0_22 = arith.constant 0 : index
    %43 = vector.load %arg7[%c0_20, %c0_21, %c0_22] : memref<1x128x512xbf16, #tpu.memory_space<vmem>>, vector<1x128x512xbf16>
    %44 = vector.shape_cast %43 : vector<1x128x512xbf16> to vector<128x512xbf16>
    %cst_23 = arith.constant dense<0.000000e+00> : vector<8x512xf32>
    %45 = tpu.matmul %42, %44, %cst_23 {dimension_numbers = #tpu.dot_dimension_numbers<[1], [0], [0], [1], [0, 0, 1, 1], [], []>} : vector<8x128xbf16>, vector<128x512xbf16>, vector<8x512xf32> -> vector<8x512xf32>
    %c0_24 = arith.constant 0 : index
    %c2 = arith.constant 2 : index
    %c0_25 = arith.constant 0 : index
    %46 = vector.load %arg9[%c0_24, %c2, %c0_25] : memref<1x8x512xf32, #tpu.memory_space<vmem>>, vector<1x1x512xf32>
    %47 = vector.shape_cast %46 : vector<1x1x512xf32> to vector<1x512xf32>
    %48 = vector.broadcast %47 : vector<1x512xf32> to vector<8x512xf32>
    %49 = arith.addf %45, %48 : vector<8x512xf32>
    %50 = arith.truncf %49 : vector<8x512xf32> to vector<8x512xbf16>
    %cst_26 = arith.constant 5.000000e-01 : bf16
    %51 = vector.broadcast %cst_26 : bf16 to vector<8x512xbf16>
    %52 = arith.mulf %51, %50 : vector<8x512xbf16>
    %53 = arith.mulf %50, %50 : vector<8x512xbf16>
    %54 = arith.mulf %53, %50 : vector<8x512xbf16>
    %cst_27 = arith.constant 4.467770e-02 : bf16
    %55 = vector.broadcast %cst_27 : bf16 to vector<8x512xbf16>
    %56 = arith.mulf %55, %54 : vector<8x512xbf16>
    %57 = arith.addf %50, %56 : vector<8x512xbf16>
    %cst_28 = arith.constant 7.968750e-01 : bf16
    %58 = vector.broadcast %cst_28 : bf16 to vector<8x512xbf16>
    %59 = arith.mulf %58, %57 : vector<8x512xbf16>
    %60 = math.tanh %59 : vector<8x512xbf16>
    %cst_29 = arith.constant 1.000000e+00 : bf16
    %61 = vector.broadcast %cst_29 : bf16 to vector<8x512xbf16>
    %62 = arith.addf %61, %60 : vector<8x512xbf16>
    %63 = arith.mulf %52, %62 : vector<8x512xbf16>
    %c0_30 = arith.constant 0 : index
    %c0_31 = arith.constant 0 : index
    %c0_32 = arith.constant 0 : index
    %64 = vector.load %arg8[%c0_30, %c0_31, %c0_32] : memref<1x512x128xbf16, #tpu.memory_space<vmem>>, vector<1x512x128xbf16>
    %65 = vector.shape_cast %64 : vector<1x512x128xbf16> to vector<512x128xbf16>
    %cst_33 = arith.constant dense<0.000000e+00> : vector<8x128xf32>
    %66 = tpu.matmul %63, %65, %cst_33 {dimension_numbers = #tpu.dot_dimension_numbers<[1], [0], [0], [1], [0, 0, 1, 1], [], []>} : vector<8x512xbf16>, vector<512x128xbf16>, vector<8x128xf32> -> vector<8x128xf32>
    %c0_34 = arith.constant 0 : index
    %c3 = arith.constant 3 : index
    %c0_35 = arith.constant 0 : index
    %67 = vector.load %arg9[%c0_34, %c3, %c0_35] : memref<1x8x512xf32, #tpu.memory_space<vmem>>, vector<1x1x128xf32>
    %68 = vector.shape_cast %67 : vector<1x1x128xf32> to vector<1x128xf32>
    %69 = vector.broadcast %68 : vector<1x128xf32> to vector<8x128xf32>
    %70 = arith.addf %66, %69 : vector<8x128xf32>
    %71 = arith.addf %41, %70 : vector<8x128xf32>
    %c0_36 = arith.constant 0 : index
    %c4 = arith.constant 4 : index
    %c0_37 = arith.constant 0 : index
    %72 = vector.load %arg9[%c0_36, %c4, %c0_37] : memref<1x8x512xf32, #tpu.memory_space<vmem>>, vector<1x1x128xf32>
    %73 = vector.shape_cast %72 : vector<1x1x128xf32> to vector<1x128xf32>
    %c0_38 = arith.constant 0 : index
    %c5 = arith.constant 5 : index
    %c0_39 = arith.constant 0 : index
    %74 = vector.load %arg9[%c0_38, %c5, %c0_39] : memref<1x8x512xf32, #tpu.memory_space<vmem>>, vector<1x1x128xf32>
    %75 = vector.shape_cast %74 : vector<1x1x128xf32> to vector<1x128xf32>
    %cst_40 = arith.constant dense<0.000000e+00> : vector<8xf32>
    %76 = vector.multi_reduction <add>, %71, %cst_40 [1] : vector<8x128xf32> to vector<8xf32>
    %77 = vector.shape_cast %76 : vector<8xf32> to vector<8x1xf32>
    %cst_41 = arith.constant 1.280000e+02 : f32
    %78 = vector.broadcast %cst_41 : f32 to vector<8x1xf32>
    %79 = arith.divf %77, %78 : vector<8x1xf32>
    %80 = vector.broadcast %79 : vector<8x1xf32> to vector<8x128xf32>
    %81 = arith.subf %71, %80 : vector<8x128xf32>
    %82 = arith.mulf %81, %81 : vector<8x128xf32>
    %cst_42 = arith.constant dense<0.000000e+00> : vector<8xf32>
    %83 = vector.multi_reduction <add>, %82, %cst_42 [1] : vector<8x128xf32> to vector<8xf32>
    %84 = vector.shape_cast %83 : vector<8xf32> to vector<8x1xf32>
    %cst_43 = arith.constant 1.280000e+02 : f32
    %85 = vector.broadcast %cst_43 : f32 to vector<8x1xf32>
    %86 = arith.divf %84, %85 : vector<8x1xf32>
    %87 = vector.broadcast %79 : vector<8x1xf32> to vector<8x128xf32>
    %88 = arith.subf %71, %87 : vector<8x128xf32>
    %cst_44 = arith.constant 9.99999974E-6 : f32
    %89 = vector.broadcast %cst_44 : f32 to vector<8x1xf32>
    %90 = arith.addf %86, %89 : vector<8x1xf32>
    %91 = math.rsqrt %90 : vector<8x1xf32>
    %92 = vector.broadcast %91 : vector<8x1xf32> to vector<8x128xf32>
    %93 = arith.mulf %88, %92 : vector<8x128xf32>
    %94 = vector.broadcast %73 : vector<1x128xf32> to vector<8x128xf32>
    %95 = arith.mulf %93, %94 : vector<8x128xf32>
    %96 = vector.broadcast %75 : vector<1x128xf32> to vector<8x128xf32>
    %97 = arith.addf %95, %96 : vector<8x128xf32>
    %c0_45 = arith.constant 0 : index
    %c0_46 = arith.constant 0 : index
    %98 = vector.load %arg11[%c0_45, %c0_46] : memref<8x128xf32, #tpu.memory_space<vmem>>, vector<8x128xf32>
    tpu.vector_store %arg11[%c0_45, %c0_46], %97 {strides = array<i32>} : memref<8x128xf32, #tpu.memory_space<vmem>>, vector<8x128xf32>,
    %c1_i32 = arith.constant 1 : i32
    %99 = arith.cmpi eq, %arg0, %c1_i32 : i32
    %100 = arith.extui %99 : i1 to i32
    %c0_i32_47 = arith.constant 0 : i32
    %101 = arith.cmpi ne, %100, %c0_i32_47 : i32
    scf.if %101 {
      %c0_48 = arith.constant 0 : index
      %c0_49 = arith.constant 0 : index
      %102 = vector.load %arg11[%c0_48, %c0_49] : memref<8x128xf32, #tpu.memory_space<vmem>>, vector<8x128xf32>
      %103 = arith.truncf %102 : vector<8x128xf32> to vector<8x128xbf16>
      %c0_50 = arith.constant 0 : index
      %c0_51 = arith.constant 0 : index
      %104 = vector.load %arg5[%c0_50, %c0_51] : memref<128x128xbf16, #tpu.memory_space<vmem>>, vector<128x128xbf16>
      %cst_52 = arith.constant dense<0.000000e+00> : vector<8x128xf32>
      %105 = tpu.matmul %103, %104, %cst_52 {dimension_numbers = #tpu.dot_dimension_numbers<[1], [0], [0], [1], [0, 0, 1, 1], [], []>} : vector<8x128xbf16>, vector<128x128xbf16>, vector<8x128xf32> -> vector<8x128xf32>
      %c0_53 = arith.constant 0 : index
      %c0_54 = arith.constant 0 : index
      %106 = vector.load %arg6[%c0_53, %c0_54] : memref<1x128xf32, #tpu.memory_space<vmem>>, vector<1x128xf32>
      %107 = vector.broadcast %106 : vector<1x128xf32> to vector<8x128xf32>
      %108 = arith.addf %105, %107 : vector<8x128xf32>
      %c0_55 = arith.constant 0 : index
      %c0_56 = arith.constant 0 : index
      %109 = vector.load %arg10[%c0_55, %c0_56] : memref<8x128xf32, #tpu.memory_space<vmem>>, vector<8x128xf32>
      tpu.vector_store %arg10[%c0_55, %c0_56], %108 {strides = array<i32>} : memref<8x128xf32, #tpu.memory_space<vmem>>, vector<8x128xf32>,
    } else {
    }
    return
  }
  func.func @transform_0(%arg0: i32) -> (i32, i32) {
    %c0_i32 = arith.constant 0 : i32
    %c0_i32_0 = arith.constant 0 : i32
    %c0_i32_1 = arith.constant 0 : i32
    return %c0_i32, %c0_i32_0 : i32, i32
  }
  func.func @transform_1(%arg0: i32) -> (i32, i32) {
    %c0_i32 = arith.constant 0 : i32
    %c0_i32_0 = arith.constant 0 : i32
    %c0_i32_1 = arith.constant 0 : i32
    return %c0_i32, %c0_i32_0 : i32, i32
  }
  func.func @transform_2(%arg0: i32) -> (i32, i32) {
    %c0_i32 = arith.constant 0 : i32
    %c0_i32_0 = arith.constant 0 : i32
    %c0_i32_1 = arith.constant 0 : i32
    return %c0_i32, %c0_i32_0 : i32, i32
  }
  func.func @transform_3(%arg0: i32) -> (i32, i32) {
    %c0_i32 = arith.constant 0 : i32
    %c0_i32_0 = arith.constant 0 : i32
    %c0_i32_1 = arith.constant 0 : i32
    return %c0_i32, %c0_i32_0 : i32, i32
  }
  func.func @transform_4(%arg0: i32) -> (i32, i32) {
    %c0_i32 = arith.constant 0 : i32
    %c0_i32_0 = arith.constant 0 : i32
    %c0_i32_1 = arith.constant 0 : i32
    return %c0_i32, %c0_i32_0 : i32, i32
  }
  func.func @transform_5(%arg0: i32) -> (i32, i32) {
    %c0_i32 = arith.constant 0 : i32
    %c0_i32_0 = arith.constant 0 : i32
    %c0_i32_1 = arith.constant 0 : i32
    return %c0_i32, %c0_i32_0 : i32, i32
  }
  func.func @transform_6(%arg0: i32) -> (i32, i32, i32) {
    %c0_i32 = arith.constant 0 : i32
    %c0_i32_0 = arith.constant 0 : i32
    %c0_i32_1 = arith.constant 0 : i32
    return %arg0, %c0_i32, %c0_i32_0 : i32, i32, i32
  }
  func.func @transform_7(%arg0: i32) -> (i32, i32, i32) {
    %c0_i32 = arith.constant 0 : i32
    %c0_i32_0 = arith.constant 0 : i32
    %c0_i32_1 = arith.constant 0 : i32
    return %arg0, %c0_i32, %c0_i32_0 : i32, i32, i32
  }
  func.func @transform_8(%arg0: i32) -> (i32, i32, i32) {
    %c0_i32 = arith.constant 0 : i32
    %c0_i32_0 = arith.constant 0 : i32
    %c0_i32_1 = arith.constant 0 : i32
    return %arg0, %c0_i32, %c0_i32_0 : i32, i32, i32
  }
  func.func @transform_9(%arg0: i32) -> (i32, i32) {
    %c0_i32 = arith.constant 0 : i32
    %c0_i32_0 = arith.constant 0 : i32
    %c0_i32_1 = arith.constant 0 : i32
    return %c0_i32, %c0_i32_0 : i32, i32
  }
}

module attributes {stable_mosaic.version = 11 : i64} {
  func.func @fnet_kernel(%arg0: i32, %arg1: memref<8x128xf32, #tpu.memory_space<vmem>>, %arg2: memref<128x256xbf16, #tpu.memory_space<vmem>>, %arg3: memref<8x8xbf16, #tpu.memory_space<vmem>>, %arg4: memref<8x8xbf16, #tpu.memory_space<vmem>>, %arg5: memref<128x128xbf16, #tpu.memory_space<vmem>>, %arg6: memref<1x128xf32, #tpu.memory_space<vmem>>, %arg7: memref<1x128x512xbf16, #tpu.memory_space<vmem>>, %arg8: memref<1x512x128xbf16, #tpu.memory_space<vmem>>, %arg9: memref<1x8x512xf32, #tpu.memory_space<vmem>>, %arg10: memref<8x128xf32, #tpu.memory_space<vmem>>, %arg11: memref<8x128xf32, #tpu.memory_space<vmem>>) attributes {dimension_semantics = [#tpu.dimension_semantics<arbitrary>], iteration_bounds = array<i64: 2>, scalar_prefetch = 0 : i64, scratch_operands = 1 : i64, tpu.core_type = #tpu.core_type<tc>, window_params = [{pipeline_mode = #tpu.pipeline_mode<synchronous>, transform_indices = @transform_0, window_bounds = array<i64: 8, 128>}, {pipeline_mode = #tpu.pipeline_mode<synchronous>, transform_indices = @transform_1, window_bounds = array<i64: 128, 256>}, {pipeline_mode = #tpu.pipeline_mode<synchronous>, transform_indices = @transform_2, window_bounds = array<i64: 8, 8>}, {pipeline_mode = #tpu.pipeline_mode<synchronous>, transform_indices = @transform_3, window_bounds = array<i64: 8, 8>}, {pipeline_mode = #tpu.pipeline_mode<synchronous>, transform_indices = @transform_4, window_bounds = array<i64: 128, 128>}, {pipeline_mode = #tpu.pipeline_mode<synchronous>, transform_indices = @transform_5, window_bounds = array<i64: 1, 128>}, {transform_indices = @transform_6, window_bounds = array<i64: 1, 128, 512>}, {transform_indices = @transform_7, window_bounds = array<i64: 1, 512, 128>}, {transform_indices = @transform_8, window_bounds = array<i64: 1, 8, 512>}, {pipeline_mode = #tpu.pipeline_mode<synchronous>, transform_indices = @transform_9, window_bounds = array<i64: 8, 128>}]} {
    %c0_i32 = arith.constant 0 : i32
    %0 = arith.cmpi eq, %arg0, %c0_i32 : i32
    %1 = arith.extui %0 : i1 to i32
    %c0_i32_0 = arith.constant 0 : i32
    %2 = arith.cmpi ne, %1, %c0_i32_0 : i32
    scf.if %2 {
      %c0_48 = arith.constant 0 : index
      %c0_49 = arith.constant 0 : index
      %102 = vector.load %arg1[%c0_48, %c0_49] : memref<8x128xf32, #tpu.memory_space<vmem>>, vector<8x128xf32>
      %c0_50 = arith.constant 0 : index
      %c0_51 = arith.constant 0 : index
      %103 = vector.load %arg11[%c0_50, %c0_51] : memref<8x128xf32, #tpu.memory_space<vmem>>, vector<8x128xf32>
      tpu.vector_store %arg11[%c0_50, %c0_51], %102 {strides = array<i32>} : memref<8x128xf32, #tpu.memory_space<vmem>>, vector<8x128xf32>,
    } else {
    }
    %c0 = arith.constant 0 : index
    %c0_1 = arith.constant 0 : index
    %3 = vector.load %arg11[%c0, %c0_1] : memref<8x128xf32, #tpu.memory_space<vmem>>, vector<8x128xf32>
    %4 = arith.truncf %3 : vector<8x128xf32> to vector<8x128xbf16>
    %c0_2 = arith.constant 0 : index
    %c0_3 = arith.constant 0 : index
    %5 = vector.load %arg2[%c0_2, %c0_3] : memref<128x256xbf16, #tpu.memory_space<vmem>>, vector<128x256xbf16>
    %cst = arith.constant dense<0.000000e+00> : vector<8x256xf32>
    %6 = tpu.matmul %4, %5, %cst {dimension_numbers = #tpu.dot_dimension_numbers<[1], [0], [0], [1], [0, 0, 1, 1], [], []>} : vector<8x128xbf16>, vector<128x256xbf16>, vector<8x256xf32> -> vector<8x256xf32>
    %7 = arith.truncf %6 : vector<8x256xf32> to vector<8x256xbf16>
    %8 = vector.extract_strided_slice %7 {offsets = [0, 0], sizes = [8, 128], strides = [1, 1]} : vector<8x256xbf16> to vector<8x128xbf16>
    %9 = vector.extract_strided_slice %7 {offsets = [0, 128], sizes = [8, 128], strides = [1, 1]} : vector<8x256xbf16> to vector<8x128xbf16>
    %c0_4 = arith.constant 0 : index
    %c0_5 = arith.constant 0 : index
    %10 = vector.load %arg3[%c0_4, %c0_5] : memref<8x8xbf16, #tpu.memory_space<vmem>>, vector<8x8xbf16>
    %cst_6 = arith.constant dense<0.000000e+00> : vector<8x128xf32>
    %11 = tpu.matmul %10, %8, %cst_6 {dimension_numbers = #tpu.dot_dimension_numbers<[1], [0], [0], [1], [0, 0, 1, 1], [], []>} : vector<8x8xbf16>, vector<8x128xbf16>, vector<8x128xf32> -> vector<8x128xf32>
    %c0_7 = arith.constant 0 : index
    %c0_8 = arith.constant 0 : index
    %12 = vector.load %arg4[%c0_7, %c0_8] : memref<8x8xbf16, #tpu.memory_space<vmem>>, vector<8x8xbf16>
    %cst_9 = arith.constant dense<0.000000e+00> : vector<8x128xf32>
    %13 = tpu.matmul %12, %9, %cst_9 {dimension_numbers = #tpu.dot_dimension_numbers<[1], [0], [0], [1], [0, 0, 1, 1], [], []>} : vector<8x8xbf16>, vector<8x128xbf16>, vector<8x128xf32> -> vector<8x128xf32>
    %14 = arith.addf %11, %13 : vector<8x128xf32>
    %15 = arith.addf %3, %14 : vector<8x128xf32>
    %c0_10 = arith.constant 0 : index
    %c0_11 = arith.constant 0 : index
    %c0_12 = arith.constant 0 : index
    %16 = vector.load %arg9[%c0_10, %c0_11, %c0_12] : memref<1x8x512xf32, #tpu.memory_space<vmem>>, vector<1x1x128xf32>
    %17 = vector.shape_cast %16 : vector<1x1x128xf32> to vector<1x128xf32>
    %c0_13 = arith.constant 0 : index
    %c1 = arith.constant 1 : index
    %c0_14 = arith.constant 0 : index
    %18 = vector.load %arg9[%c0_13, %c1, %c0_14] : memref<1x8x512xf32, #tpu.memory_space<vmem>>, vector<1x1x128xf32>
    %19 = vector.shape_cast %18 : vector<1x1x128xf32> to vector<1x128xf32>
    %cst_15 = arith.constant dense<0.000000e+00> : vector<8xf32>
    %20 = vector.multi_reduction <add>, %15, %cst_15 [1] : vector<8x128xf32> to vector<8xf32>
    %21 = vector.shape_cast %20 : vector<8xf32> to vector<8x1xf32>
    %cst_16 = arith.constant 1.280000e+02 : f32
    %22 = vector.broadcast %cst_16 : f32 to vector<8x1xf32>
    %23 = arith.divf %21, %22 : vector<8x1xf32>
    %24 = vector.broadcast %23 : vector<8x1xf32> to vector<8x128xf32>
    %25 = arith.subf %15, %24 : vector<8x128xf32>
    %26 = arith.mulf %25, %25 : vector<8x128xf32>
    %cst_17 = arith.constant dense<0.000000e+00> : vector<8xf32>
    %27 = vector.multi_reduction <add>, %26, %cst_17 [1] : vector<8x128xf32> to vector<8xf32>
    %28 = vector.shape_cast %27 : vector<8xf32> to vector<8x1xf32>
    %cst_18 = arith.constant 1.280000e+02 : f32
    %29 = vector.broadcast %cst_18 : f32 to vector<8x1xf32>
    %30 = arith.divf %28, %29 : vector<8x1xf32>
    %31 = vector.broadcast %23 : vector<8x1xf32> to vector<8x128xf32>
    %32 = arith.subf %15, %31 : vector<8x128xf32>
    %cst_19 = arith.constant 9.99999974E-6 : f32
    %33 = vector.broadcast %cst_19 : f32 to vector<8x1xf32>
    %34 = arith.addf %30, %33 : vector<8x1xf32>
    %35 = math.rsqrt %34 : vector<8x1xf32>
    %36 = vector.broadcast %35 : vector<8x1xf32> to vector<8x128xf32>
    %37 = arith.mulf %32, %36 : vector<8x128xf32>
    %38 = vector.broadcast %17 : vector<1x128xf32> to vector<8x128xf32>
    %39 = arith.mulf %37, %38 : vector<8x128xf32>
    %40 = vector.broadcast %19 : vector<1x128xf32> to vector<8x128xf32>
    %41 = arith.addf %39, %40 : vector<8x128xf32>
    %42 = arith.truncf %41 : vector<8x128xf32> to vector<8x128xbf16>
    %c0_20 = arith.constant 0 : index
    %c0_21 = arith.constant 0 : index
    %c0_22 = arith.constant 0 : index
    %43 = vector.load %arg7[%c0_20, %c0_21, %c0_22] : memref<1x128x512xbf16, #tpu.memory_space<vmem>>, vector<1x128x512xbf16>
    %44 = vector.shape_cast %43 : vector<1x128x512xbf16> to vector<128x512xbf16>
    %cst_23 = arith.constant dense<0.000000e+00> : vector<8x512xf32>
    %45 = tpu.matmul %42, %44, %cst_23 {dimension_numbers = #tpu.dot_dimension_numbers<[1], [0], [0], [1], [0, 0, 1, 1], [], []>} : vector<8x128xbf16>, vector<128x512xbf16>, vector<8x512xf32> -> vector<8x512xf32>
    %c0_24 = arith.constant 0 : index
    %c2 = arith.constant 2 : index
    %c0_25 = arith.constant 0 : index
    %46 = vector.load %arg9[%c0_24, %c2, %c0_25] : memref<1x8x512xf32, #tpu.memory_space<vmem>>, vector<1x1x512xf32>
    %47 = vector.shape_cast %46 : vector<1x1x512xf32> to vector<1x512xf32>
    %48 = vector.broadcast %47 : vector<1x512xf32> to vector<8x512xf32>
    %49 = arith.addf %45, %48 : vector<8x512xf32>
    %50 = arith.truncf %49 : vector<8x512xf32> to vector<8x512xbf16>
    %cst_26 = arith.constant 5.000000e-01 : bf16
    %51 = vector.broadcast %cst_26 : bf16 to vector<8x512xbf16>
    %52 = arith.mulf %51, %50 : vector<8x512xbf16>
    %53 = arith.mulf %50, %50 : vector<8x512xbf16>
    %54 = arith.mulf %53, %50 : vector<8x512xbf16>
    %cst_27 = arith.constant 4.467770e-02 : bf16
    %55 = vector.broadcast %cst_27 : bf16 to vector<8x512xbf16>
    %56 = arith.mulf %55, %54 : vector<8x512xbf16>
    %57 = arith.addf %50, %56 : vector<8x512xbf16>
    %cst_28 = arith.constant 7.968750e-01 : bf16
    %58 = vector.broadcast %cst_28 : bf16 to vector<8x512xbf16>
    %59 = arith.mulf %58, %57 : vector<8x512xbf16>
    %60 = math.tanh %59 : vector<8x512xbf16>
    %cst_29 = arith.constant 1.000000e+00 : bf16
    %61 = vector.broadcast %cst_29 : bf16 to vector<8x512xbf16>
    %62 = arith.addf %61, %60 : vector<8x512xbf16>
    %63 = arith.mulf %52, %62 : vector<8x512xbf16>
    %c0_30 = arith.constant 0 : index
    %c0_31 = arith.constant 0 : index
    %c0_32 = arith.constant 0 : index
    %64 = vector.load %arg8[%c0_30, %c0_31, %c0_32] : memref<1x512x128xbf16, #tpu.memory_space<vmem>>, vector<1x512x128xbf16>
    %65 = vector.shape_cast %64 : vector<1x512x128xbf16> to vector<512x128xbf16>
    %cst_33 = arith.constant dense<0.000000e+00> : vector<8x128xf32>
    %66 = tpu.matmul %63, %65, %cst_33 {dimension_numbers = #tpu.dot_dimension_numbers<[1], [0], [0], [1], [0, 0, 1, 1], [], []>} : vector<8x512xbf16>, vector<512x128xbf16>, vector<8x128xf32> -> vector<8x128xf32>
    %c0_34 = arith.constant 0 : index
    %c3 = arith.constant 3 : index
    %c0_35 = arith.constant 0 : index
    %67 = vector.load %arg9[%c0_34, %c3, %c0_35] : memref<1x8x512xf32, #tpu.memory_space<vmem>>, vector<1x1x128xf32>
    %68 = vector.shape_cast %67 : vector<1x1x128xf32> to vector<1x128xf32>
    %69 = vector.broadcast %68 : vector<1x128xf32> to vector<8x128xf32>
    %70 = arith.addf %66, %69 : vector<8x128xf32>
    %71 = arith.addf %41, %70 : vector<8x128xf32>
    %c0_36 = arith.constant 0 : index
    %c4 = arith.constant 4 : index
    %c0_37 = arith.constant 0 : index
    %72 = vector.load %arg9[%c0_36, %c4, %c0_37] : memref<1x8x512xf32, #tpu.memory_space<vmem>>, vector<1x1x128xf32>
    %73 = vector.shape_cast %72 : vector<1x1x128xf32> to vector<1x128xf32>
    %c0_38 = arith.constant 0 : index
    %c5 = arith.constant 5 : index
    %c0_39 = arith.constant 0 : index
    %74 = vector.load %arg9[%c0_38, %c5, %c0_39] : memref<1x8x512xf32, #tpu.memory_space<vmem>>, vector<1x1x128xf32>
    %75 = vector.shape_cast %74 : vector<1x1x128xf32> to vector<1x128xf32>
    %cst_40 = arith.constant dense<0.000000e+00> : vector<8xf32>
    %76 = vector.multi_reduction <add>, %71, %cst_40 [1] : vector<8x128xf32> to vector<8xf32>
    %77 = vector.shape_cast %76 : vector<8xf32> to vector<8x1xf32>
    %cst_41 = arith.constant 1.280000e+02 : f32
    %78 = vector.broadcast %cst_41 : f32 to vector<8x1xf32>
    %79 = arith.divf %77, %78 : vector<8x1xf32>
    %80 = vector.broadcast %79 : vector<8x1xf32> to vector<8x128xf32>
    %81 = arith.subf %71, %80 : vector<8x128xf32>
    %82 = arith.mulf %81, %81 : vector<8x128xf32>
    %cst_42 = arith.constant dense<0.000000e+00> : vector<8xf32>
    %83 = vector.multi_reduction <add>, %82, %cst_42 [1] : vector<8x128xf32> to vector<8xf32>
    %84 = vector.shape_cast %83 : vector<8xf32> to vector<8x1xf32>
    %cst_43 = arith.constant 1.280000e+02 : f32
    %85 = vector.broadcast %cst_43 : f32 to vector<8x1xf32>
    %86 = arith.divf %84, %85 : vector<8x1xf32>
    %87 = vector.broadcast %79 : vector<8x1xf32> to vector<8x128xf32>
    %88 = arith.subf %71, %87 : vector<8x128xf32>
    %cst_44 = arith.constant 9.99999974E-6 : f32
    %89 = vector.broadcast %cst_44 : f32 to vector<8x1xf32>
    %90 = arith.addf %86, %89 : vector<8x1xf32>
    %91 = math.rsqrt %90 : vector<8x1xf32>
    %92 = vector.broadcast %91 : vector<8x1xf32> to vector<8x128xf32>
    %93 = arith.mulf %88, %92 : vector<8x128xf32>
    %94 = vector.broadcast %73 : vector<1x128xf32> to vector<8x128xf32>
    %95 = arith.mulf %93, %94 : vector<8x128xf32>
    %96 = vector.broadcast %75 : vector<1x128xf32> to vector<8x128xf32>
    %97 = arith.addf %95, %96 : vector<8x128xf32>
    %c0_45 = arith.constant 0 : index
    %c0_46 = arith.constant 0 : index
    %98 = vector.load %arg11[%c0_45, %c0_46] : memref<8x128xf32, #tpu.memory_space<vmem>>, vector<8x128xf32>
    tpu.vector_store %arg11[%c0_45, %c0_46], %97 {strides = array<i32>} : memref<8x128xf32, #tpu.memory_space<vmem>>, vector<8x128xf32>,
    %c1_i32 = arith.constant 1 : i32
    %99 = arith.cmpi eq, %arg0, %c1_i32 : i32
    %100 = arith.extui %99 : i1 to i32
    %c0_i32_47 = arith.constant 0 : i32
    %101 = arith.cmpi ne, %100, %c0_i32_47 : i32
    scf.if %101 {
      %c0_48 = arith.constant 0 : index
      %c0_49 = arith.constant 0 : index
      %102 = vector.load %arg11[%c0_48, %c0_49] : memref<8x128xf32, #tpu.memory_space<vmem>>, vector<8x128xf32>
      %103 = arith.truncf %102 : vector<8x128xf32> to vector<8x128xbf16>
      %c0_50 = arith.constant 0 : index
      %c0_51 = arith.constant 0 : index
      %104 = vector.load %arg5[%c0_50, %c0_51] : memref<128x128xbf16, #tpu.memory_space<vmem>>, vector<128x128xbf16>
      %cst_52 = arith.constant dense<0.000000e+00> : vector<8x128xf32>
      %105 = tpu.matmul %103, %104, %cst_52 {dimension_numbers = #tpu.dot_dimension_numbers<[1], [0], [0], [1], [0, 0, 1, 1], [], []>} : vector<8x128xbf16>, vector<128x128xbf16>, vector<8x128xf32> -> vector<8x128xf32>
      %c0_53 = arith.constant 0 : index
      %c0_54 = arith.constant 0 : index
      %106 = vector.load %arg6[%c0_53, %c0_54] : memref<1x128xf32, #tpu.memory_space<vmem>>, vector<1x128xf32>
      %107 = vector.broadcast %106 : vector<1x128xf32> to vector<8x128xf32>
      %108 = arith.addf %105, %107 : vector<8x128xf32>
      %c0_55 = arith.constant 0 : index
      %c0_56 = arith.constant 0 : index
      %109 = vector.load %arg10[%c0_55, %c0_56] : memref<8x128xf32, #tpu.memory_space<vmem>>, vector<8x128xf32>
      tpu.vector_store %arg10[%c0_55, %c0_56], %108 {strides = array<i32>} : memref<8x128xf32, #tpu.memory_space<vmem>>, vector<8x128xf32>,
    } else {
    }
    return
  }
  func.func @transform_0(%arg0: i32) -> (i32, i32) {
    %c0_i32 = arith.constant 0 : i32
    %c0_i32_0 = arith.constant 0 : i32
    %c0_i32_1 = arith.constant 0 : i32
    return %c0_i32, %c0_i32_0 : i32, i32
  }
  func.func @transform_1(%arg0: i32) -> (i32, i32) {
    %c0_i32 = arith.constant 0 : i32
    %c0_i32_0 = arith.constant 0 : i32
    %c0_i32_1 = arith.constant 0 : i32
    return %c0_i32, %c0_i32_0 : i32, i32
  }
  func.func @transform_2(%arg0: i32) -> (i32, i32) {
    %c0_i32 = arith.constant 0 : i32
    %c0_i32_0 = arith.constant 0 : i32
    %c0_i32_1 = arith.constant 0 : i32
    return %c0_i32, %c0_i32_0 : i32, i32
  }
  func.func @transform_3(%arg0: i32) -> (i32, i32) {
    %c0_i32 = arith.constant 0 : i32
    %c0_i32_0 = arith.constant 0 : i32
    %c0_i32_1 = arith.constant 0 : i32
    return %c0_i32, %c0_i32_0 : i32, i32
  }
  func.func @transform_4(%arg0: i32) -> (i32, i32) {
    %c0_i32 = arith.constant 0 : i32
    %c0_i32_0 = arith.constant 0 : i32
    %c0_i32_1 = arith.constant 0 : i32
    return %c0_i32, %c0_i32_0 : i32, i32
  }
  func.func @transform_5(%arg0: i32) -> (i32, i32) {
    %c0_i32 = arith.constant 0 : i32
    %c0_i32_0 = arith.constant 0 : i32
    %c0_i32_1 = arith.constant 0 : i32
    return %c0_i32, %c0_i32_0 : i32, i32
  }
  func.func @transform_6(%arg0: i32) -> (i32, i32, i32) {
    %c0_i32 = arith.constant 0 : i32
    %c0_i32_0 = arith.constant 0 : i32
    %c0_i32_1 = arith.constant 0 : i32
    return %arg0, %c0_i32, %c0_i32_0 : i32, i32, i32
  }
  func.func @transform_7(%arg0: i32) -> (i32, i32, i32) {
    %c0_i32 = arith.constant 0 : i32
    %c0_i32_0 = arith.constant 0 : i32
    %c0_i32_1 = arith.constant 0 : i32
    return %arg0, %c0_i32, %c0_i32_0 : i32, i32, i32
  }
  func.func @transform_8(%arg0: i32) -> (i32, i32, i32) {
    %c0_i32 = arith.constant 0 : i32
    %c0_i32_0 = arith.constant 0 : i32
    %c0_i32_1 = arith.constant 0 : i32
    return %arg0, %c0_i32, %c0_i32_0 : i32, i32, i32
  }
  func.func @transform_9(%arg0: i32) -> (i32, i32) {
    %c0_i32 = arith.constant 0 : i32
    %c0_i32_0 = arith.constant 0 : i32
    %c0_i32_1 = arith.constant 0 : i32
    return %c0_i32, %c0_i32_0 : i32, i32
  }
}

</mosaic_0001>

<llo_original>
// kernel: tpu_custom_call.1
$region0: #{tpu_custom_call.1}
  #allocation0 [shape = 'u32[]', space=smem, size = 0x4, offset = 0x4, fixed_abs, tag = 'smem constant byte address 0x4 - core index']
  #allocation1 [shape = 'u32[144,128]{1,0:T(1,128)}', space=vmem, size = 0x12000, scoped, tag = 'internal scratch']
  #allocation2 [shape = 'f32[8,128]{1,0:T(8,128)}', space=vmem, size = 0x1000, scoped, tag = 'scratch operand']
  %s0 = inlined_call_operand.hbm [shape: f32[8,128], index: 0, kind: input, shape index: {}]
  %s1 = inlined_call_operand.hbm [shape: bf16[128,256], index: 1, kind: input, shape index: {}]
  %s2 = inlined_call_operand.vmem [shape: bf16[8,8], index: 2, kind: input, shape index: {}]
  %s3 = inlined_call_operand.vmem [shape: bf16[8,8], index: 3, kind: input, shape index: {}]
  %s4 = inlined_call_operand.hbm [shape: bf16[128,128], index: 4, kind: input, shape index: {}]
  %s5 = inlined_call_operand.vmem [shape: f32[1,128], index: 5, kind: input, shape index: {}]
  %s6 = inlined_call_operand.hbm [shape: bf16[2,128,512], index: 6, kind: input, shape index: {}]
  %s7 = inlined_call_operand.hbm [shape: bf16[2,512,128], index: 7, kind: input, shape index: {}]
  %s8 = inlined_call_operand.hbm [shape: f32[2,8,512], index: 8, kind: input, shape index: {}]
  %s9 = inlined_call_operand.hbm [shape: f32[8,128], index: 9, kind: output, shape index: {}]
  %s10 = sld [smem:[#allocation0]]
  $region101: #{tpu_custom_call.1} parent=0
    _
  %s12 = ssub.s32 1, %s10
  %s13 = scalar_select 0, %s12, %s10
  $region1: #{tpu_custom_call.1} parent=0
    #allocation3 [shape = 'u8[4096]{0}', space=vmem, size = 0x1000, scoped, tag = 'input window, operand 0, single buffered']
    #allocation4 [shape = 's32[2]{0}', space=sflag, size = 0x8, scoped, tag = 'scoped memory for tpu_custom_call.1']
    #allocation5 [shape = 's32[2]{0}', space=sflag, size = 0x8, scoped, tag = 'scoped memory for tpu_custom_call.1']
    #allocation6 [shape = 'u8[65536]{0}', space=vmem, size = 0x10000, scoped, tag = 'input window, operand 1, single buffered']
    #allocation7 [shape = 's32[1]{0}', space=sflag, size = 0x4, scoped, tag = 'scoped memory for tpu_custom_call.1']
    #allocation8 [shape = 'u8[32768]{0}', space=vmem, size = 0x8000, scoped, tag = 'input window, operand 4, single buffered']
    #allocation9 [shape = 'u8[262144]{0}', space=vmem, size = 0x40000, scoped, tag = 'input window, operand 6']
    #allocation10 [shape = 's32[2]{0}', space=sflag, size = 0x8, scoped, tag = 'scoped memory for tpu_custom_call.1']
    #allocation11 [shape = 'u8[262144]{0}', space=vmem, size = 0x40000, scoped, tag = 'input window, operand 7']
    #allocation12 [shape = 'u8[32768]{0}', space=vmem, size = 0x8000, scoped, tag = 'input window, operand 8']
    #allocation13 [shape = 's32[2]{0}', space=sflag, size = 0x8, scoped, tag = 'scoped memory for tpu_custom_call.1']
    #allocation14 [shape = 'u8[4096]{0}', space=vmem, size = 0x1000, scoped, tag = 'output window, operand 0, single buffered']
    %14 = vsyncpa [#allocation4], 0
    %15 = vsyncpa [#allocation7], 0
    %16 = vsyncpa [#allocation10], 0
    %s17 = scalar_lea.sflag [#allocation10], 1
    %18 = vsyncpa %s17, 0
    %19 = vsyncpa [#allocation13], 0
    %s20 = scalar_lea.sflag [#allocation13], 1
    %21 = vsyncpa %s20, 0
    %22 = vsyncpa [#allocation5], 0
    loop: start=0, step=1, limit=4
    $region2: #{tpu_custom_call.1} parent=1 // loop_pre_header
      _
    $region3: #{tpu_custom_call.1} parent=1 // loop_header
      %s24 = sphi 0, %s28
      %p25 = scmp.ge.s32.totalorder %s24, 4
      %s32 = sphi 0, %s32
      %s34 = sphi 0, %s32
      %s35 = sphi 0, %s34
      %s49 = sphi 0, %s35
      %s53 = sphi 0, %s53
      %s55 = sphi 0, %s53
      %s56 = sphi 0, %s55
      %s70 = sphi 0, %s56
      %s74 = sphi 0, %s74
      %s76 = sphi 0, %s74
      %s77 = sphi 0, %s76
      %s91 = sphi 0, %s77
      %s95 = sphi 0, %s95
      %s97 = sphi 0, %s95
      %s98 = sphi 0, %s97
      %s112 = sphi 0, %s98
      %s116 = sphi 0, %s116
      %s118 = sphi 0, %s116
      %s119 = sphi 0, %s118
      %s133 = sphi 0, %s119
      %s137 = sphi 0, %s137
      %s139 = sphi 0, %s137
      %s140 = sphi 0, %s139
      %s154 = sphi 0, %s140
      %s160 = sphi 0, %s162
      %s163 = sphi 0, %s160
      %s164 = sphi 0, %s163
      %s180 = sphi 0, %s164
      %s186 = sphi 0, %s188
      %s189 = sphi 0, %s186
      %s190 = sphi 0, %s189
      %s206 = sphi 0, %s190
      %s212 = sphi 0, %s214
      %s215 = sphi 0, %s212
      %s216 = sphi 0, %s215
      %s232 = sphi 0, %s216
      %s236 = sphi 0, %s236
      %s238 = sphi 0, %s236
      %s239 = sphi 0, %s238
      %s253 = sphi 0, %s239
    $region4: #{tpu_custom_call.1} parent=1 // loop_header_branch
      %27 = sbr.rel (%p25) target = $region8
    $region5: #{tpu_custom_call.1} parent=1 // loop_body
      %s29 = ssub.s32 %s24, 1
      %s30 = ssub.s32 %s24, 2
      %s31 = sadd.s32 %s24, 1
      %s33 = sadd.s32 %s32, 1
      %p36 = scmp.eq.s32.totalorder %s24, 1
      %p37 = scmp.ne.s32.totalorder %s32, %s34
      %p38 = scmp.eq.s32.totalorder %s24, 0
      %p39 = por %p37, %p38
      %p40 = scmp.ne.s32.totalorder %s32, %s34
      %p41 = scmp.eq.s32.totalorder %s29, 1
      %p42 = por %p40, %p41
      %p43 = scmp.ne.s32.totalorder %s34, %s35
      %p44 = scmp.eq.s32.totalorder %s29, 0
      %p45 = por %p43, %p44
      %p46 = scmp.ne.s32.totalorder %s34, %s35
      %p47 = scmp.eq.s32.totalorder %s30, 1
      %p48 = por %p46, %p47
      %p50 = scmp.ne.s32.totalorder %s35, %s49
      %p51 = scmp.eq.s32.totalorder %s30, 0
      %p52 = por %p50, %p51
      %s54 = sadd.s32 %s53, 1
      %p57 = scmp.eq.s32.totalorder %s24, 1
      %p58 = scmp.ne.s32.totalorder %s53, %s55
      %p59 = scmp.eq.s32.totalorder %s24, 0
      %p60 = por %p58, %p59
      %p61 = scmp.ne.s32.totalorder %s53, %s55
      %p62 = scmp.eq.s32.totalorder %s29, 1
      %p63 = por %p61, %p62
      %p64 = scmp.ne.s32.totalorder %s55, %s56
      %p65 = scmp.eq.s32.totalorder %s29, 0
      %p66 = por %p64, %p65
      %p67 = scmp.ne.s32.totalorder %s55, %s56
      %p68 = scmp.eq.s32.totalorder %s30, 1
      %p69 = por %p67, %p68
      %p71 = scmp.ne.s32.totalorder %s56, %s70
      %p72 = scmp.eq.s32.totalorder %s30, 0
      %p73 = por %p71, %p72
      %s75 = sadd.s32 %s74, 1
      %p78 = scmp.eq.s32.totalorder %s24, 1
      %p79 = scmp.ne.s32.totalorder %s74, %s76
      %p80 = scmp.eq.s32.totalorder %s24, 0
      %p81 = por %p79, %p80
      %p82 = scmp.ne.s32.totalorder %s74, %s76
      %p83 = scmp.eq.s32.totalorder %s29, 1
      %p84 = por %p82, %p83
      %p85 = scmp.ne.s32.totalorder %s76, %s77
      %p86 = scmp.eq.s32.totalorder %s29, 0
      %p87 = por %p85, %p86
      %p88 = scmp.ne.s32.totalorder %s76, %s77
      %p89 = scmp.eq.s32.totalorder %s30, 1
      %p90 = por %p88, %p89
      %p92 = scmp.ne.s32.totalorder %s77, %s91
      %p93 = scmp.eq.s32.totalorder %s30, 0
      %p94 = por %p92, %p93
      %s96 = sadd.s32 %s95, 1
      %p99 = scmp.eq.s32.totalorder %s24, 1
      %p100 = scmp.ne.s32.totalorder %s95, %s97
      %p101 = scmp.eq.s32.totalorder %s24, 0
      %p102 = por %p100, %p101
      %p103 = scmp.ne.s32.totalorder %s95, %s97
      %p104 = scmp.eq.s32.totalorder %s29, 1
      %p105 = por %p103, %p104
      %p106 = scmp.ne.s32.totalorder %s97, %s98
      %p107 = scmp.eq.s32.totalorder %s29, 0
      %p108 = por %p106, %p107
      %p109 = scmp.ne.s32.totalorder %s97, %s98
      %p110 = scmp.eq.s32.totalorder %s30, 1
      %p111 = por %p109, %p110
      %p113 = scmp.ne.s32.totalorder %s98, %s112
      %p114 = scmp.eq.s32.totalorder %s30, 0
      %p115 = por %p113, %p114
      %s117 = sadd.s32 %s116, 1
      %p120 = scmp.eq.s32.totalorder %s24, 1
      %p121 = scmp.ne.s32.totalorder %s116, %s118
      %p122 = scmp.eq.s32.totalorder %s24, 0
      %p123 = por %p121, %p122
      %p124 = scmp.ne.s32.totalorder %s116, %s118
      %p125 = scmp.eq.s32.totalorder %s29, 1
      %p126 = por %p124, %p125
      %p127 = scmp.ne.s32.totalorder %s118, %s119
      %p128 = scmp.eq.s32.totalorder %s29, 0
      %p129 = por %p127, %p128
      %p130 = scmp.ne.s32.totalorder %s118, %s119
      %p131 = scmp.eq.s32.totalorder %s30, 1
      %p132 = por %p130, %p131
      %p134 = scmp.ne.s32.totalorder %s119, %s133
      %p135 = scmp.eq.s32.totalorder %s30, 0
      %p136 = por %p134, %p135
      %s138 = sadd.s32 %s137, 1
      %p141 = scmp.eq.s32.totalorder %s24, 1
      %p142 = scmp.ne.s32.totalorder %s137, %s139
      %p143 = scmp.eq.s32.totalorder %s24, 0
      %p144 = por %p142, %p143
      %p145 = scmp.ne.s32.totalorder %s137, %s139
      %p146 = scmp.eq.s32.totalorder %s29, 1
      %p147 = por %p145, %p146
      %p148 = scmp.ne.s32.totalorder %s139, %s140
      %p149 = scmp.eq.s32.totalorder %s29, 0
      %p150 = por %p148, %p149
      %p151 = scmp.ne.s32.totalorder %s139, %s140
      %p152 = scmp.eq.s32.totalorder %s30, 1
      %p153 = por %p151, %p152
      %p155 = scmp.ne.s32.totalorder %s140, %s154
      %p156 = scmp.eq.s32.totalorder %s30, 0
      %p157 = por %p155, %p156
      %s158 = ssub.s32 %s24, %s31
      %p159 = scmp.eq.s32.totalorder %s158, 0
      %s161 = sadd.s32 %s160, 1
      %s162 = scalar_select %p159, %s160, %s161
      %p165 = pneg %p159
      %p166 = scmp.eq.s32.totalorder %s24, 1
      %p167 = por %p165, %p166
      %p168 = scmp.ne.s32.totalorder %s160, %s163
      %p169 = scmp.eq.s32.totalorder %s24, 0
      %p170 = por %p168, %p169
      %p171 = scmp.ne.s32.totalorder %s160, %s163
      %p172 = scmp.eq.s32.totalorder %s29, 1
      %p173 = por %p171, %p172
      %p174 = scmp.ne.s32.totalorder %s163, %s164
      %p175 = scmp.eq.s32.totalorder %s29, 0
      %p176 = por %p174, %p175
      %p177 = scmp.ne.s32.totalorder %s163, %s164
      %p178 = scmp.eq.s32.totalorder %s30, 1
      %p179 = por %p177, %p178
      %p181 = scmp.ne.s32.totalorder %s164, %s180
      %p182 = scmp.eq.s32.totalorder %s30, 0
      %p183 = por %p181, %p182
      %s184 = ssub.s32 %s24, %s31
      %p185 = scmp.eq.s32.totalorder %s184, 0
      %s187 = sadd.s32 %s186, 1
      %s188 = scalar_select %p185, %s186, %s187
      %p191 = pneg %p185
      %p192 = scmp.eq.s32.totalorder %s24, 1
      %p193 = por %p191, %p192
      %p194 = scmp.ne.s32.totalorder %s186, %s189
      %p195 = scmp.eq.s32.totalorder %s24, 0
      %p196 = por %p194, %p195
      %p197 = scmp.ne.s32.totalorder %s186, %s189
      %p198 = scmp.eq.s32.totalorder %s29, 1
      %p199 = por %p197, %p198
      %p200 = scmp.ne.s32.totalorder %s189, %s190
      %p201 = scmp.eq.s32.totalorder %s29, 0
      %p202 = por %p200, %p201
      %p203 = scmp.ne.s32.totalorder %s189, %s190
      %p204 = scmp.eq.s32.totalorder %s30, 1
      %p205 = por %p203, %p204
      %p207 = scmp.ne.s32.totalorder %s190, %s206
      %p208 = scmp.eq.s32.totalorder %s30, 0
      %p209 = por %p207, %p208
      %s210 = ssub.s32 %s24, %s31
      %p211 = scmp.eq.s32.totalorder %s210, 0
      %s213 = sadd.s32 %s212, 1
      %s214 = scalar_select %p211, %s212, %s213
      %p217 = pneg %p211
      %p218 = scmp.eq.s32.totalorder %s24, 1
      %p219 = por %p217, %p218
      %p220 = scmp.ne.s32.totalorder %s212, %s215
      %p221 = scmp.eq.s32.totalorder %s24, 0
      %p222 = por %p220, %p221
      %p223 = scmp.ne.s32.totalorder %s212, %s215
      %p224 = scmp.eq.s32.totalorder %s29, 1
      %p225 = por %p223, %p224
      %p226 = scmp.ne.s32.totalorder %s215, %s216
      %p227 = scmp.eq.s32.totalorder %s29, 0
      %p228 = por %p226, %p227
      %p229 = scmp.ne.s32.totalorder %s215, %s216
      %p230 = scmp.eq.s32.totalorder %s30, 1
      %p231 = por %p229, %p230
      %p233 = scmp.ne.s32.totalorder %s216, %s232
      %p234 = scmp.eq.s32.totalorder %s30, 0
      %p235 = por %p233, %p234
      %s237 = sadd.s32 %s236, 1
      %p240 = scmp.eq.s32.totalorder %s24, 1
      %p241 = scmp.ne.s32.totalorder %s236, %s238
      %p242 = scmp.eq.s32.totalorder %s24, 0
      %p243 = por %p241, %p242
      %p244 = scmp.ne.s32.totalorder %s236, %s238
      %p245 = scmp.eq.s32.totalorder %s29, 1
      %p246 = por %p244, %p245
      %p247 = scmp.ne.s32.totalorder %s238, %s239
      %p248 = scmp.eq.s32.totalorder %s29, 0
      %p249 = por %p247, %p248
      %p250 = scmp.ne.s32.totalorder %s238, %s239
      %p251 = scmp.eq.s32.totalorder %s30, 1
      %p252 = por %p250, %p251
      %p254 = scmp.ne.s32.totalorder %s239, %s253
      %p255 = scmp.eq.s32.totalorder %s30, 0
      %p256 = por %p254, %p255
      %p257 = scmp.le.s32.totalorder 1, %s24
      %p258 = scmp.lt.s32.totalorder %s24, 3
      %p259 = pnand %p257, %p258
      %p260 = pneg %p259
      // Predicated region
      $region9: #{tpu_custom_call.1} parent=5 // pred_check
        _
      $region10: #{tpu_custom_call.1} parent=5 // pred_check_branch
        %262 = sbr.rel (%p259) target = $region12
      $region11: #{tpu_custom_call.1} parent=5 // pred_region
        %s263 = ssub.s32 %s24, 1
        // Predicated region
        $region13: #{tpu_custom_call.1} parent=11 // pred_check
          %p264 = pneg %p45
        $region14: #{tpu_custom_call.1} parent=11 // pred_check_branch
          %266 = sbr.rel (%p264) target = $region16
        $region15: #{tpu_custom_call.1} parent=11 // pred_region
          %s268 = ssub.s32 128, 128
          %269 = vsyncadd [#allocation4], %s268
          %s271 = sshll.u32 [#allocation3], 4
          %s272 = int_to_ptr.vmem [resolvable:$true] %s271
          %274 = dma.hbm_to_vmem [thread:$0]  %s0, 128, %s272, [#allocation4]
        $region16: #{tpu_custom_call.1} parent=11 // pred_fallthru
          _
        // Predicated region
        $region17: #{tpu_custom_call.1} parent=11 // pred_check
          %p275 = pneg %p66
        $region18: #{tpu_custom_call.1} parent=11 // pred_check_branch
          %277 = sbr.rel (%p275) target = $region20
        $region19: #{tpu_custom_call.1} parent=11 // pred_region
          %s279 = ssub.s32 2048, 2048
          %280 = vsyncadd [#allocation7], %s279
          %s281 = sshll.u32 [#allocation6], 4
          %s282 = int_to_ptr.vmem [resolvable:$true] %s281
          %287 = dma.hbm_to_vmem [thread:$0]  %s1, 2048, %s282, [#allocation7], 128, 128, 8
        $region20: #{tpu_custom_call.1} parent=11 // pred_fallthru
          _
        // Predicated region
        $region21: #{tpu_custom_call.1} parent=11 // pred_check
          %p288 = pneg %p87
        $region22: #{tpu_custom_call.1} parent=11 // pred_check_branch
          %290 = sbr.rel (%p288) target = $region24
        $region23: #{tpu_custom_call.1} parent=11 // pred_region
          _
        $region24: #{tpu_custom_call.1} parent=11 // pred_fallthru
          _
        // Predicated region
        $region25: #{tpu_custom_call.1} parent=11 // pred_check
          %p291 = pneg %p108
        $region26: #{tpu_custom_call.1} parent=11 // pred_check_branch
          %293 = sbr.rel (%p291) target = $region28
        $region27: #{tpu_custom_call.1} parent=11 // pred_region
          _
        $region28: #{tpu_custom_call.1} parent=11 // pred_fallthru
          _
        // Predicated region
        $region29: #{tpu_custom_call.1} parent=11 // pred_check
          %p294 = pneg %p129
        $region30: #{tpu_custom_call.1} parent=11 // pred_check_branch
          %296 = sbr.rel (%p294) target = $region32
        $region31: #{tpu_custom_call.1} parent=11 // pred_region
          %s298 = ssub.s32 1024, 1024
          %299 = vsyncadd [#allocation7], %s298
          %s300 = sshll.u32 [#allocation8], 4
          %s301 = int_to_ptr.vmem [resolvable:$true] %s300
          %306 = dma.hbm_to_vmem [thread:$0]  %s4, 1024, %s301, [#allocation7], 64, 64, 4
        $region32: #{tpu_custom_call.1} parent=11 // pred_fallthru
          _
        // Predicated region
        $region33: #{tpu_custom_call.1} parent=11 // pred_check
          %p307 = pneg %p150
        $region34: #{tpu_custom_call.1} parent=11 // pred_check_branch
          %309 = sbr.rel (%p307) target = $region36
        $region35: #{tpu_custom_call.1} parent=11 // pred_region
          _
        $region36: #{tpu_custom_call.1} parent=11 // pred_fallthru
          _
      $region12: #{tpu_custom_call.1} parent=5 // pred_fallthru
        _
      %p310 = scmp.lt.s32.totalorder %s24, 2
      // Predicated region
      $region37: #{tpu_custom_call.1} parent=5 // pred_check
        %p311 = pneg %p310
      $region38: #{tpu_custom_call.1} parent=5 // pred_check_branch
        %313 = sbr.rel (%p311) target = $region40
      $region39: #{tpu_custom_call.1} parent=5 // pred_region
        // Predicated region
        $region41: #{tpu_custom_call.1} parent=39 // pred_check
          %p314 = pneg %p170
        $region42: #{tpu_custom_call.1} parent=39 // pred_check_branch
          %316 = sbr.rel (%p314) target = $region44
        $region43: #{tpu_custom_call.1} parent=39 // pred_region
          %s317 = sand.u32 %s24, 1
          %s318 = scalar_lea.sflag [#allocation10], %s317
          %s319 = sand.u32 %s160, 1
          %s320 = smul.addr %s319, 256
          %s321 = scalar_lea.vmem [#allocation9], %s320
          %s323 = ssub.s32 4096, 4096
          %324 = vsyncadd %s318, %s323
          %s325 = smul.addr %s24, 64
          %s326 = smul.addr %s325, 64
          %s327 = scalar_lea.hbm %s6, %s326
          %s328 = sshll.u32 %s321, 4
          %s329 = int_to_ptr.vmem [resolvable:$true] %s328
          %334 = dma.hbm_to_vmem [thread:$0]  %s327, 4096, %s329, %s318, 256, 256, 16
        $region44: #{tpu_custom_call.1} parent=39 // pred_fallthru
          _
        // Predicated region
        $region45: #{tpu_custom_call.1} parent=39 // pred_check
          %p335 = pneg %p196
        $region46: #{tpu_custom_call.1} parent=39 // pred_check_branch
          %337 = sbr.rel (%p335) target = $region48
        $region47: #{tpu_custom_call.1} parent=39 // pred_region
          %s338 = sand.u32 %s24, 1
          %s339 = scalar_lea.sflag [#allocation10], %s338
          %s340 = sand.u32 %s186, 1
          %s341 = smul.addr %s340, 256
          %s342 = scalar_lea.vmem [#allocation11], %s341
          %s344 = ssub.s32 4096, 4096
          %345 = vsyncadd %s339, %s344
          %s346 = smul.addr %s24, 64
          %s347 = smul.addr %s346, 64
          %s348 = scalar_lea.hbm %s7, %s347
          %s349 = sshll.u32 %s342, 4
          %s350 = int_to_ptr.vmem [resolvable:$true] %s349
          %355 = dma.hbm_to_vmem [thread:$0]  %s348, 4096, %s350, %s339, 64, 64, 4
        $region48: #{tpu_custom_call.1} parent=39 // pred_fallthru
          _
        // Predicated region
        $region49: #{tpu_custom_call.1} parent=39 // pred_check
          %p356 = pneg %p222
        $region50: #{tpu_custom_call.1} parent=39 // pred_check_branch
          %358 = sbr.rel (%p356) target = $region52
        $region51: #{tpu_custom_call.1} parent=39 // pred_region
          %s359 = sand.u32 %s212, 1
          %s360 = scalar_lea.sflag [#allocation13], %s359
          %s361 = sand.u32 %s212, 1
          %s362 = smul.addr %s361, 32
          %s363 = scalar_lea.vmem [#allocation12], %s362
          %s365 = ssub.s32 512, 512
          %366 = vsyncadd %s360, %s365
          %s367 = smul.addr %s24, 4
          %s368 = smul.addr %s367, 128
          %s369 = scalar_lea.hbm %s8, %s368
          %s371 = sshll.u32 %s363, 4
          %s372 = int_to_ptr.vmem [resolvable:$true] %s371
          %374 = dma.hbm_to_vmem [thread:$0]  %s369, 512, %s372, %s360
        $region52: #{tpu_custom_call.1} parent=39 // pred_fallthru
          _
      $region40: #{tpu_custom_call.1} parent=5 // pred_fallthru
        _
      %p375 = scmp.le.s32.totalorder 1, %s24
      %p376 = scmp.lt.s32.totalorder %s24, 3
      %p377 = pnand %p375, %p376
      %p378 = pneg %p377
      // Predicated region
      $region53: #{tpu_custom_call.1} parent=5 // pred_check
        _
      $region54: #{tpu_custom_call.1} parent=5 // pred_check_branch
        %380 = sbr.rel (%p377) target = $region56
      $region55: #{tpu_custom_call.1} parent=5 // pred_region
        %s381 = ssub.s32 %s24, 1
        // Predicated region
        $region57: #{tpu_custom_call.1} parent=55 // pred_check
          %p382 = pneg %p45
        $region58: #{tpu_custom_call.1} parent=55 // pred_check_branch
          %384 = sbr.rel (%p382) target = $region60
        $region59: #{tpu_custom_call.1} parent=55 // pred_region
          %385 = dma.done [#allocation4], 128
        $region60: #{tpu_custom_call.1} parent=55 // pred_fallthru
          _
        // Predicated region
        $region61: #{tpu_custom_call.1} parent=55 // pred_check
          %p386 = pneg %p66
        $region62: #{tpu_custom_call.1} parent=55 // pred_check_branch
          %388 = sbr.rel (%p386) target = $region64
        $region63: #{tpu_custom_call.1} parent=55 // pred_region
          %389 = dma.done [#allocation7], 2048
        $region64: #{tpu_custom_call.1} parent=55 // pred_fallthru
          _
        // Predicated region
        $region65: #{tpu_custom_call.1} parent=55 // pred_check
          %p390 = pneg %p129
        $region66: #{tpu_custom_call.1} parent=55 // pred_check_branch
          %392 = sbr.rel (%p390) target = $region68
        $region67: #{tpu_custom_call.1} parent=55 // pred_region
          %393 = dma.done [#allocation7], 1024
        $region68: #{tpu_custom_call.1} parent=55 // pred_fallthru
          _
        %s394 = sand.u32 %s29, 1
        %s395 = scalar_lea.sflag [#allocation10], %s394
        %s396 = sand.u32 %s163, 1
        %s397 = smul.addr %s396, 256
        %s398 = scalar_lea.vmem [#allocation9], %s397
        // Predicated region
        $region69: #{tpu_custom_call.1} parent=55 // pred_check
          %p399 = pneg %p176
        $region70: #{tpu_custom_call.1} parent=55 // pred_check_branch
          %401 = sbr.rel (%p399) target = $region72
        $region71: #{tpu_custom_call.1} parent=55 // pred_region
          %402 = dma.done %s395, 4096
        $region72: #{tpu_custom_call.1} parent=55 // pred_fallthru
          _
        %s403 = sand.u32 %s29, 1
        %s404 = scalar_lea.sflag [#allocation10], %s403
        %s405 = sand.u32 %s189, 1
        %s406 = smul.addr %s405, 256
        %s407 = scalar_lea.vmem [#allocation11], %s406
        // Predicated region
        $region73: #{tpu_custom_call.1} parent=55 // pred_check
          %p408 = pneg %p202
        $region74: #{tpu_custom_call.1} parent=55 // pred_check_branch
          %410 = sbr.rel (%p408) target = $region76
        $region75: #{tpu_custom_call.1} parent=55 // pred_region
          %411 = dma.done %s404, 4096
        $region76: #{tpu_custom_call.1} parent=55 // pred_fallthru
          _
        %s412 = sand.u32 %s215, 1
        %s413 = scalar_lea.sflag [#allocation13], %s412
        %s414 = sand.u32 %s215, 1
        %s415 = smul.addr %s414, 32
        %s416 = scalar_lea.vmem [#allocation12], %s415
        // Predicated region
        $region77: #{tpu_custom_call.1} parent=55 // pred_check
          %p417 = pneg %p228
        $region78: #{tpu_custom_call.1} parent=55 // pred_check_branch
          %419 = sbr.rel (%p417) target = $region80
        $region79: #{tpu_custom_call.1} parent=55 // pred_region
          %420 = dma.done %s413, 512
        $region80: #{tpu_custom_call.1} parent=55 // pred_fallthru
          _
        %p421 = pneg %p45
        %p422 = pneg %p42
        %p423 = pneg %p66
        %p424 = pneg %p63
        %p425 = pneg %p87
        %p426 = pneg %p84
        %p427 = pneg %p108
        %p428 = pneg %p105
        %p429 = pneg %p129
        %p430 = pneg %p126
        %p431 = pneg %p150
        %p432 = pneg %p147
        %s433 = sand.u32 %s29, 1
        %s434 = scalar_lea.sflag [#allocation10], %s433
        %s435 = sand.u32 %s163, 1
        %s436 = smul.addr %s435, 256
        %s437 = scalar_lea.vmem [#allocation9], %s436
        %p438 = pneg %p176
        %p439 = pneg %p173
        %s440 = sand.u32 %s29, 1
        %s441 = scalar_lea.sflag [#allocation10], %s440
        %s442 = sand.u32 %s189, 1
        %s443 = smul.addr %s442, 256
        %s444 = scalar_lea.vmem [#allocation11], %s443
        %p445 = pneg %p202
        %p446 = pneg %p199
        %s447 = sand.u32 %s215, 1
        %s448 = scalar_lea.sflag [#allocation13], %s447
        %s449 = sand.u32 %s215, 1
        %s450 = smul.addr %s449, 32
        %s451 = scalar_lea.vmem [#allocation12], %s450
        %p452 = pneg %p228
        %p453 = pneg %p225
        %p454 = pneg %p249
        %p455 = pneg %p246
        %p461 = scmp.eq.s32.totalorder %s29, 0
        // Predicated region
        $region81: #{tpu_custom_call.1} parent=55 // pred_check
          %p462 = pneg %p461
        $region82: #{tpu_custom_call.1} parent=55 // pred_check_branch
          %464 = sbr.rel (%p462) target = $region84
        $region83: #{tpu_custom_call.1} parent=55 // pred_region
          %v465 = vld [vmem:[#allocation3] sm:$0xff]
          %466 = vst [vmem:[#allocation2] sm:$0xff] %v465
        $region84: #{tpu_custom_call.1} parent=55 // pred_fallthru
          _
        %v467 = vld [vmem:[#allocation2] sm:$0xff]
        %v468 = vpack.c.bf16 %v467, %v467
        %v469 = vld [vmem:[#allocation6] sm:$0xff]
        %v470 = vld [vmem:[#allocation6 + $0x8] sm:$0xff]
        %v471 = vld [vmem:[#allocation6 + $0x10] sm:$0xff]
        %v472 = vld [vmem:[#allocation6 + $0x18] sm:$0xff]
        %v473 = vld [vmem:[#allocation6 + $0x20] sm:$0xff]
        %v474 = vld [vmem:[#allocation6 + $0x28] sm:$0xff]
        %v475 = vld [vmem:[#allocation6 + $0x30] sm:$0xff]
        %v476 = vld [vmem:[#allocation6 + $0x38] sm:$0xff]
        %v477 = vld [vmem:[#allocation6 + $0x40] sm:$0xff]
        %v478 = vld [vmem:[#allocation6 + $0x48] sm:$0xff]
        %v479 = vld [vmem:[#allocation6 + $0x50] sm:$0xff]
        %v480 = vld [vmem:[#allocation6 + $0x58] sm:$0xff]
        %v481 = vld [vmem:[#allocation6 + $0x60] sm:$0xff]
        %v482 = vld [vmem:[#allocation6 + $0x68] sm:$0xff]
        %v483 = vld [vmem:[#allocation6 + $0x70] sm:$0xff]
        %v484 = vld [vmem:[#allocation6 + $0x78] sm:$0xff]
        %v501 = vunpack.c.l.b16 %v469
        %v502 = vunpack.c.h.b16 %v469
        %v503 = vunpack.c.l.b16 %v470
        %v504 = vunpack.c.h.b16 %v470
        %v505 = vunpack.c.l.b16 %v471
        %v506 = vunpack.c.h.b16 %v471
        %v507 = vunpack.c.l.b16 %v472
        %v508 = vunpack.c.h.b16 %v472
        %v509 = vunpack.c.l.b16 %v473
        %v510 = vunpack.c.h.b16 %v473
        %v511 = vunpack.c.l.b16 %v474
        %v512 = vunpack.c.h.b16 %v474
        %v513 = vunpack.c.l.b16 %v475
        %v514 = vunpack.c.h.b16 %v475
        %v515 = vunpack.c.l.b16 %v476
        %v516 = vunpack.c.h.b16 %v476
        %v517 = vunpack.c.l.b16 %v477
        %v518 = vunpack.c.h.b16 %v477
        %v519 = vunpack.c.l.b16 %v478
        %v520 = vunpack.c.h.b16 %v478
        %v521 = vunpack.c.l.b16 %v479
        %v522 = vunpack.c.h.b16 %v479
        %v523 = vunpack.c.l.b16 %v480
        %v524 = vunpack.c.h.b16 %v480
        %v525 = vunpack.c.l.b16 %v481
        %v526 = vunpack.c.h.b16 %v481
        %v527 = vunpack.c.l.b16 %v482
        %v528 = vunpack.c.h.b16 %v482
        %v529 = vunpack.c.l.b16 %v483
        %v530 = vunpack.c.h.b16 %v483
        %v531 = vunpack.c.l.b16 %v484
        %v532 = vunpack.c.h.b16 %v484
        %v533 = vpack.c.b16 %v503, %v501
        %v534 = vpack.c.b16 %v504, %v502
        %v535 = vpack.c.b16 %v507, %v505
        %v536 = vpack.c.b16 %v508, %v506
        %v537 = vpack.c.b16 %v511, %v509
        %v538 = vpack.c.b16 %v512, %v510
        %v539 = vpack.c.b16 %v515, %v513
        %v540 = vpack.c.b16 %v516, %v514
        %v541 = vpack.c.b16 %v519, %v517
        %v542 = vpack.c.b16 %v520, %v518
        %v543 = vpack.c.b16 %v523, %v521
        %v544 = vpack.c.b16 %v524, %v522
        %v545 = vpack.c.b16 %v527, %v525
        %v546 = vpack.c.b16 %v528, %v526
        %v547 = vpack.c.b16 %v531, %v529
        %v548 = vpack.c.b16 %v532, %v530
        %565 = vmatprep.subr.bf16.mxu0 %v534
        %566 = vmatpush1.bf16.msra.mxu0 %v533
        %567 = vmatprep.subr.bf16.mxu0 %v536
        %568 = vmatpush1.bf16.msra.mxu0 %v535
        %569 = vmatprep.subr.bf16.mxu0 %v538
        %570 = vmatpush1.bf16.msra.mxu0 %v537
        %571 = vmatprep.subr.bf16.mxu0 %v540
        %572 = vmatpush1.bf16.msra.mxu0 %v539
        %573 = vmatprep.subr.bf16.mxu0 %v542
        %574 = vmatpush1.bf16.msra.mxu0 %v541
        %575 = vmatprep.subr.bf16.mxu0 %v544
        %576 = vmatpush1.bf16.msra.mxu0 %v543
        %577 = vmatprep.subr.bf16.mxu0 %v546
        %578 = vmatpush1.bf16.msra.mxu0 %v545
        %579 = vmatprep.subr.bf16.mxu0 %v548
        %580 = vmatpush1.bf16.msra.mxu0 %v547
        %581 = vmatprep.subr.bf16.mxu0 0
        %582 = vmatpush1.bf16.msra.mxu0 0
        %583 = vmatprep.subr.bf16.mxu0 0
        %584 = vmatpush1.bf16.msra.mxu0 0
        %585 = vmatprep.subr.bf16.mxu0 0
        %586 = vmatpush1.bf16.msra.mxu0 0
        %587 = vmatprep.subr.bf16.mxu0 0
        %588 = vmatpush1.bf16.msra.mxu0 0
        %589 = vmatprep.subr.bf16.mxu0 0
        %590 = vmatpush1.bf16.msra.mxu0 0
        %591 = vmatprep.subr.bf16.mxu0 0
        %592 = vmatpush1.bf16.msra.mxu0 0
        %593 = vmatprep.subr.bf16.mxu0 0
        %594 = vmatpush1.bf16.msra.mxu0 0
        %595 = vmatprep.subr.bf16.mxu0 0
        %596 = vmatpush1.bf16.msra.mxu0 0
        %597 = vmatprep.mubr.bf16.mxu0 0
        %598 = vmatmul.mubr.bf16.gmra.mrb[0].mxu0 %v468
        %v599 = vpop.f32.mrb[0].mxu0
        %v600 = vadd.f32 0.0, %v599
        %v601 = vpop.f32.mrb[0].mxu0
        %v602 = vadd.f32 0.0, %v601
        %v603 = vpop.f32.mrb[0].mxu0
        %v604 = vpop.f32.mrb[0].mxu0
        %605 = vdwg.mxu0
        %v606 = vpack.c.bf16 %v600, %v600
        %v607 = vpack.c.bf16 %v602, %v602
        %v608 = vld [vmem:[%s2] sm:$0xf]
        %v609 = vld [vmem:[%s3] sm:$0xf]
        %vm610 = vcmask 64512
        %v612 = vsel %vm610, %v609, 0
        %vm614 = vcmask 1043456
        %v616 = vsel %vm614, %v607, 0
        %618 = vmatprep.subr.bf16.mxu0 0
        %619 = vmatpush1.bf16.msra.mxu0 %v616
        %620 = vmatprep.subr.bf16.mxu0 0
        %621 = vmatpush1.bf16.msra.mxu0 0
        %622 = vmatprep.subr.bf16.mxu0 0
        %623 = vmatpush1.bf16.msra.mxu0 0
        %624 = vmatprep.subr.bf16.mxu0 0
        %625 = vmatpush1.bf16.msra.mxu0 0
        %626 = vmatprep.subr.bf16.mxu0 0
        %627 = vmatpush1.bf16.msra.mxu0 0
        %628 = vmatprep.subr.bf16.mxu0 0
        %629 = vmatpush1.bf16.msra.mxu0 0
        %630 = vmatprep.subr.bf16.mxu0 0
        %631 = vmatpush1.bf16.msra.mxu0 0
        %632 = vmatprep.subr.bf16.mxu0 0
        %633 = vmatpush1.bf16.msra.mxu0 0
        %634 = vmatprep.subr.bf16.mxu0 0
        %635 = vmatpush1.bf16.msra.mxu0 0
        %636 = vmatprep.subr.bf16.mxu0 0
        %637 = vmatpush1.bf16.msra.mxu0 0
        %638 = vmatprep.subr.bf16.mxu0 0
        %639 = vmatpush1.bf16.msra.mxu0 0
        %640 = vmatprep.subr.bf16.mxu0 0
        %641 = vmatpush1.bf16.msra.mxu0 0
        %642 = vmatprep.subr.bf16.mxu0 0
        %643 = vmatpush1.bf16.msra.mxu0 0
        %644 = vmatprep.subr.bf16.mxu0 0
        %645 = vmatpush1.bf16.msra.mxu0 0
        %646 = vmatprep.subr.bf16.mxu0 0
        %647 = vmatpush1.bf16.msra.mxu0 0
        %648 = vmatprep.subr.bf16.mxu0 0
        %649 = vmatpush1.bf16.msra.mxu0 0
        %650 = vmatprep.mubr.bf16.mxu0 0
        %651 = vmatmul.mubr.bf16.gmra.mrb[0].mxu0 %v612
        %v652 = vpop.f32.mrb[0].mxu0
        %v653 = vadd.f32 0.0, %v652
        %v654 = vpop.f32.mrb[0].mxu0
        %v655 = vpop.f32.mrb[0].mxu0
        %v656 = vpop.f32.mrb[0].mxu0
        %657 = vdwg.mxu0
        %v659 = vsel %vm610, %v608, 0
        %v662 = vsel %vm614, %v606, 0
        %664 = vmatprep.subr.bf16.mxu0 0
        %665 = vmatpush1.bf16.msra.mxu0 %v662
        %666 = vmatprep.subr.bf16.mxu0 0
        %667 = vmatpush1.bf16.msra.mxu0 0
        %668 = vmatprep.subr.bf16.mxu0 0
        %669 = vmatpush1.bf16.msra.mxu0 0
        %670 = vmatprep.subr.bf16.mxu0 0
        %671 = vmatpush1.bf16.msra.mxu0 0
        %672 = vmatprep.subr.bf16.mxu0 0
        %673 = vmatpush1.bf16.msra.mxu0 0
        %674 = vmatprep.subr.bf16.mxu0 0
        %675 = vmatpush1.bf16.msra.mxu0 0
        %676 = vmatprep.subr.bf16.mxu0 0
        %677 = vmatpush1.bf16.msra.mxu0 0
        %678 = vmatprep.subr.bf16.mxu0 0
        %679 = vmatpush1.bf16.msra.mxu0 0
        %680 = vmatprep.subr.bf16.mxu0 0
        %681 = vmatpush1.bf16.msra.mxu0 0
        %682 = vmatprep.subr.bf16.mxu0 0
        %683 = vmatpush1.bf16.msra.mxu0 0
        %684 = vmatprep.subr.bf16.mxu0 0
        %685 = vmatpush1.bf16.msra.mxu0 0
        %686 = vmatprep.subr.bf16.mxu0 0
        %687 = vmatpush1.bf16.msra.mxu0 0
        %688 = vmatprep.subr.bf16.mxu0 0
        %689 = vmatpush1.bf16.msra.mxu0 0
        %690 = vmatprep.subr.bf16.mxu0 0
        %691 = vmatpush1.bf16.msra.mxu0 0
        %692 = vmatprep.subr.bf16.mxu0 0
        %693 = vmatpush1.bf16.msra.mxu0 0
        %694 = vmatprep.subr.bf16.mxu0 0
        %695 = vmatpush1.bf16.msra.mxu0 0
        %696 = vmatprep.mubr.bf16.mxu0 0
        %697 = vmatmul.mubr.bf16.gmra.mrb[0].mxu0 %v659
        %v698 = vpop.f32.mrb[0].mxu0
        %v699 = vadd.f32 %v653, %v698
        %v700 = vpop.f32.mrb[0].mxu0
        %v701 = vpop.f32.mrb[0].mxu0
        %v702 = vpop.f32.mrb[0].mxu0
        %703 = vdwg.mxu0
        %v704 = vadd.f32 %v467, %v699
        %v705 = vld [vmem:[%s416] ss:$0 sm:$0xff]
        %v706 = vld [vmem:[%s416 + $0x1] ss:$0 sm:$0xff]
        %707 = vadd.xlane.f32.xlu0 %v704
        %v708 = vpop.xlane.xlu0 %707
        %v709 = vrcp.pop 128.0
        %v710 = vmul.f32 %v708, %v709
        %v711 = vsub.f32 %v704, %v710
        %v712 = vmul.f32 %v711, %v711
        %713 = vadd.xlane.f32.xlu0 %v712
        %v714 = vpop.xlane.xlu0 %713
        %v715 = vmul.f32 %v714, %v709
        %v716 = vadd.f32 %v715, 1e-05
        %v717 = vrsqrt.pop %v716
        %v718 = vmul.f32 %v711, %v717
        %v719 = vmul.f32 %v718, %v705
        %v720 = vadd.f32 %v719, %v706
        %v721 = vpack.c.bf16 %v720, %v720
        %v722 = vld [vmem:[%s398] sm:$0xff]
        %v723 = vld [vmem:[%s398 + $0x8] sm:$0xff]
        %v724 = vld [vmem:[%s398 + $0x10] sm:$0xff]
        %v725 = vld [vmem:[%s398 + $0x18] sm:$0xff]
        %v726 = vld [vmem:[%s398 + $0x20] sm:$0xff]
        %v727 = vld [vmem:[%s398 + $0x28] sm:$0xff]
        %v728 = vld [vmem:[%s398 + $0x30] sm:$0xff]
        %v729 = vld [vmem:[%s398 + $0x38] sm:$0xff]
        %v730 = vld [vmem:[%s398 + $0x40] sm:$0xff]
        %v731 = vld [vmem:[%s398 + $0x48] sm:$0xff]
        %v732 = vld [vmem:[%s398 + $0x50] sm:$0xff]
        %v733 = vld [vmem:[%s398 + $0x58] sm:$0xff]
        %v734 = vld [vmem:[%s398 + $0x60] sm:$0xff]
        %v735 = vld [vmem:[%s398 + $0x68] sm:$0xff]
        %v736 = vld [vmem:[%s398 + $0x70] sm:$0xff]
        %v737 = vld [vmem:[%s398 + $0x78] sm:$0xff]
        %v738 = vld [vmem:[%s398 + $0x80] sm:$0xff]
        %v739 = vld [vmem:[%s398 + $0x88] sm:$0xff]
        %v740 = vld [vmem:[%s398 + $0x90] sm:$0xff]
        %v741 = vld [vmem:[%s398 + $0x98] sm:$0xff]
        %v742 = vld [vmem:[%s398 + $0xa0] sm:$0xff]
        %v743 = vld [vmem:[%s398 + $0xa8] sm:$0xff]
        %v744 = vld [vmem:[%s398 + $0xb0] sm:$0xff]
        %v745 = vld [vmem:[%s398 + $0xb8] sm:$0xff]
        %v746 = vld [vmem:[%s398 + $0xc0] sm:$0xff]
        %v747 = vld [vmem:[%s398 + $0xc8] sm:$0xff]
        %v748 = vld [vmem:[%s398 + $0xd0] sm:$0xff]
        %v749 = vld [vmem:[%s398 + $0xd8] sm:$0xff]
        %v750 = vld [vmem:[%s398 + $0xe0] sm:$0xff]
        %v751 = vld [vmem:[%s398 + $0xe8] sm:$0xff]
        %v752 = vld [vmem:[%s398 + $0xf0] sm:$0xff]
        %v753 = vld [vmem:[%s398 + $0xf8] sm:$0xff]
        %s754 = scalar_lea.vmem %s416, 2 [#allocation12]
        %v755 = vld [vmem:[%s754] ss:$8 sm:$0xf]
        %v757 = vlaneseq
        %v758 = vshrl.u32 %v757, 7
        %v759 = vsub.s32 0, %v758
        %v760 = vrot.slane %v755, %v759
        %v761 = vlaneseq
        %v762 = vshrl.u32 %v761, 7
        %v763 = vsub.s32 1, %v762
        %v764 = vrot.slane %v755, %v763
        %v765 = vlaneseq
        %v766 = vshrl.u32 %v765, 7
        %v767 = vsub.s32 2, %v766
        %v768 = vrot.slane %v755, %v767
        %v769 = vlaneseq
        %v770 = vshrl.u32 %v769, 7
        %v771 = vsub.s32 3, %v770
        %v772 = vrot.slane %v755, %v771
        %v809 = vunpack.c.l.b16 %v722
        %v810 = vunpack.c.h.b16 %v722
        %v811 = vunpack.c.l.b16 %v723
        %v812 = vunpack.c.h.b16 %v723
        %v813 = vunpack.c.l.b16 %v724
        %v814 = vunpack.c.h.b16 %v724
        %v815 = vunpack.c.l.b16 %v725
        %v816 = vunpack.c.h.b16 %v725
        %v817 = vunpack.c.l.b16 %v726
        %v818 = vunpack.c.h.b16 %v726
        %v819 = vunpack.c.l.b16 %v727
        %v820 = vunpack.c.h.b16 %v727
        %v821 = vunpack.c.l.b16 %v728
        %v822 = vunpack.c.h.b16 %v728
        %v823 = vunpack.c.l.b16 %v729
        %v824 = vunpack.c.h.b16 %v729
        %v825 = vunpack.c.l.b16 %v730
        %v826 = vunpack.c.h.b16 %v730
        %v827 = vunpack.c.l.b16 %v731
        %v828 = vunpack.c.h.b16 %v731
        %v829 = vunpack.c.l.b16 %v732
        %v830 = vunpack.c.h.b16 %v732
        %v831 = vunpack.c.l.b16 %v733
        %v832 = vunpack.c.h.b16 %v733
        %v833 = vunpack.c.l.b16 %v734
        %v834 = vunpack.c.h.b16 %v734
        %v835 = vunpack.c.l.b16 %v735
        %v836 = vunpack.c.h.b16 %v735
        %v837 = vunpack.c.l.b16 %v736
        %v838 = vunpack.c.h.b16 %v736
        %v839 = vunpack.c.l.b16 %v737
        %v840 = vunpack.c.h.b16 %v737
        %v841 = vunpack.c.l.b16 %v738
        %v842 = vunpack.c.h.b16 %v738
        %v843 = vunpack.c.l.b16 %v739
        %v844 = vunpack.c.h.b16 %v739
        %v845 = vunpack.c.l.b16 %v740
        %v846 = vunpack.c.h.b16 %v740
        %v847 = vunpack.c.l.b16 %v741
        %v848 = vunpack.c.h.b16 %v741
        %v849 = vunpack.c.l.b16 %v742
        %v850 = vunpack.c.h.b16 %v742
        %v851 = vunpack.c.l.b16 %v743
        %v852 = vunpack.c.h.b16 %v743
        %v853 = vunpack.c.l.b16 %v744
        %v854 = vunpack.c.h.b16 %v744
        %v855 = vunpack.c.l.b16 %v745
        %v856 = vunpack.c.h.b16 %v745
        %v857 = vunpack.c.l.b16 %v746
        %v858 = vunpack.c.h.b16 %v746
        %v859 = vunpack.c.l.b16 %v747
        %v860 = vunpack.c.h.b16 %v747
        %v861 = vunpack.c.l.b16 %v748
        %v862 = vunpack.c.h.b16 %v748
        %v863 = vunpack.c.l.b16 %v749
        %v864 = vunpack.c.h.b16 %v749
        %v865 = vunpack.c.l.b16 %v750
        %v866 = vunpack.c.h.b16 %v750
        %v867 = vunpack.c.l.b16 %v751
        %v868 = vunpack.c.h.b16 %v751
        %v869 = vunpack.c.l.b16 %v752
        %v870 = vunpack.c.h.b16 %v752
        %v871 = vunpack.c.l.b16 %v753
        %v872 = vunpack.c.h.b16 %v753
        %v873 = vpack.c.b16 %v813, %v809
        %v874 = vpack.c.b16 %v814, %v810
        %v875 = vpack.c.b16 %v815, %v811
        %v876 = vpack.c.b16 %v816, %v812
        %v877 = vpack.c.b16 %v821, %v817
        %v878 = vpack.c.b16 %v822, %v818
        %v879 = vpack.c.b16 %v823, %v819
        %v880 = vpack.c.b16 %v824, %v820
        %v881 = vpack.c.b16 %v829, %v825
        %v882 = vpack.c.b16 %v830, %v826
        %v883 = vpack.c.b16 %v831, %v827
        %v884 = vpack.c.b16 %v832, %v828
        %v885 = vpack.c.b16 %v837, %v833
        %v886 = vpack.c.b16 %v838, %v834
        %v887 = vpack.c.b16 %v839, %v835
        %v888 = vpack.c.b16 %v840, %v836
        %v889 = vpack.c.b16 %v845, %v841
        %v890 = vpack.c.b16 %v846, %v842
        %v891 = vpack.c.b16 %v847, %v843
        %v892 = vpack.c.b16 %v848, %v844
        %v893 = vpack.c.b16 %v853, %v849
        %v894 = vpack.c.b16 %v854, %v850
        %v895 = vpack.c.b16 %v855, %v851
        %v896 = vpack.c.b16 %v856, %v852
        %v897 = vpack.c.b16 %v861, %v857
        %v898 = vpack.c.b16 %v862, %v858
        %v899 = vpack.c.b16 %v863, %v859
        %v900 = vpack.c.b16 %v864, %v860
        %v901 = vpack.c.b16 %v869, %v865
        %v902 = vpack.c.b16 %v870, %v866
        %v903 = vpack.c.b16 %v871, %v867
        %v904 = vpack.c.b16 %v872, %v868
        %937 = vmatprep.subr.bf16.mxu0 %v874
        %938 = vmatpush1.bf16.msra.mxu0 %v873
        %939 = vmatprep.subr.bf16.mxu0 %v878
        %940 = vmatpush1.bf16.msra.mxu0 %v877
        %941 = vmatprep.subr.bf16.mxu0 %v882
        %942 = vmatpush1.bf16.msra.mxu0 %v881
        %943 = vmatprep.subr.bf16.mxu0 %v886
        %944 = vmatpush1.bf16.msra.mxu0 %v885
        %945 = vmatprep.subr.bf16.mxu0 %v890
        %946 = vmatpush1.bf16.msra.mxu0 %v889
        %947 = vmatprep.subr.bf16.mxu0 %v894
        %948 = vmatpush1.bf16.msra.mxu0 %v893
        %949 = vmatprep.subr.bf16.mxu0 %v898
        %950 = vmatpush1.bf16.msra.mxu0 %v897
        %951 = vmatprep.subr.bf16.mxu0 %v902
        %952 = vmatpush1.bf16.msra.mxu0 %v901
        %953 = vmatprep.subr.bf16.mxu0 0
        %954 = vmatpush1.bf16.msra.mxu0 0
        %955 = vmatprep.subr.bf16.mxu0 0
        %956 = vmatpush1.bf16.msra.mxu0 0
        %957 = vmatprep.subr.bf16.mxu0 0
        %958 = vmatpush1.bf16.msra.mxu0 0
        %959 = vmatprep.subr.bf16.mxu0 0
        %960 = vmatpush1.bf16.msra.mxu0 0
        %961 = vmatprep.subr.bf16.mxu0 0
        %962 = vmatpush1.bf16.msra.mxu0 0
        %963 = vmatprep.subr.bf16.mxu0 0
        %964 = vmatpush1.bf16.msra.mxu0 0
        %965 = vmatprep.subr.bf16.mxu0 0
        %966 = vmatpush1.bf16.msra.mxu0 0
        %967 = vmatprep.subr.bf16.mxu0 0
        %968 = vmatpush1.bf16.msra.mxu0 0
        %969 = vmatprep.mubr.bf16.mxu0 0
        %970 = vmatmul.mubr.bf16.gmra.mrb[0].mxu0 %v721
        %v971 = vpop.f32.mrb[0].mxu0
        %v972 = vadd.f32 %v760, %v971
        %v973 = vpop.f32.mrb[0].mxu0
        %v974 = vadd.f32 %v764, %v973
        %v975 = vpop.f32.mrb[0].mxu0
        %v976 = vpop.f32.mrb[0].mxu0
        %977 = vdwg.mxu0
        %978 = vmatprep.subr.bf16.mxu0 %v876
        %979 = vmatpush1.bf16.msra.mxu0 %v875
        %980 = vmatprep.subr.bf16.mxu0 %v880
        %981 = vmatpush1.bf16.msra.mxu0 %v879
        %982 = vmatprep.subr.bf16.mxu0 %v884
        %983 = vmatpush1.bf16.msra.mxu0 %v883
        %984 = vmatprep.subr.bf16.mxu0 %v888
        %985 = vmatpush1.bf16.msra.mxu0 %v887
        %986 = vmatprep.subr.bf16.mxu0 %v892
        %987 = vmatpush1.bf16.msra.mxu0 %v891
        %988 = vmatprep.subr.bf16.mxu0 %v896
        %989 = vmatpush1.bf16.msra.mxu0 %v895
        %990 = vmatprep.subr.bf16.mxu0 %v900
        %991 = vmatpush1.bf16.msra.mxu0 %v899
        %992 = vmatprep.subr.bf16.mxu0 %v904
        %993 = vmatpush1.bf16.msra.mxu0 %v903
        %994 = vmatprep.subr.bf16.mxu0 0
        %995 = vmatpush1.bf16.msra.mxu0 0
        %996 = vmatprep.subr.bf16.mxu0 0
        %997 = vmatpush1.bf16.msra.mxu0 0
        %998 = vmatprep.subr.bf16.mxu0 0
        %999 = vmatpush1.bf16.msra.mxu0 0
        %1000 = vmatprep.subr.bf16.mxu0 0
        %1001 = vmatpush1.bf16.msra.mxu0 0
        %1002 = vmatprep.subr.bf16.mxu0 0
        %1003 = vmatpush1.bf16.msra.mxu0 0
        %1004 = vmatprep.subr.bf16.mxu0 0
        %1005 = vmatpush1.bf16.msra.mxu0 0
        %1006 = vmatprep.subr.bf16.mxu0 0
        %1007 = vmatpush1.bf16.msra.mxu0 0
        %1008 = vmatprep.subr.bf16.mxu0 0
        %1009 = vmatpush1.bf16.msra.mxu0 0
        %1010 = vmatprep.mubr.bf16.mxu0 0
        %1011 = vmatmul.mubr.bf16.gmra.mrb[0].mxu0 %v721
        %v1012 = vpop.f32.mrb[0].mxu0
        %v1013 = vadd.f32 %v768, %v1012
        %v1014 = vpop.f32.mrb[0].mxu0
        %v1015 = vadd.f32 %v772, %v1014
        %v1016 = vpop.f32.mrb[0].mxu0
        %v1017 = vpop.f32.mrb[0].mxu0
        %1018 = vdwg.mxu0
        %v1019 = vpack.c.bf16 %v972, %v972
        %v1020 = vpack.c.bf16 %v974, %v974
        %v1021 = vpack.c.bf16 %v1013, %v1013
        %v1022 = vpack.c.bf16 %v1015, %v1015
        %v1023 = vmul.bf16 %v1019, 1056980736
        %v1024 = vmul.bf16 %v1020, 1056980736
        %v1025 = vmul.bf16 %v1021, 1056980736
        %v1026 = vmul.bf16 %v1022, 1056980736
        %v1027 = vmul.bf16 %v1019, %v1019
        %v1028 = vmul.bf16 %v1020, %v1020
        %v1029 = vmul.bf16 %v1021, %v1021
        %v1030 = vmul.bf16 %v1022, %v1022
        %v1031 = vmul.bf16 %v1027, %v1019
        %v1032 = vmul.bf16 %v1028, %v1020
        %v1033 = vmul.bf16 %v1029, %v1021
        %v1034 = vmul.bf16 %v1030, %v1022
        %v1035 = vmul.bf16 %v1031, 1027030327
        %v1036 = vmul.bf16 %v1032, 1027030327
        %v1037 = vmul.bf16 %v1033, 1027030327
        %v1038 = vmul.bf16 %v1034, 1027030327
        %v1039 = vadd.bf16 %v1019, %v1035
        %v1040 = vadd.bf16 %v1020, %v1036
        %v1041 = vadd.bf16 %v1021, %v1037
        %v1042 = vadd.bf16 %v1022, %v1038
        %v1043 = vmul.bf16 %v1039, 1061961548
        %v1044 = vmul.bf16 %v1040, 1061961548
        %v1045 = vmul.bf16 %v1041, 1061961548
        %v1046 = vmul.bf16 %v1042, 1061961548
        %v1047 = vtanh.bf16.pop %v1043
        %v1048 = vtanh.bf16.pop %v1044
        %v1049 = vtanh.bf16.pop %v1045
        %v1050 = vtanh.bf16.pop %v1046
        %v1051 = vadd.bf16 %v1047, 1065369472
        %v1052 = vadd.bf16 %v1048, 1065369472
        %v1053 = vadd.bf16 %v1049, 1065369472
        %v1054 = vadd.bf16 %v1050, 1065369472
        %v1055 = vmul.bf16 %v1023, %v1051
        %v1056 = vmul.bf16 %v1024, %v1052
        %v1057 = vmul.bf16 %v1025, %v1053
        %v1058 = vmul.bf16 %v1026, %v1054
        %v1059 = vld [vmem:[%s407] sm:$0xf]
        %v1060 = vld [vmem:[%s407 + $0x4] sm:$0xf]
        %v1061 = vld [vmem:[%s407 + $0x8] sm:$0xf]
        %v1062 = vld [vmem:[%s407 + $0xc] sm:$0xf]
        %v1063 = vld [vmem:[%s407 + $0x10] sm:$0xf]
        %v1064 = vld [vmem:[%s407 + $0x14] sm:$0xf]
        %v1065 = vld [vmem:[%s407 + $0x18] sm:$0xf]
        %v1066 = vld [vmem:[%s407 + $0x1c] sm:$0xf]
        %v1067 = vld [vmem:[%s407 + $0x20] sm:$0xf]
        %v1068 = vld [vmem:[%s407 + $0x24] sm:$0xf]
        %v1069 = vld [vmem:[%s407 + $0x28] sm:$0xf]
        %v1070 = vld [vmem:[%s407 + $0x2c] sm:$0xf]
        %v1071 = vld [vmem:[%s407 + $0x30] sm:$0xf]
        %v1072 = vld [vmem:[%s407 + $0x34] sm:$0xf]
        %v1073 = vld [vmem:[%s407 + $0x38] sm:$0xf]
        %v1074 = vld [vmem:[%s407 + $0x3c] sm:$0xf]
        %v1075 = vld [vmem:[%s407 + $0x40] sm:$0xf]
        %v1076 = vld [vmem:[%s407 + $0x44] sm:$0xf]
        %v1077 = vld [vmem:[%s407 + $0x48] sm:$0xf]
        %v1078 = vld [vmem:[%s407 + $0x4c] sm:$0xf]
        %v1079 = vld [vmem:[%s407 + $0x50] sm:$0xf]
        %v1080 = vld [vmem:[%s407 + $0x54] sm:$0xf]
        %v1081 = vld [vmem:[%s407 + $0x58] sm:$0xf]
        %v1082 = vld [vmem:[%s407 + $0x5c] sm:$0xf]
        %v1083 = vld [vmem:[%s407 + $0x60] sm:$0xf]
        %v1084 = vld [vmem:[%s407 + $0x64] sm:$0xf]
        %v1085 = vld [vmem:[%s407 + $0x68] sm:$0xf]
        %v1086 = vld [vmem:[%s407 + $0x6c] sm:$0xf]
        %v1087 = vld [vmem:[%s407 + $0x70] sm:$0xf]
        %v1088 = vld [vmem:[%s407 + $0x74] sm:$0xf]
        %v1089 = vld [vmem:[%s407 + $0x78] sm:$0xf]
        %v1090 = vld [vmem:[%s407 + $0x7c] sm:$0xf]
        %v1091 = vld [vmem:[%s407 + $0x80] sm:$0xf]
        %v1092 = vld [vmem:[%s407 + $0x84] sm:$0xf]
        %v1093 = vld [vmem:[%s407 + $0x88] sm:$0xf]
        %v1094 = vld [vmem:[%s407 + $0x8c] sm:$0xf]
        %v1095 = vld [vmem:[%s407 + $0x90] sm:$0xf]
        %v1096 = vld [vmem:[%s407 + $0x94] sm:$0xf]
        %v1097 = vld [vmem:[%s407 + $0x98] sm:$0xf]
        %v1098 = vld [vmem:[%s407 + $0x9c] sm:$0xf]
        %v1099 = vld [vmem:[%s407 + $0xa0] sm:$0xf]
        %v1100 = vld [vmem:[%s407 + $0xa4] sm:$0xf]
        %v1101 = vld [vmem:[%s407 + $0xa8] sm:$0xf]
        %v1102 = vld [vmem:[%s407 + $0xac] sm:$0xf]
        %v1103 = vld [vmem:[%s407 + $0xb0] sm:$0xf]
        %v1104 = vld [vmem:[%s407 + $0xb4] sm:$0xf]
        %v1105 = vld [vmem:[%s407 + $0xb8] sm:$0xf]
        %v1106 = vld [vmem:[%s407 + $0xbc] sm:$0xf]
        %v1107 = vld [vmem:[%s407 + $0xc0] sm:$0xf]
        %v1108 = vld [vmem:[%s407 + $0xc4] sm:$0xf]
        %v1109 = vld [vmem:[%s407 + $0xc8] sm:$0xf]
        %v1110 = vld [vmem:[%s407 + $0xcc] sm:$0xf]
        %v1111 = vld [vmem:[%s407 + $0xd0] sm:$0xf]
        %v1112 = vld [vmem:[%s407 + $0xd4] sm:$0xf]
        %v1113 = vld [vmem:[%s407 + $0xd8] sm:$0xf]
        %v1114 = vld [vmem:[%s407 + $0xdc] sm:$0xf]
        %v1115 = vld [vmem:[%s407 + $0xe0] sm:$0xf]
        %v1116 = vld [vmem:[%s407 + $0xe4] sm:$0xf]
        %v1117 = vld [vmem:[%s407 + $0xe8] sm:$0xf]
        %v1118 = vld [vmem:[%s407 + $0xec] sm:$0xf]
        %v1119 = vld [vmem:[%s407 + $0xf0] sm:$0xf]
        %v1120 = vld [vmem:[%s407 + $0xf4] sm:$0xf]
        %v1121 = vld [vmem:[%s407 + $0xf8] sm:$0xf]
        %v1122 = vld [vmem:[%s407 + $0xfc] sm:$0xf]
        %v1123 = vld [vmem:[%s416 + $0x3] ss:$0 sm:$0xff]
        %v1188 = vunpack.c.l.b16 %v1059
        %v1189 = vunpack.c.l.b16 %v1060
        %v1190 = vunpack.c.l.b16 %v1061
        %v1191 = vunpack.c.l.b16 %v1062
        %v1192 = vunpack.c.l.b16 %v1063
        %v1193 = vunpack.c.l.b16 %v1064
        %v1194 = vunpack.c.l.b16 %v1065
        %v1195 = vunpack.c.l.b16 %v1066
        %v1196 = vunpack.c.l.b16 %v1067
        %v1197 = vunpack.c.l.b16 %v1068
        %v1198 = vunpack.c.l.b16 %v1069
        %v1199 = vunpack.c.l.b16 %v1070
        %v1200 = vunpack.c.l.b16 %v1071
        %v1201 = vunpack.c.l.b16 %v1072
        %v1202 = vunpack.c.l.b16 %v1073
        %v1203 = vunpack.c.l.b16 %v1074
        %v1204 = vunpack.c.l.b16 %v1075
        %v1205 = vunpack.c.l.b16 %v1076
        %v1206 = vunpack.c.l.b16 %v1077
        %v1207 = vunpack.c.l.b16 %v1078
        %v1208 = vunpack.c.l.b16 %v1079
        %v1209 = vunpack.c.l.b16 %v1080
        %v1210 = vunpack.c.l.b16 %v1081
        %v1211 = vunpack.c.l.b16 %v1082
        %v1212 = vunpack.c.l.b16 %v1083
        %v1213 = vunpack.c.l.b16 %v1084
        %v1214 = vunpack.c.l.b16 %v1085
        %v1215 = vunpack.c.l.b16 %v1086
        %v1216 = vunpack.c.l.b16 %v1087
        %v1217 = vunpack.c.l.b16 %v1088
        %v1218 = vunpack.c.l.b16 %v1089
        %v1219 = vunpack.c.l.b16 %v1090
        %v1220 = vunpack.c.l.b16 %v1091
        %v1221 = vunpack.c.l.b16 %v1092
        %v1222 = vunpack.c.l.b16 %v1093
        %v1223 = vunpack.c.l.b16 %v1094
        %v1224 = vunpack.c.l.b16 %v1095
        %v1225 = vunpack.c.l.b16 %v1096
        %v1226 = vunpack.c.l.b16 %v1097
        %v1227 = vunpack.c.l.b16 %v1098
        %v1228 = vunpack.c.l.b16 %v1099
        %v1229 = vunpack.c.l.b16 %v1100
        %v1230 = vunpack.c.l.b16 %v1101
        %v1231 = vunpack.c.l.b16 %v1102
        %v1232 = vunpack.c.l.b16 %v1103
        %v1233 = vunpack.c.l.b16 %v1104
        %v1234 = vunpack.c.l.b16 %v1105
        %v1235 = vunpack.c.l.b16 %v1106
        %v1236 = vunpack.c.l.b16 %v1107
        %v1237 = vunpack.c.l.b16 %v1108
        %v1238 = vunpack.c.l.b16 %v1109
        %v1239 = vunpack.c.l.b16 %v1110
        %v1240 = vunpack.c.l.b16 %v1111
        %v1241 = vunpack.c.l.b16 %v1112
        %v1242 = vunpack.c.l.b16 %v1113
        %v1243 = vunpack.c.l.b16 %v1114
        %v1244 = vunpack.c.l.b16 %v1115
        %v1245 = vunpack.c.l.b16 %v1116
        %v1246 = vunpack.c.l.b16 %v1117
        %v1247 = vunpack.c.l.b16 %v1118
        %v1248 = vunpack.c.l.b16 %v1119
        %v1249 = vunpack.c.l.b16 %v1120
        %v1250 = vunpack.c.l.b16 %v1121
        %v1251 = vunpack.c.l.b16 %v1122
        %v1252 = vpack.c.b16 %v1189, %v1188
        %v1253 = vpack.c.b16 %v1191, %v1190
        %v1254 = vpack.c.b16 %v1193, %v1192
        %v1255 = vpack.c.b16 %v1195, %v1194
        %v1256 = vpack.c.b16 %v1197, %v1196
        %v1257 = vpack.c.b16 %v1199, %v1198
        %v1258 = vpack.c.b16 %v1201, %v1200
        %v1259 = vpack.c.b16 %v1203, %v1202
        %v1260 = vpack.c.b16 %v1205, %v1204
        %v1261 = vpack.c.b16 %v1207, %v1206
        %v1262 = vpack.c.b16 %v1209, %v1208
        %v1263 = vpack.c.b16 %v1211, %v1210
        %v1264 = vpack.c.b16 %v1213, %v1212
        %v1265 = vpack.c.b16 %v1215, %v1214
        %v1266 = vpack.c.b16 %v1217, %v1216
        %v1267 = vpack.c.b16 %v1219, %v1218
        %v1268 = vpack.c.b16 %v1221, %v1220
        %v1269 = vpack.c.b16 %v1223, %v1222
        %v1270 = vpack.c.b16 %v1225, %v1224
        %v1271 = vpack.c.b16 %v1227, %v1226
        %v1272 = vpack.c.b16 %v1229, %v1228
        %v1273 = vpack.c.b16 %v1231, %v1230
        %v1274 = vpack.c.b16 %v1233, %v1232
        %v1275 = vpack.c.b16 %v1235, %v1234
        %v1276 = vpack.c.b16 %v1237, %v1236
        %v1277 = vpack.c.b16 %v1239, %v1238
        %v1278 = vpack.c.b16 %v1241, %v1240
        %v1279 = vpack.c.b16 %v1243, %v1242
        %v1280 = vpack.c.b16 %v1245, %v1244
        %v1281 = vpack.c.b16 %v1247, %v1246
        %v1282 = vpack.c.b16 %v1249, %v1248
        %v1283 = vpack.c.b16 %v1251, %v1250
        %1316 = vmatprep.subr.bf16.mxu0 0
        %1317 = vmatpush1.bf16.msra.mxu0 %v1252
        %1318 = vmatprep.subr.bf16.mxu0 0
        %1319 = vmatpush1.bf16.msra.mxu0 %v1253
        %1320 = vmatprep.subr.bf16.mxu0 0
        %1321 = vmatpush1.bf16.msra.mxu0 %v1254
        %1322 = vmatprep.subr.bf16.mxu0 0
        %1323 = vmatpush1.bf16.msra.mxu0 %v1255
        %1324 = vmatprep.subr.bf16.mxu0 0
        %1325 = vmatpush1.bf16.msra.mxu0 %v1256
        %1326 = vmatprep.subr.bf16.mxu0 0
        %1327 = vmatpush1.bf16.msra.mxu0 %v1257
        %1328 = vmatprep.subr.bf16.mxu0 0
        %1329 = vmatpush1.bf16.msra.mxu0 %v1258
        %1330 = vmatprep.subr.bf16.mxu0 0
        %1331 = vmatpush1.bf16.msra.mxu0 %v1259
        %1332 = vmatprep.subr.bf16.mxu0 0
        %1333 = vmatpush1.bf16.msra.mxu0 %v1260
        %1334 = vmatprep.subr.bf16.mxu0 0
        %1335 = vmatpush1.bf16.msra.mxu0 %v1261
        %1336 = vmatprep.subr.bf16.mxu0 0
        %1337 = vmatpush1.bf16.msra.mxu0 %v1262
        %1338 = vmatprep.subr.bf16.mxu0 0
        %1339 = vmatpush1.bf16.msra.mxu0 %v1263
        %1340 = vmatprep.subr.bf16.mxu0 0
        %1341 = vmatpush1.bf16.msra.mxu0 %v1264
        %1342 = vmatprep.subr.bf16.mxu0 0
        %1343 = vmatpush1.bf16.msra.mxu0 %v1265
        %1344 = vmatprep.subr.bf16.mxu0 0
        %1345 = vmatpush1.bf16.msra.mxu0 %v1266
        %1346 = vmatprep.subr.bf16.mxu0 0
        %1347 = vmatpush1.bf16.msra.mxu0 %v1267
        %1348 = vmatprep.mubr.bf16.mxu0 %v1056
        %1349 = vmatmul.mubr.bf16.gmra.mrb[0].mxu0 %v1055
        %v1350 = vpop.f32.mrb[0].mxu0
        %v1351 = vadd.f32 %v1123, %v1350
        %v1352 = vpop.f32.mrb[0].mxu0
        %v1353 = vpop.f32.mrb[0].mxu0
        %v1354 = vpop.f32.mrb[0].mxu0
        %1355 = vdwg.mxu0
        %1356 = vmatprep.subr.bf16.mxu0 0
        %1357 = vmatpush1.bf16.msra.mxu0 %v1268
        %1358 = vmatprep.subr.bf16.mxu0 0
        %1359 = vmatpush1.bf16.msra.mxu0 %v1269
        %1360 = vmatprep.subr.bf16.mxu0 0
        %1361 = vmatpush1.bf16.msra.mxu0 %v1270
        %1362 = vmatprep.subr.bf16.mxu0 0
        %1363 = vmatpush1.bf16.msra.mxu0 %v1271
        %1364 = vmatprep.subr.bf16.mxu0 0
        %1365 = vmatpush1.bf16.msra.mxu0 %v1272
        %1366 = vmatprep.subr.bf16.mxu0 0
        %1367 = vmatpush1.bf16.msra.mxu0 %v1273
        %1368 = vmatprep.subr.bf16.mxu0 0
        %1369 = vmatpush1.bf16.msra.mxu0 %v1274
        %1370 = vmatprep.subr.bf16.mxu0 0
        %1371 = vmatpush1.bf16.msra.mxu0 %v1275
        %1372 = vmatprep.subr.bf16.mxu0 0
        %1373 = vmatpush1.bf16.msra.mxu0 %v1276
        %1374 = vmatprep.subr.bf16.mxu0 0
        %1375 = vmatpush1.bf16.msra.mxu0 %v1277
        %1376 = vmatprep.subr.bf16.mxu0 0
        %1377 = vmatpush1.bf16.msra.mxu0 %v1278
        %1378 = vmatprep.subr.bf16.mxu0 0
        %1379 = vmatpush1.bf16.msra.mxu0 %v1279
        %1380 = vmatprep.subr.bf16.mxu0 0
        %1381 = vmatpush1.bf16.msra.mxu0 %v1280
        %1382 = vmatprep.subr.bf16.mxu0 0
        %1383 = vmatpush1.bf16.msra.mxu0 %v1281
        %1384 = vmatprep.subr.bf16.mxu0 0
        %1385 = vmatpush1.bf16.msra.mxu0 %v1282
        %1386 = vmatprep.subr.bf16.mxu0 0
        %1387 = vmatpush1.bf16.msra.mxu0 %v1283
        %1388 = vmatprep.mubr.bf16.mxu0 %v1058
        %1389 = vmatmul.mubr.bf16.gmra.mrb[0].mxu0 %v1057
        %v1390 = vpop.f32.mrb[0].mxu0
        %v1391 = vadd.f32 %v1351, %v1390
        %v1392 = vpop.f32.mrb[0].mxu0
        %v1393 = vpop.f32.mrb[0].mxu0
        %v1394 = vpop.f32.mrb[0].mxu0
        %1395 = vdwg.mxu0
        %v1396 = vadd.f32 %v720, %v1391
        %v1397 = vld [vmem:[%s416 + $0x4] ss:$0 sm:$0xff]
        %v1398 = vld [vmem:[%s416 + $0x5] ss:$0 sm:$0xff]
        %1399 = vadd.xlane.f32.xlu0 %v1396
        %v1400 = vpop.xlane.xlu0 %1399
        %v1401 = vmul.f32 %v1400, %v709
        %v1402 = vsub.f32 %v1396, %v1401
        %v1403 = vmul.f32 %v1402, %v1402
        %1404 = vadd.xlane.f32.xlu0 %v1403
        %v1405 = vpop.xlane.xlu0 %1404
        %v1406 = vmul.f32 %v1405, %v709
        %v1407 = vadd.f32 %v1406, 1e-05
        %v1408 = vrsqrt.pop %v1407
        %v1409 = vmul.f32 %v1402, %v1408
        %v1410 = vmul.f32 %v1409, %v1397
        %v1411 = vadd.f32 %v1410, %v1398
        %1412 = vst [vmem:[#allocation2] sm:$0xff] %v1411
        %p1413 = scmp.eq.s32.totalorder %s29, 1
        // Predicated region
        $region85: #{tpu_custom_call.1} parent=55 // pred_check
          %p1414 = pneg %p1413
        $region86: #{tpu_custom_call.1} parent=55 // pred_check_branch
          %1416 = sbr.rel (%p1414) target = $region88
        $region87: #{tpu_custom_call.1} parent=55 // pred_region
          %v1417 = vld [vmem:[#allocation2] sm:$0xff]
          %v1418 = vpack.c.bf16 %v1417, %v1417
          %v1419 = vld [vmem:[#allocation8] sm:$0xf]
          %v1420 = vld [vmem:[#allocation8 + $0x4] sm:$0xf]
          %v1421 = vld [vmem:[#allocation8 + $0x8] sm:$0xf]
          %v1422 = vld [vmem:[#allocation8 + $0xc] sm:$0xf]
          %v1423 = vld [vmem:[#allocation8 + $0x10] sm:$0xf]
          %v1424 = vld [vmem:[#allocation8 + $0x14] sm:$0xf]
          %v1425 = vld [vmem:[#allocation8 + $0x18] sm:$0xf]
          %v1426 = vld [vmem:[#allocation8 + $0x1c] sm:$0xf]
          %v1427 = vld [vmem:[#allocation8 + $0x20] sm:$0xf]
          %v1428 = vld [vmem:[#allocation8 + $0x24] sm:$0xf]
          %v1429 = vld [vmem:[#allocation8 + $0x28] sm:$0xf]
          %v1430 = vld [vmem:[#allocation8 + $0x2c] sm:$0xf]
          %v1431 = vld [vmem:[#allocation8 + $0x30] sm:$0xf]
          %v1432 = vld [vmem:[#allocation8 + $0x34] sm:$0xf]
          %v1433 = vld [vmem:[#allocation8 + $0x38] sm:$0xf]
          %v1434 = vld [vmem:[#allocation8 + $0x3c] sm:$0xf]
          %v1435 = vld [vmem:[%s5] sm:$0x1]
          %v1437 = vlaneseq
          %v1438 = vshrl.u32 %v1437, 7
          %v1439 = vsub.s32 0, %v1438
          %v1440 = vrot.slane %v1435, %v1439
          %v1458 = vunpack.c.l.b16 %v1419
          %v1459 = vunpack.c.l.b16 %v1420
          %v1460 = vunpack.c.l.b16 %v1421
          %v1461 = vunpack.c.l.b16 %v1422
          %v1462 = vunpack.c.l.b16 %v1423
          %v1463 = vunpack.c.l.b16 %v1424
          %v1464 = vunpack.c.l.b16 %v1425
          %v1465 = vunpack.c.l.b16 %v1426
          %v1466 = vunpack.c.l.b16 %v1427
          %v1467 = vunpack.c.l.b16 %v1428
          %v1468 = vunpack.c.l.b16 %v1429
          %v1469 = vunpack.c.l.b16 %v1430
          %v1470 = vunpack.c.l.b16 %v1431
          %v1471 = vunpack.c.l.b16 %v1432
          %v1472 = vunpack.c.l.b16 %v1433
          %v1473 = vunpack.c.l.b16 %v1434
          %v1474 = vpack.c.b16 %v1459, %v1458
          %v1475 = vpack.c.b16 %v1461, %v1460
          %v1476 = vpack.c.b16 %v1463, %v1462
          %v1477 = vpack.c.b16 %v1465, %v1464
          %v1478 = vpack.c.b16 %v1467, %v1466
          %v1479 = vpack.c.b16 %v1469, %v1468
          %v1480 = vpack.c.b16 %v1471, %v1470
          %v1481 = vpack.c.b16 %v1473, %v1472
          %1490 = vmatprep.subr.bf16.mxu0 0
          %1491 = vmatpush1.bf16.msra.mxu0 %v1474
          %1492 = vmatprep.subr.bf16.mxu0 0
          %1493 = vmatpush1.bf16.msra.mxu0 %v1475
          %1494 = vmatprep.subr.bf16.mxu0 0
          %1495 = vmatpush1.bf16.msra.mxu0 %v1476
          %1496 = vmatprep.subr.bf16.mxu0 0
          %1497 = vmatpush1.bf16.msra.mxu0 %v1477
          %1498 = vmatprep.subr.bf16.mxu0 0
          %1499 = vmatpush1.bf16.msra.mxu0 %v1478
          %1500 = vmatprep.subr.bf16.mxu0 0
          %1501 = vmatpush1.bf16.msra.mxu0 %v1479
          %1502 = vmatprep.subr.bf16.mxu0 0
          %1503 = vmatpush1.bf16.msra.mxu0 %v1480
          %1504 = vmatprep.subr.bf16.mxu0 0
          %1505 = vmatpush1.bf16.msra.mxu0 %v1481
          %1506 = vmatprep.subr.bf16.mxu0 0
          %1507 = vmatpush1.bf16.msra.mxu0 0
          %1508 = vmatprep.subr.bf16.mxu0 0
          %1509 = vmatpush1.bf16.msra.mxu0 0
          %1510 = vmatprep.subr.bf16.mxu0 0
          %1511 = vmatpush1.bf16.msra.mxu0 0
          %1512 = vmatprep.subr.bf16.mxu0 0
          %1513 = vmatpush1.bf16.msra.mxu0 0
          %1514 = vmatprep.subr.bf16.mxu0 0
          %1515 = vmatpush1.bf16.msra.mxu0 0
          %1516 = vmatprep.subr.bf16.mxu0 0
          %1517 = vmatpush1.bf16.msra.mxu0 0
          %1518 = vmatprep.subr.bf16.mxu0 0
          %1519 = vmatpush1.bf16.msra.mxu0 0
          %1520 = vmatprep.subr.bf16.mxu0 0
          %1521 = vmatpush1.bf16.msra.mxu0 0
          %1522 = vmatprep.mubr.bf16.mxu0 0
          %1523 = vmatmul.mubr.bf16.gmra.mrb[0].mxu0 %v1418
          %v1524 = vpop.f32.mrb[0].mxu0
          %v1525 = vadd.f32 %v1440, %v1524
          %v1526 = vpop.f32.mrb[0].mxu0
          %v1527 = vpop.f32.mrb[0].mxu0
          %v1528 = vpop.f32.mrb[0].mxu0
          %1529 = vdwg.mxu0
          %1530 = vst [vmem:[#allocation14] sm:$0xff] %v1525
        $region88: #{tpu_custom_call.1} parent=55 // pred_fallthru
          _
        // Predicated region
        $region89: #{tpu_custom_call.1} parent=55 // pred_check
          %p1531 = pneg %p246
        $region90: #{tpu_custom_call.1} parent=55 // pred_check_branch
          %1533 = sbr.rel (%p1531) target = $region92
        $region91: #{tpu_custom_call.1} parent=55 // pred_region
          %s1535 = ssub.s32 128, 128
          %1536 = vsyncadd [#allocation5], %s1535
          %s1538 = sshll.u32 [#allocation14], 4
          %s1539 = int_to_ptr.vmem [resolvable:$true] %s1538
          %1541 = dma.vmem_to_hbm [thread:$0]  %s1539, 128, %s9, [#allocation5]
        $region92: #{tpu_custom_call.1} parent=55 // pred_fallthru
          _
        // Predicated region
        $region93: #{tpu_custom_call.1} parent=55 // pred_check
          %p1542 = pneg %p246
        $region94: #{tpu_custom_call.1} parent=55 // pred_check_branch
          %1544 = sbr.rel (%p1542) target = $region96
        $region95: #{tpu_custom_call.1} parent=55 // pred_region
          %1545 = dma.done [#allocation5], 128
        $region96: #{tpu_custom_call.1} parent=55 // pred_fallthru
          _
      $region56: #{tpu_custom_call.1} parent=5 // pred_fallthru
        _
      %p1546 = scmp.le.s32.totalorder 2, %s24
      // Predicated region
      $region97: #{tpu_custom_call.1} parent=5 // pred_check
        %p1547 = pneg %p1546
      $region98: #{tpu_custom_call.1} parent=5 // pred_check_branch
        %1549 = sbr.rel (%p1547) target = $region100
      $region99: #{tpu_custom_call.1} parent=5 // pred_region
        %s1550 = ssub.s32 %s24, 2
      $region100: #{tpu_custom_call.1} parent=5 // pred_fallthru
        _
    $region6: #{tpu_custom_call.1} parent=1 // loop_footer
      %s28 = sadd.s32 1, %s24
    $region7: #{tpu_custom_call.1} parent=1 // loop_footer_branch
      %23 = sbr.rel target = $region3
    $region8: #{tpu_custom_call.1} parent=1 // loop_exit
      _
    %1551 = vsyncpa [#allocation4], 1
    %s1552 = scalar_lea.sflag [#allocation4], 1
    %1553 = vsyncpa %s1552, 1
    %1554 = vsyncpa [#allocation7], 1
    %1555 = vsyncpa [#allocation10], 1
    %s1556 = scalar_lea.sflag [#allocation10], 1
    %1557 = vsyncpa %s1556, 1
    %1558 = vsyncpa [#allocation13], 1
    %s1559 = scalar_lea.sflag [#allocation13], 1
    %1560 = vsyncpa %s1559, 1
    %1561 = vsyncpa [#allocation5], 1
    %s1562 = scalar_lea.sflag [#allocation5], 1
    %1563 = vsyncpa %s1562, 1

// kernel: tpu_custom_call.1
$region0: #{tpu_custom_call.1}
  #allocation0 [shape = 'u32[]', space=smem, size = 0x4, offset = 0x4, fixed_abs, tag = 'smem constant byte address 0x4 - core index']
  #allocation1 [shape = 'u32[144,128]{1,0:T(1,128)}', space=vmem, size = 0x12000, scoped, tag = 'internal scratch']
  #allocation2 [shape = 'f32[8,128]{1,0:T(8,128)}', space=vmem, size = 0x1000, scoped, tag = 'scratch operand']
  %s0 = inlined_call_operand.hbm [shape: f32[8,128], index: 0, kind: input, shape index: {}]
  %s1 = inlined_call_operand.hbm [shape: bf16[128,256], index: 1, kind: input, shape index: {}]
  %s2 = inlined_call_operand.vmem [shape: bf16[8,8], index: 2, kind: input, shape index: {}]
  %s3 = inlined_call_operand.vmem [shape: bf16[8,8], index: 3, kind: input, shape index: {}]
  %s4 = inlined_call_operand.hbm [shape: bf16[128,128], index: 4, kind: input, shape index: {}]
  %s5 = inlined_call_operand.vmem [shape: f32[1,128], index: 5, kind: input, shape index: {}]
  %s6 = inlined_call_operand.hbm [shape: bf16[2,128,512], index: 6, kind: input, shape index: {}]
  %s7 = inlined_call_operand.hbm [shape: bf16[2,512,128], index: 7, kind: input, shape index: {}]
  %s8 = inlined_call_operand.hbm [shape: f32[2,8,512], index: 8, kind: input, shape index: {}]
  %s9 = inlined_call_operand.hbm [shape: f32[8,128], index: 9, kind: output, shape index: {}]
  %s10 = sld [smem:[#allocation0]]
  $region101: #{tpu_custom_call.1} parent=0
    _
  %s12 = ssub.s32 1, %s10
  %s13 = scalar_select 0, %s12, %s10
  $region1: #{tpu_custom_call.1} parent=0
    #allocation3 [shape = 'u8[4096]{0}', space=vmem, size = 0x1000, scoped, tag = 'input window, operand 0, single buffered']
    #allocation4 [shape = 's32[2]{0}', space=sflag, size = 0x8, scoped, tag = 'scoped memory for tpu_custom_call.1']
    #allocation5 [shape = 's32[2]{0}', space=sflag, size = 0x8, scoped, tag = 'scoped memory for tpu_custom_call.1']
    #allocation6 [shape = 'u8[65536]{0}', space=vmem, size = 0x10000, scoped, tag = 'input window, operand 1, single buffered']
    #allocation7 [shape = 's32[1]{0}', space=sflag, size = 0x4, scoped, tag = 'scoped memory for tpu_custom_call.1']
    #allocation8 [shape = 'u8[32768]{0}', space=vmem, size = 0x8000, scoped, tag = 'input window, operand 4, single buffered']
    #allocation9 [shape = 'u8[262144]{0}', space=vmem, size = 0x40000, scoped, tag = 'input window, operand 6']
    #allocation10 [shape = 's32[2]{0}', space=sflag, size = 0x8, scoped, tag = 'scoped memory for tpu_custom_call.1']
    #allocation11 [shape = 'u8[262144]{0}', space=vmem, size = 0x40000, scoped, tag = 'input window, operand 7']
    #allocation12 [shape = 'u8[32768]{0}', space=vmem, size = 0x8000, scoped, tag = 'input window, operand 8']
    #allocation13 [shape = 's32[2]{0}', space=sflag, size = 0x8, scoped, tag = 'scoped memory for tpu_custom_call.1']
    #allocation14 [shape = 'u8[4096]{0}', space=vmem, size = 0x1000, scoped, tag = 'output window, operand 0, single buffered']
    %14 = vsyncpa [#allocation4], 0
    %15 = vsyncpa [#allocation7], 0
    %16 = vsyncpa [#allocation10], 0
    %s17 = scalar_lea.sflag [#allocation10], 1
    %18 = vsyncpa %s17, 0
    %19 = vsyncpa [#allocation13], 0
    %s20 = scalar_lea.sflag [#allocation13], 1
    %21 = vsyncpa %s20, 0
    %22 = vsyncpa [#allocation5], 0
    loop: start=0, step=1, limit=4
    $region2: #{tpu_custom_call.1} parent=1 // loop_pre_header
      _
    $region3: #{tpu_custom_call.1} parent=1 // loop_header
      %s24 = sphi 0, %s28
      %p25 = scmp.ge.s32.totalorder %s24, 4
      %s32 = sphi 0, %s32
      %s34 = sphi 0, %s32
      %s35 = sphi 0, %s34
      %s49 = sphi 0, %s35
      %s53 = sphi 0, %s53
      %s55 = sphi 0, %s53
      %s56 = sphi 0, %s55
      %s70 = sphi 0, %s56
      %s74 = sphi 0, %s74
      %s76 = sphi 0, %s74
      %s77 = sphi 0, %s76
      %s91 = sphi 0, %s77
      %s95 = sphi 0, %s95
      %s97 = sphi 0, %s95
      %s98 = sphi 0, %s97
      %s112 = sphi 0, %s98
      %s116 = sphi 0, %s116
      %s118 = sphi 0, %s116
      %s119 = sphi 0, %s118
      %s133 = sphi 0, %s119
      %s137 = sphi 0, %s137
      %s139 = sphi 0, %s137
      %s140 = sphi 0, %s139
      %s154 = sphi 0, %s140
      %s160 = sphi 0, %s162
      %s163 = sphi 0, %s160
      %s164 = sphi 0, %s163
      %s180 = sphi 0, %s164
      %s186 = sphi 0, %s188
      %s189 = sphi 0, %s186
      %s190 = sphi 0, %s189
      %s206 = sphi 0, %s190
      %s212 = sphi 0, %s214
      %s215 = sphi 0, %s212
      %s216 = sphi 0, %s215
      %s232 = sphi 0, %s216
      %s236 = sphi 0, %s236
      %s238 = sphi 0, %s236
      %s239 = sphi 0, %s238
      %s253 = sphi 0, %s239
    $region4: #{tpu_custom_call.1} parent=1 // loop_header_branch
      %27 = sbr.rel (%p25) target = $region8
    $region5: #{tpu_custom_call.1} parent=1 // loop_body
      %s29 = ssub.s32 %s24, 1
      %s30 = ssub.s32 %s24, 2
      %s31 = sadd.s32 %s24, 1
      %s33 = sadd.s32 %s32, 1
      %p36 = scmp.eq.s32.totalorder %s24, 1
      %p37 = scmp.ne.s32.totalorder %s32, %s34
      %p38 = scmp.eq.s32.totalorder %s24, 0
      %p39 = por %p37, %p38
      %p40 = scmp.ne.s32.totalorder %s32, %s34
      %p41 = scmp.eq.s32.totalorder %s29, 1
      %p42 = por %p40, %p41
      %p43 = scmp.ne.s32.totalorder %s34, %s35
      %p44 = scmp.eq.s32.totalorder %s29, 0
      %p45 = por %p43, %p44
      %p46 = scmp.ne.s32.totalorder %s34, %s35
      %p47 = scmp.eq.s32.totalorder %s30, 1
      %p48 = por %p46, %p47
      %p50 = scmp.ne.s32.totalorder %s35, %s49
      %p51 = scmp.eq.s32.totalorder %s30, 0
      %p52 = por %p50, %p51
      %s54 = sadd.s32 %s53, 1
      %p57 = scmp.eq.s32.totalorder %s24, 1
      %p58 = scmp.ne.s32.totalorder %s53, %s55
      %p59 = scmp.eq.s32.totalorder %s24, 0
      %p60 = por %p58, %p59
      %p61 = scmp.ne.s32.totalorder %s53, %s55
      %p62 = scmp.eq.s32.totalorder %s29, 1
      %p63 = por %p61, %p62
      %p64 = scmp.ne.s32.totalorder %s55, %s56
      %p65 = scmp.eq.s32.totalorder %s29, 0
      %p66 = por %p64, %p65
      %p67 = scmp.ne.s32.totalorder %s55, %s56
      %p68 = scmp.eq.s32.totalorder %s30, 1
      %p69 = por %p67, %p68
      %p71 = scmp.ne.s32.totalorder %s56, %s70
      %p72 = scmp.eq.s32.totalorder %s30, 0
      %p73 = por %p71, %p72
      %s75 = sadd.s32 %s74, 1
      %p78 = scmp.eq.s32.totalorder %s24, 1
      %p79 = scmp.ne.s32.totalorder %s74, %s76
      %p80 = scmp.eq.s32.totalorder %s24, 0
      %p81 = por %p79, %p80
      %p82 = scmp.ne.s32.totalorder %s74, %s76
      %p83 = scmp.eq.s32.totalorder %s29, 1
      %p84 = por %p82, %p83
      %p85 = scmp.ne.s32.totalorder %s76, %s77
      %p86 = scmp.eq.s32.totalorder %s29, 0
      %p87 = por %p85, %p86
      %p88 = scmp.ne.s32.totalorder %s76, %s77
      %p89 = scmp.eq.s32.totalorder %s30, 1
      %p90 = por %p88, %p89
      %p92 = scmp.ne.s32.totalorder %s77, %s91
      %p93 = scmp.eq.s32.totalorder %s30, 0
      %p94 = por %p92, %p93
      %s96 = sadd.s32 %s95, 1
      %p99 = scmp.eq.s32.totalorder %s24, 1
      %p100 = scmp.ne.s32.totalorder %s95, %s97
      %p101 = scmp.eq.s32.totalorder %s24, 0
      %p102 = por %p100, %p101
      %p103 = scmp.ne.s32.totalorder %s95, %s97
      %p104 = scmp.eq.s32.totalorder %s29, 1
      %p105 = por %p103, %p104
      %p106 = scmp.ne.s32.totalorder %s97, %s98
      %p107 = scmp.eq.s32.totalorder %s29, 0
      %p108 = por %p106, %p107
      %p109 = scmp.ne.s32.totalorder %s97, %s98
      %p110 = scmp.eq.s32.totalorder %s30, 1
      %p111 = por %p109, %p110
      %p113 = scmp.ne.s32.totalorder %s98, %s112
      %p114 = scmp.eq.s32.totalorder %s30, 0
      %p115 = por %p113, %p114
      %s117 = sadd.s32 %s116, 1
      %p120 = scmp.eq.s32.totalorder %s24, 1
      %p121 = scmp.ne.s32.totalorder %s116, %s118
      %p122 = scmp.eq.s32.totalorder %s24, 0
      %p123 = por %p121, %p122
      %p124 = scmp.ne.s32.totalorder %s116, %s118
      %p125 = scmp.eq.s32.totalorder %s29, 1
      %p126 = por %p124, %p125
      %p127 = scmp.ne.s32.totalorder %s118, %s119
      %p128 = scmp.eq.s32.totalorder %s29, 0
      %p129 = por %p127, %p128
      %p130 = scmp.ne.s32.totalorder %s118, %s119
      %p131 = scmp.eq.s32.totalorder %s30, 1
      %p132 = por %p130, %p131
      %p134 = scmp.ne.s32.totalorder %s119, %s133
      %p135 = scmp.eq.s32.totalorder %s30, 0
      %p136 = por %p134, %p135
      %s138 = sadd.s32 %s137, 1
      %p141 = scmp.eq.s32.totalorder %s24, 1
      %p142 = scmp.ne.s32.totalorder %s137, %s139
      %p143 = scmp.eq.s32.totalorder %s24, 0
      %p144 = por %p142, %p143
      %p145 = scmp.ne.s32.totalorder %s137, %s139
      %p146 = scmp.eq.s32.totalorder %s29, 1
      %p147 = por %p145, %p146
      %p148 = scmp.ne.s32.totalorder %s139, %s140
      %p149 = scmp.eq.s32.totalorder %s29, 0
      %p150 = por %p148, %p149
      %p151 = scmp.ne.s32.totalorder %s139, %s140
      %p152 = scmp.eq.s32.totalorder %s30, 1
      %p153 = por %p151, %p152
      %p155 = scmp.ne.s32.totalorder %s140, %s154
      %p156 = scmp.eq.s32.totalorder %s30, 0
      %p157 = por %p155, %p156
      %s158 = ssub.s32 %s24, %s31
      %p159 = scmp.eq.s32.totalorder %s158, 0
      %s161 = sadd.s32 %s160, 1
      %s162 = scalar_select %p159, %s160, %s161
      %p165 = pneg %p159
      %p166 = scmp.eq.s32.totalorder %s24, 1
      %p167 = por %p165, %p166
      %p168 = scmp.ne.s32.totalorder %s160, %s163
      %p169 = scmp.eq.s32.totalorder %s24, 0
      %p170 = por %p168, %p169
      %p171 = scmp.ne.s32.totalorder %s160, %s163
      %p172 = scmp.eq.s32.totalorder %s29, 1
      %p173 = por %p171, %p172
      %p174 = scmp.ne.s32.totalorder %s163, %s164
      %p175 = scmp.eq.s32.totalorder %s29, 0
      %p176 = por %p174, %p175
      %p177 = scmp.ne.s32.totalorder %s163, %s164
      %p178 = scmp.eq.s32.totalorder %s30, 1
      %p179 = por %p177, %p178
      %p181 = scmp.ne.s32.totalorder %s164, %s180
      %p182 = scmp.eq.s32.totalorder %s30, 0
      %p183 = por %p181, %p182
      %s184 = ssub.s32 %s24, %s31
      %p185 = scmp.eq.s32.totalorder %s184, 0
      %s187 = sadd.s32 %s186, 1
      %s188 = scalar_select %p185, %s186, %s187
      %p191 = pneg %p185
      %p192 = scmp.eq.s32.totalorder %s24, 1
      %p193 = por %p191, %p192
      %p194 = scmp.ne.s32.totalorder %s186, %s189
      %p195 = scmp.eq.s32.totalorder %s24, 0
      %p196 = por %p194, %p195
      %p197 = scmp.ne.s32.totalorder %s186, %s189
      %p198 = scmp.eq.s32.totalorder %s29, 1
      %p199 = por %p197, %p198
      %p200 = scmp.ne.s32.totalorder %s189, %s190
      %p201 = scmp.eq.s32.totalorder %s29, 0
      %p202 = por %p200, %p201
      %p203 = scmp.ne.s32.totalorder %s189, %s190
      %p204 = scmp.eq.s32.totalorder %s30, 1
      %p205 = por %p203, %p204
      %p207 = scmp.ne.s32.totalorder %s190, %s206
      %p208 = scmp.eq.s32.totalorder %s30, 0
      %p209 = por %p207, %p208
      %s210 = ssub.s32 %s24, %s31
      %p211 = scmp.eq.s32.totalorder %s210, 0
      %s213 = sadd.s32 %s212, 1
      %s214 = scalar_select %p211, %s212, %s213
      %p217 = pneg %p211
      %p218 = scmp.eq.s32.totalorder %s24, 1
      %p219 = por %p217, %p218
      %p220 = scmp.ne.s32.totalorder %s212, %s215
      %p221 = scmp.eq.s32.totalorder %s24, 0
      %p222 = por %p220, %p221
      %p223 = scmp.ne.s32.totalorder %s212, %s215
      %p224 = scmp.eq.s32.totalorder %s29, 1
      %p225 = por %p223, %p224
      %p226 = scmp.ne.s32.totalorder %s215, %s216
      %p227 = scmp.eq.s32.totalorder %s29, 0
      %p228 = por %p226, %p227
      %p229 = scmp.ne.s32.totalorder %s215, %s216
      %p230 = scmp.eq.s32.totalorder %s30, 1
      %p231 = por %p229, %p230
      %p233 = scmp.ne.s32.totalorder %s216, %s232
      %p234 = scmp.eq.s32.totalorder %s30, 0
      %p235 = por %p233, %p234
      %s237 = sadd.s32 %s236, 1
      %p240 = scmp.eq.s32.totalorder %s24, 1
      %p241 = scmp.ne.s32.totalorder %s236, %s238
      %p242 = scmp.eq.s32.totalorder %s24, 0
      %p243 = por %p241, %p242
      %p244 = scmp.ne.s32.totalorder %s236, %s238
      %p245 = scmp.eq.s32.totalorder %s29, 1
      %p246 = por %p244, %p245
      %p247 = scmp.ne.s32.totalorder %s238, %s239
      %p248 = scmp.eq.s32.totalorder %s29, 0
      %p249 = por %p247, %p248
      %p250 = scmp.ne.s32.totalorder %s238, %s239
      %p251 = scmp.eq.s32.totalorder %s30, 1
      %p252 = por %p250, %p251
      %p254 = scmp.ne.s32.totalorder %s239, %s253
      %p255 = scmp.eq.s32.totalorder %s30, 0
      %p256 = por %p254, %p255
      %p257 = scmp.le.s32.totalorder 1, %s24
      %p258 = scmp.lt.s32.totalorder %s24, 3
      %p259 = pnand %p257, %p258
      %p260 = pneg %p259
      // Predicated region
      $region9: #{tpu_custom_call.1} parent=5 // pred_check
        _
      $region10: #{tpu_custom_call.1} parent=5 // pred_check_branch
        %262 = sbr.rel (%p259) target = $region12
      $region11: #{tpu_custom_call.1} parent=5 // pred_region
        %s263 = ssub.s32 %s24, 1
        // Predicated region
        $region13: #{tpu_custom_call.1} parent=11 // pred_check
          %p264 = pneg %p45
        $region14: #{tpu_custom_call.1} parent=11 // pred_check_branch
          %266 = sbr.rel (%p264) target = $region16
        $region15: #{tpu_custom_call.1} parent=11 // pred_region
          %s268 = ssub.s32 128, 128
          %269 = vsyncadd [#allocation4], %s268
          %s271 = sshll.u32 [#allocation3], 4
          %s272 = int_to_ptr.vmem [resolvable:$true] %s271
          %274 = dma.hbm_to_vmem [thread:$0]  %s0, 128, %s272, [#allocation4]
        $region16: #{tpu_custom_call.1} parent=11 // pred_fallthru
          _
        // Predicated region
        $region17: #{tpu_custom_call.1} parent=11 // pred_check
          %p275 = pneg %p66
        $region18: #{tpu_custom_call.1} parent=11 // pred_check_branch
          %277 = sbr.rel (%p275) target = $region20
        $region19: #{tpu_custom_call.1} parent=11 // pred_region
          %s279 = ssub.s32 2048, 2048
          %280 = vsyncadd [#allocation7], %s279
          %s281 = sshll.u32 [#allocation6], 4
          %s282 = int_to_ptr.vmem [resolvable:$true] %s281
          %287 = dma.hbm_to_vmem [thread:$0]  %s1, 2048, %s282, [#allocation7], 128, 128, 8
        $region20: #{tpu_custom_call.1} parent=11 // pred_fallthru
          _
        // Predicated region
        $region21: #{tpu_custom_call.1} parent=11 // pred_check
          %p288 = pneg %p87
        $region22: #{tpu_custom_call.1} parent=11 // pred_check_branch
          %290 = sbr.rel (%p288) target = $region24
        $region23: #{tpu_custom_call.1} parent=11 // pred_region
          _
        $region24: #{tpu_custom_call.1} parent=11 // pred_fallthru
          _
        // Predicated region
        $region25: #{tpu_custom_call.1} parent=11 // pred_check
          %p291 = pneg %p108
        $region26: #{tpu_custom_call.1} parent=11 // pred_check_branch
          %293 = sbr.rel (%p291) target = $region28
        $region27: #{tpu_custom_call.1} parent=11 // pred_region
          _
        $region28: #{tpu_custom_call.1} parent=11 // pred_fallthru
          _
        // Predicated region
        $region29: #{tpu_custom_call.1} parent=11 // pred_check
          %p294 = pneg %p129
        $region30: #{tpu_custom_call.1} parent=11 // pred_check_branch
          %296 = sbr.rel (%p294) target = $region32
        $region31: #{tpu_custom_call.1} parent=11 // pred_region
          %s298 = ssub.s32 1024, 1024
          %299 = vsyncadd [#allocation7], %s298
          %s300 = sshll.u32 [#allocation8], 4
          %s301 = int_to_ptr.vmem [resolvable:$true] %s300
          %306 = dma.hbm_to_vmem [thread:$0]  %s4, 1024, %s301, [#allocation7], 64, 64, 4
        $region32: #{tpu_custom_call.1} parent=11 // pred_fallthru
          _
        // Predicated region
        $region33: #{tpu_custom_call.1} parent=11 // pred_check
          %p307 = pneg %p150
        $region34: #{tpu_custom_call.1} parent=11 // pred_check_branch
          %309 = sbr.rel (%p307) target = $region36
        $region35: #{tpu_custom_call.1} parent=11 // pred_region
          _
        $region36: #{tpu_custom_call.1} parent=11 // pred_fallthru
          _
      $region12: #{tpu_custom_call.1} parent=5 // pred_fallthru
        _
      %p310 = scmp.lt.s32.totalorder %s24, 2
      // Predicated region
      $region37: #{tpu_custom_call.1} parent=5 // pred_check
        %p311 = pneg %p310
      $region38: #{tpu_custom_call.1} parent=5 // pred_check_branch
        %313 = sbr.rel (%p311) target = $region40
      $region39: #{tpu_custom_call.1} parent=5 // pred_region
        // Predicated region
        $region41: #{tpu_custom_call.1} parent=39 // pred_check
          %p314 = pneg %p170
        $region42: #{tpu_custom_call.1} parent=39 // pred_check_branch
          %316 = sbr.rel (%p314) target = $region44
        $region43: #{tpu_custom_call.1} parent=39 // pred_region
          %s317 = sand.u32 %s24, 1
          %s318 = scalar_lea.sflag [#allocation10], %s317
          %s319 = sand.u32 %s160, 1
          %s320 = smul.addr %s319, 256
          %s321 = scalar_lea.vmem [#allocation9], %s320
          %s323 = ssub.s32 4096, 4096
          %324 = vsyncadd %s318, %s323
          %s325 = smul.addr %s24, 64
          %s326 = smul.addr %s325, 64
          %s327 = scalar_lea.hbm %s6, %s326
          %s328 = sshll.u32 %s321, 4
          %s329 = int_to_ptr.vmem [resolvable:$true] %s328
          %334 = dma.hbm_to_vmem [thread:$0]  %s327, 4096, %s329, %s318, 256, 256, 16
        $region44: #{tpu_custom_call.1} parent=39 // pred_fallthru
          _
        // Predicated region
        $region45: #{tpu_custom_call.1} parent=39 // pred_check
          %p335 = pneg %p196
        $region46: #{tpu_custom_call.1} parent=39 // pred_check_branch
          %337 = sbr.rel (%p335) target = $region48
        $region47: #{tpu_custom_call.1} parent=39 // pred_region
          %s338 = sand.u32 %s24, 1
          %s339 = scalar_lea.sflag [#allocation10], %s338
          %s340 = sand.u32 %s186, 1
          %s341 = smul.addr %s340, 256
          %s342 = scalar_lea.vmem [#allocation11], %s341
          %s344 = ssub.s32 4096, 4096
          %345 = vsyncadd %s339, %s344
          %s346 = smul.addr %s24, 64
          %s347 = smul.addr %s346, 64
          %s348 = scalar_lea.hbm %s7, %s347
          %s349 = sshll.u32 %s342, 4
          %s350 = int_to_ptr.vmem [resolvable:$true] %s349
          %355 = dma.hbm_to_vmem [thread:$0]  %s348, 4096, %s350, %s339, 64, 64, 4
        $region48: #{tpu_custom_call.1} parent=39 // pred_fallthru
          _
        // Predicated region
        $region49: #{tpu_custom_call.1} parent=39 // pred_check
          %p356 = pneg %p222
        $region50: #{tpu_custom_call.1} parent=39 // pred_check_branch
          %358 = sbr.rel (%p356) target = $region52
        $region51: #{tpu_custom_call.1} parent=39 // pred_region
          %s359 = sand.u32 %s212, 1
          %s360 = scalar_lea.sflag [#allocation13], %s359
          %s361 = sand.u32 %s212, 1
          %s362 = smul.addr %s361, 32
          %s363 = scalar_lea.vmem [#allocation12], %s362
          %s365 = ssub.s32 512, 512
          %366 = vsyncadd %s360, %s365
          %s367 = smul.addr %s24, 4
          %s368 = smul.addr %s367, 128
          %s369 = scalar_lea.hbm %s8, %s368
          %s371 = sshll.u32 %s363, 4
          %s372 = int_to_ptr.vmem [resolvable:$true] %s371
          %374 = dma.hbm_to_vmem [thread:$0]  %s369, 512, %s372, %s360
        $region52: #{tpu_custom_call.1} parent=39 // pred_fallthru
          _
      $region40: #{tpu_custom_call.1} parent=5 // pred_fallthru
        _
      %p375 = scmp.le.s32.totalorder 1, %s24
      %p376 = scmp.lt.s32.totalorder %s24, 3
      %p377 = pnand %p375, %p376
      %p378 = pneg %p377
      // Predicated region
      $region53: #{tpu_custom_call.1} parent=5 // pred_check
        _
      $region54: #{tpu_custom_call.1} parent=5 // pred_check_branch
        %380 = sbr.rel (%p377) target = $region56
      $region55: #{tpu_custom_call.1} parent=5 // pred_region
        %s381 = ssub.s32 %s24, 1
        // Predicated region
        $region57: #{tpu_custom_call.1} parent=55 // pred_check
          %p382 = pneg %p45
        $region58: #{tpu_custom_call.1} parent=55 // pred_check_branch
          %384 = sbr.rel (%p382) target = $region60
        $region59: #{tpu_custom_call.1} parent=55 // pred_region
          %385 = dma.done [#allocation4], 128
        $region60: #{tpu_custom_call.1} parent=55 // pred_fallthru
          _
        // Predicated region
        $region61: #{tpu_custom_call.1} parent=55 // pred_check
          %p386 = pneg %p66
        $region62: #{tpu_custom_call.1} parent=55 // pred_check_branch
          %388 = sbr.rel (%p386) target = $region64
        $region63: #{tpu_custom_call.1} parent=55 // pred_region
          %389 = dma.done [#allocation7], 2048
        $region64: #{tpu_custom_call.1} parent=55 // pred_fallthru
          _
        // Predicated region
        $region65: #{tpu_custom_call.1} parent=55 // pred_check
          %p390 = pneg %p129
        $region66: #{tpu_custom_call.1} parent=55 // pred_check_branch
          %392 = sbr.rel (%p390) target = $region68
        $region67: #{tpu_custom_call.1} parent=55 // pred_region
          %393 = dma.done [#allocation7], 1024
        $region68: #{tpu_custom_call.1} parent=55 // pred_fallthru
          _
        %s394 = sand.u32 %s29, 1
        %s395 = scalar_lea.sflag [#allocation10], %s394
        %s396 = sand.u32 %s163, 1
        %s397 = smul.addr %s396, 256
        %s398 = scalar_lea.vmem [#allocation9], %s397
        // Predicated region
        $region69: #{tpu_custom_call.1} parent=55 // pred_check
          %p399 = pneg %p176
        $region70: #{tpu_custom_call.1} parent=55 // pred_check_branch
          %401 = sbr.rel (%p399) target = $region72
        $region71: #{tpu_custom_call.1} parent=55 // pred_region
          %402 = dma.done %s395, 4096
        $region72: #{tpu_custom_call.1} parent=55 // pred_fallthru
          _
        %s403 = sand.u32 %s29, 1
        %s404 = scalar_lea.sflag [#allocation10], %s403
        %s405 = sand.u32 %s189, 1
        %s406 = smul.addr %s405, 256
        %s407 = scalar_lea.vmem [#allocation11], %s406
        // Predicated region
        $region73: #{tpu_custom_call.1} parent=55 // pred_check
          %p408 = pneg %p202
        $region74: #{tpu_custom_call.1} parent=55 // pred_check_branch
          %410 = sbr.rel (%p408) target = $region76
        $region75: #{tpu_custom_call.1} parent=55 // pred_region
          %411 = dma.done %s404, 4096
        $region76: #{tpu_custom_call.1} parent=55 // pred_fallthru
          _
        %s412 = sand.u32 %s215, 1
        %s413 = scalar_lea.sflag [#allocation13], %s412
        %s414 = sand.u32 %s215, 1
        %s415 = smul.addr %s414, 32
        %s416 = scalar_lea.vmem [#allocation12], %s415
        // Predicated region
        $region77: #{tpu_custom_call.1} parent=55 // pred_check
          %p417 = pneg %p228
        $region78: #{tpu_custom_call.1} parent=55 // pred_check_branch
          %419 = sbr.rel (%p417) target = $region80
        $region79: #{tpu_custom_call.1} parent=55 // pred_region
          %420 = dma.done %s413, 512
        $region80: #{tpu_custom_call.1} parent=55 // pred_fallthru
          _
        %p421 = pneg %p45
        %p422 = pneg %p42
        %p423 = pneg %p66
        %p424 = pneg %p63
        %p425 = pneg %p87
        %p426 = pneg %p84
        %p427 = pneg %p108
        %p428 = pneg %p105
        %p429 = pneg %p129
        %p430 = pneg %p126
        %p431 = pneg %p150
        %p432 = pneg %p147
        %s433 = sand.u32 %s29, 1
        %s434 = scalar_lea.sflag [#allocation10], %s433
        %s435 = sand.u32 %s163, 1
        %s436 = smul.addr %s435, 256
        %s437 = scalar_lea.vmem [#allocation9], %s436
        %p438 = pneg %p176
        %p439 = pneg %p173
        %s440 = sand.u32 %s29, 1
        %s441 = scalar_lea.sflag [#allocation10], %s440
        %s442 = sand.u32 %s189, 1
        %s443 = smul.addr %s442, 256
        %s444 = scalar_lea.vmem [#allocation11], %s443
        %p445 = pneg %p202
        %p446 = pneg %p199
        %s447 = sand.u32 %s215, 1
        %s448 = scalar_lea.sflag [#allocation13], %s447
        %s449 = sand.u32 %s215, 1
        %s450 = smul.addr %s449, 32
        %s451 = scalar_lea.vmem [#allocation12], %s450
        %p452 = pneg %p228
        %p453 = pneg %p225
        %p454 = pneg %p249
        %p455 = pneg %p246
        %p461 = scmp.eq.s32.totalorder %s29, 0
        // Predicated region
        $region81: #{tpu_custom_call.1} parent=55 // pred_check
          %p462 = pneg %p461
        $region82: #{tpu_custom_call.1} parent=55 // pred_check_branch
          %464 = sbr.rel (%p462) target = $region84
        $region83: #{tpu_custom_call.1} parent=55 // pred_region
          %v465 = vld [vmem:[#allocation3] sm:$0xff]
          %466 = vst [vmem:[#allocation2] sm:$0xff] %v465
        $region84: #{tpu_custom_call.1} parent=55 // pred_fallthru
          _
        %v467 = vld [vmem:[#allocation2] sm:$0xff]
        %v468 = vpack.c.bf16 %v467, %v467
        %v469 = vld [vmem:[#allocation6] sm:$0xff]
        %v470 = vld [vmem:[#allocation6 + $0x8] sm:$0xff]
        %v471 = vld [vmem:[#allocation6 + $0x10] sm:$0xff]
        %v472 = vld [vmem:[#allocation6 + $0x18] sm:$0xff]
        %v473 = vld [vmem:[#allocation6 + $0x20] sm:$0xff]
        %v474 = vld [vmem:[#allocation6 + $0x28] sm:$0xff]
        %v475 = vld [vmem:[#allocation6 + $0x30] sm:$0xff]
        %v476 = vld [vmem:[#allocation6 + $0x38] sm:$0xff]
        %v477 = vld [vmem:[#allocation6 + $0x40] sm:$0xff]
        %v478 = vld [vmem:[#allocation6 + $0x48] sm:$0xff]
        %v479 = vld [vmem:[#allocation6 + $0x50] sm:$0xff]
        %v480 = vld [vmem:[#allocation6 + $0x58] sm:$0xff]
        %v481 = vld [vmem:[#allocation6 + $0x60] sm:$0xff]
        %v482 = vld [vmem:[#allocation6 + $0x68] sm:$0xff]
        %v483 = vld [vmem:[#allocation6 + $0x70] sm:$0xff]
        %v484 = vld [vmem:[#allocation6 + $0x78] sm:$0xff]
        %v501 = vunpack.c.l.b16 %v469
        %v502 = vunpack.c.h.b16 %v469
        %v503 = vunpack.c.l.b16 %v470
        %v504 = vunpack.c.h.b16 %v470
        %v505 = vunpack.c.l.b16 %v471
        %v506 = vunpack.c.h.b16 %v471
        %v507 = vunpack.c.l.b16 %v472
        %v508 = vunpack.c.h.b16 %v472
        %v509 = vunpack.c.l.b16 %v473
        %v510 = vunpack.c.h.b16 %v473
        %v511 = vunpack.c.l.b16 %v474
        %v512 = vunpack.c.h.b16 %v474
        %v513 = vunpack.c.l.b16 %v475
        %v514 = vunpack.c.h.b16 %v475
        %v515 = vunpack.c.l.b16 %v476
        %v516 = vunpack.c.h.b16 %v476
        %v517 = vunpack.c.l.b16 %v477
        %v518 = vunpack.c.h.b16 %v477
        %v519 = vunpack.c.l.b16 %v478
        %v520 = vunpack.c.h.b16 %v478
        %v521 = vunpack.c.l.b16 %v479
        %v522 = vunpack.c.h.b16 %v479
        %v523 = vunpack.c.l.b16 %v480
        %v524 = vunpack.c.h.b16 %v480
        %v525 = vunpack.c.l.b16 %v481
        %v526 = vunpack.c.h.b16 %v481
        %v527 = vunpack.c.l.b16 %v482
        %v528 = vunpack.c.h.b16 %v482
        %v529 = vunpack.c.l.b16 %v483
        %v530 = vunpack.c.h.b16 %v483
        %v531 = vunpack.c.l.b16 %v484
        %v532 = vunpack.c.h.b16 %v484
        %v533 = vpack.c.b16 %v503, %v501
        %v534 = vpack.c.b16 %v504, %v502
        %v535 = vpack.c.b16 %v507, %v505
        %v536 = vpack.c.b16 %v508, %v506
        %v537 = vpack.c.b16 %v511, %v509
        %v538 = vpack.c.b16 %v512, %v510
        %v539 = vpack.c.b16 %v515, %v513
        %v540 = vpack.c.b16 %v516, %v514
        %v541 = vpack.c.b16 %v519, %v517
        %v542 = vpack.c.b16 %v520, %v518
        %v543 = vpack.c.b16 %v523, %v521
        %v544 = vpack.c.b16 %v524, %v522
        %v545 = vpack.c.b16 %v527, %v525
        %v546 = vpack.c.b16 %v528, %v526
        %v547 = vpack.c.b16 %v531, %v529
        %v548 = vpack.c.b16 %v532, %v530
        %565 = vmatprep.subr.bf16.mxu0 %v534
        %566 = vmatpush1.bf16.msra.mxu0 %v533
        %567 = vmatprep.subr.bf16.mxu0 %v536
        %568 = vmatpush1.bf16.msra.mxu0 %v535
        %569 = vmatprep.subr.bf16.mxu0 %v538
        %570 = vmatpush1.bf16.msra.mxu0 %v537
        %571 = vmatprep.subr.bf16.mxu0 %v540
        %572 = vmatpush1.bf16.msra.mxu0 %v539
        %573 = vmatprep.subr.bf16.mxu0 %v542
        %574 = vmatpush1.bf16.msra.mxu0 %v541
        %575 = vmatprep.subr.bf16.mxu0 %v544
        %576 = vmatpush1.bf16.msra.mxu0 %v543
        %577 = vmatprep.subr.bf16.mxu0 %v546
        %578 = vmatpush1.bf16.msra.mxu0 %v545
        %579 = vmatprep.subr.bf16.mxu0 %v548
        %580 = vmatpush1.bf16.msra.mxu0 %v547
        %581 = vmatprep.subr.bf16.mxu0 0
        %582 = vmatpush1.bf16.msra.mxu0 0
        %583 = vmatprep.subr.bf16.mxu0 0
        %584 = vmatpush1.bf16.msra.mxu0 0
        %585 = vmatprep.subr.bf16.mxu0 0
        %586 = vmatpush1.bf16.msra.mxu0 0
        %587 = vmatprep.subr.bf16.mxu0 0
        %588 = vmatpush1.bf16.msra.mxu0 0
        %589 = vmatprep.subr.bf16.mxu0 0
        %590 = vmatpush1.bf16.msra.mxu0 0
        %591 = vmatprep.subr.bf16.mxu0 0
        %592 = vmatpush1.bf16.msra.mxu0 0
        %593 = vmatprep.subr.bf16.mxu0 0
        %594 = vmatpush1.bf16.msra.mxu0 0
        %595 = vmatprep.subr.bf16.mxu0 0
        %596 = vmatpush1.bf16.msra.mxu0 0
        %597 = vmatprep.mubr.bf16.mxu0 0
        %598 = vmatmul.mubr.bf16.gmra.mrb[0].mxu0 %v468
        %v599 = vpop.f32.mrb[0].mxu0
        %v600 = vadd.f32 0.0, %v599
        %v601 = vpop.f32.mrb[0].mxu0
        %v602 = vadd.f32 0.0, %v601
        %v603 = vpop.f32.mrb[0].mxu0
        %v604 = vpop.f32.mrb[0].mxu0
        %605 = vdwg.mxu0
        %v606 = vpack.c.bf16 %v600, %v600
        %v607 = vpack.c.bf16 %v602, %v602
        %v608 = vld [vmem:[%s2] sm:$0xf]
        %v609 = vld [vmem:[%s3] sm:$0xf]
        %vm610 = vcmask 64512
        %v612 = vsel %vm610, %v609, 0
        %vm614 = vcmask 1043456
        %v616 = vsel %vm614, %v607, 0
        %618 = vmatprep.subr.bf16.mxu0 0
        %619 = vmatpush1.bf16.msra.mxu0 %v616
        %620 = vmatprep.subr.bf16.mxu0 0
        %621 = vmatpush1.bf16.msra.mxu0 0
        %622 = vmatprep.subr.bf16.mxu0 0
        %623 = vmatpush1.bf16.msra.mxu0 0
        %624 = vmatprep.subr.bf16.mxu0 0
        %625 = vmatpush1.bf16.msra.mxu0 0
        %626 = vmatprep.subr.bf16.mxu0 0
        %627 = vmatpush1.bf16.msra.mxu0 0
        %628 = vmatprep.subr.bf16.mxu0 0
        %629 = vmatpush1.bf16.msra.mxu0 0
        %630 = vmatprep.subr.bf16.mxu0 0
        %631 = vmatpush1.bf16.msra.mxu0 0
        %632 = vmatprep.subr.bf16.mxu0 0
        %633 = vmatpush1.bf16.msra.mxu0 0
        %634 = vmatprep.subr.bf16.mxu0 0
        %635 = vmatpush1.bf16.msra.mxu0 0
        %636 = vmatprep.subr.bf16.mxu0 0
        %637 = vmatpush1.bf16.msra.mxu0 0
        %638 = vmatprep.subr.bf16.mxu0 0
        %639 = vmatpush1.bf16.msra.mxu0 0
        %640 = vmatprep.subr.bf16.mxu0 0
        %641 = vmatpush1.bf16.msra.mxu0 0
        %642 = vmatprep.subr.bf16.mxu0 0
        %643 = vmatpush1.bf16.msra.mxu0 0
        %644 = vmatprep.subr.bf16.mxu0 0
        %645 = vmatpush1.bf16.msra.mxu0 0
        %646 = vmatprep.subr.bf16.mxu0 0
        %647 = vmatpush1.bf16.msra.mxu0 0
        %648 = vmatprep.subr.bf16.mxu0 0
        %649 = vmatpush1.bf16.msra.mxu0 0
        %650 = vmatprep.mubr.bf16.mxu0 0
        %651 = vmatmul.mubr.bf16.gmra.mrb[0].mxu0 %v612
        %v652 = vpop.f32.mrb[0].mxu0
        %v653 = vadd.f32 0.0, %v652
        %v654 = vpop.f32.mrb[0].mxu0
        %v655 = vpop.f32.mrb[0].mxu0
        %v656 = vpop.f32.mrb[0].mxu0
        %657 = vdwg.mxu0
        %v659 = vsel %vm610, %v608, 0
        %v662 = vsel %vm614, %v606, 0
        %664 = vmatprep.subr.bf16.mxu0 0
        %665 = vmatpush1.bf16.msra.mxu0 %v662
        %666 = vmatprep.subr.bf16.mxu0 0
        %667 = vmatpush1.bf16.msra.mxu0 0
        %668 = vmatprep.subr.bf16.mxu0 0
        %669 = vmatpush1.bf16.msra.mxu0 0
        %670 = vmatprep.subr.bf16.mxu0 0
        %671 = vmatpush1.bf16.msra.mxu0 0
        %672 = vmatprep.subr.bf16.mxu0 0
        %673 = vmatpush1.bf16.msra.mxu0 0
        %674 = vmatprep.subr.bf16.mxu0 0
        %675 = vmatpush1.bf16.msra.mxu0 0
        %676 = vmatprep.subr.bf16.mxu0 0
        %677 = vmatpush1.bf16.msra.mxu0 0
        %678 = vmatprep.subr.bf16.mxu0 0
        %679 = vmatpush1.bf16.msra.mxu0 0
        %680 = vmatprep.subr.bf16.mxu0 0
        %681 = vmatpush1.bf16.msra.mxu0 0
        %682 = vmatprep.subr.bf16.mxu0 0
        %683 = vmatpush1.bf16.msra.mxu0 0
        %684 = vmatprep.subr.bf16.mxu0 0
        %685 = vmatpush1.bf16.msra.mxu0 0
        %686 = vmatprep.subr.bf16.mxu0 0
        %687 = vmatpush1.bf16.msra.mxu0 0
        %688 = vmatprep.subr.bf16.mxu0 0
        %689 = vmatpush1.bf16.msra.mxu0 0
        %690 = vmatprep.subr.bf16.mxu0 0
        %691 = vmatpush1.bf16.msra.mxu0 0
        %692 = vmatprep.subr.bf16.mxu0 0
        %693 = vmatpush1.bf16.msra.mxu0 0
        %694 = vmatprep.subr.bf16.mxu0 0
        %695 = vmatpush1.bf16.msra.mxu0 0
        %696 = vmatprep.mubr.bf16.mxu0 0
        %697 = vmatmul.mubr.bf16.gmra.mrb[0].mxu0 %v659
        %v698 = vpop.f32.mrb[0].mxu0
        %v699 = vadd.f32 %v653, %v698
        %v700 = vpop.f32.mrb[0].mxu0
        %v701 = vpop.f32.mrb[0].mxu0
        %v702 = vpop.f32.mrb[0].mxu0
        %703 = vdwg.mxu0
        %v704 = vadd.f32 %v467, %v699
        %v705 = vld [vmem:[%s416] ss:$0 sm:$0xff]
        %v706 = vld [vmem:[%s416 + $0x1] ss:$0 sm:$0xff]
        %707 = vadd.xlane.f32.xlu0 %v704
        %v708 = vpop.xlane.xlu0 %707
        %v709 = vrcp.pop 128.0
        %v710 = vmul.f32 %v708, %v709
        %v711 = vsub.f32 %v704, %v710
        %v712 = vmul.f32 %v711, %v711
        %713 = vadd.xlane.f32.xlu0 %v712
        %v714 = vpop.xlane.xlu0 %713
        %v715 = vmul.f32 %v714, %v709
        %v716 = vadd.f32 %v715, 1e-05
        %v717 = vrsqrt.pop %v716
        %v718 = vmul.f32 %v711, %v717
        %v719 = vmul.f32 %v718, %v705
        %v720 = vadd.f32 %v719, %v706
        %v721 = vpack.c.bf16 %v720, %v720
        %v722 = vld [vmem:[%s398] sm:$0xff]
        %v723 = vld [vmem:[%s398 + $0x8] sm:$0xff]
        %v724 = vld [vmem:[%s398 + $0x10] sm:$0xff]
        %v725 = vld [vmem:[%s398 + $0x18] sm:$0xff]
        %v726 = vld [vmem:[%s398 + $0x20] sm:$0xff]
        %v727 = vld [vmem:[%s398 + $0x28] sm:$0xff]
        %v728 = vld [vmem:[%s398 + $0x30] sm:$0xff]
        %v729 = vld [vmem:[%s398 + $0x38] sm:$0xff]
        %v730 = vld [vmem:[%s398 + $0x40] sm:$0xff]
        %v731 = vld [vmem:[%s398 + $0x48] sm:$0xff]
        %v732 = vld [vmem:[%s398 + $0x50] sm:$0xff]
        %v733 = vld [vmem:[%s398 + $0x58] sm:$0xff]
        %v734 = vld [vmem:[%s398 + $0x60] sm:$0xff]
        %v735 = vld [vmem:[%s398 + $0x68] sm:$0xff]
        %v736 = vld [vmem:[%s398 + $0x70] sm:$0xff]
        %v737 = vld [vmem:[%s398 + $0x78] sm:$0xff]
        %v738 = vld [vmem:[%s398 + $0x80] sm:$0xff]
        %v739 = vld [vmem:[%s398 + $0x88] sm:$0xff]
        %v740 = vld [vmem:[%s398 + $0x90] sm:$0xff]
        %v741 = vld [vmem:[%s398 + $0x98] sm:$0xff]
        %v742 = vld [vmem:[%s398 + $0xa0] sm:$0xff]
        %v743 = vld [vmem:[%s398 + $0xa8] sm:$0xff]
        %v744 = vld [vmem:[%s398 + $0xb0] sm:$0xff]
        %v745 = vld [vmem:[%s398 + $0xb8] sm:$0xff]
        %v746 = vld [vmem:[%s398 + $0xc0] sm:$0xff]
        %v747 = vld [vmem:[%s398 + $0xc8] sm:$0xff]
        %v748 = vld [vmem:[%s398 + $0xd0] sm:$0xff]
        %v749 = vld [vmem:[%s398 + $0xd8] sm:$0xff]
        %v750 = vld [vmem:[%s398 + $0xe0] sm:$0xff]
        %v751 = vld [vmem:[%s398 + $0xe8] sm:$0xff]
        %v752 = vld [vmem:[%s398 + $0xf0] sm:$0xff]
        %v753 = vld [vmem:[%s398 + $0xf8] sm:$0xff]
        %s754 = scalar_lea.vmem %s416, 2 [#allocation12]
        %v755 = vld [vmem:[%s754] ss:$8 sm:$0xf]
        %v757 = vlaneseq
        %v758 = vshrl.u32 %v757, 7
        %v759 = vsub.s32 0, %v758
        %v760 = vrot.slane %v755, %v759
        %v761 = vlaneseq
        %v762 = vshrl.u32 %v761, 7
        %v763 = vsub.s32 1, %v762
        %v764 = vrot.slane %v755, %v763
        %v765 = vlaneseq
        %v766 = vshrl.u32 %v765, 7
        %v767 = vsub.s32 2, %v766
        %v768 = vrot.slane %v755, %v767
        %v769 = vlaneseq
        %v770 = vshrl.u32 %v769, 7
        %v771 = vsub.s32 3, %v770
        %v772 = vrot.slane %v755, %v771
        %v809 = vunpack.c.l.b16 %v722
        %v810 = vunpack.c.h.b16 %v722
        %v811 = vunpack.c.l.b16 %v723
        %v812 = vunpack.c.h.b16 %v723
        %v813 = vunpack.c.l.b16 %v724
        %v814 = vunpack.c.h.b16 %v724
        %v815 = vunpack.c.l.b16 %v725
        %v816 = vunpack.c.h.b16 %v725
        %v817 = vunpack.c.l.b16 %v726
        %v818 = vunpack.c.h.b16 %v726
        %v819 = vunpack.c.l.b16 %v727
        %v820 = vunpack.c.h.b16 %v727
        %v821 = vunpack.c.l.b16 %v728
        %v822 = vunpack.c.h.b16 %v728
        %v823 = vunpack.c.l.b16 %v729
        %v824 = vunpack.c.h.b16 %v729
        %v825 = vunpack.c.l.b16 %v730
        %v826 = vunpack.c.h.b16 %v730
        %v827 = vunpack.c.l.b16 %v731
        %v828 = vunpack.c.h.b16 %v731
        %v829 = vunpack.c.l.b16 %v732
        %v830 = vunpack.c.h.b16 %v732
        %v831 = vunpack.c.l.b16 %v733
        %v832 = vunpack.c.h.b16 %v733
        %v833 = vunpack.c.l.b16 %v734
        %v834 = vunpack.c.h.b16 %v734
        %v835 = vunpack.c.l.b16 %v735
        %v836 = vunpack.c.h.b16 %v735
        %v837 = vunpack.c.l.b16 %v736
        %v838 = vunpack.c.h.b16 %v736
        %v839 = vunpack.c.l.b16 %v737
        %v840 = vunpack.c.h.b16 %v737
        %v841 = vunpack.c.l.b16 %v738
        %v842 = vunpack.c.h.b16 %v738
        %v843 = vunpack.c.l.b16 %v739
        %v844 = vunpack.c.h.b16 %v739
        %v845 = vunpack.c.l.b16 %v740
        %v846 = vunpack.c.h.b16 %v740
        %v847 = vunpack.c.l.b16 %v741
        %v848 = vunpack.c.h.b16 %v741
        %v849 = vunpack.c.l.b16 %v742
        %v850 = vunpack.c.h.b16 %v742
        %v851 = vunpack.c.l.b16 %v743
        %v852 = vunpack.c.h.b16 %v743
        %v853 = vunpack.c.l.b16 %v744
        %v854 = vunpack.c.h.b16 %v744
        %v855 = vunpack.c.l.b16 %v745
        %v856 = vunpack.c.h.b16 %v745
        %v857 = vunpack.c.l.b16 %v746
        %v858 = vunpack.c.h.b16 %v746
        %v859 = vunpack.c.l.b16 %v747
        %v860 = vunpack.c.h.b16 %v747
        %v861 = vunpack.c.l.b16 %v748
        %v862 = vunpack.c.h.b16 %v748
        %v863 = vunpack.c.l.b16 %v749
        %v864 = vunpack.c.h.b16 %v749
        %v865 = vunpack.c.l.b16 %v750
        %v866 = vunpack.c.h.b16 %v750
        %v867 = vunpack.c.l.b16 %v751
        %v868 = vunpack.c.h.b16 %v751
        %v869 = vunpack.c.l.b16 %v752
        %v870 = vunpack.c.h.b16 %v752
        %v871 = vunpack.c.l.b16 %v753
        %v872 = vunpack.c.h.b16 %v753
        %v873 = vpack.c.b16 %v813, %v809
        %v874 = vpack.c.b16 %v814, %v810
        %v875 = vpack.c.b16 %v815, %v811
        %v876 = vpack.c.b16 %v816, %v812
        %v877 = vpack.c.b16 %v821, %v817
        %v878 = vpack.c.b16 %v822, %v818
        %v879 = vpack.c.b16 %v823, %v819
        %v880 = vpack.c.b16 %v824, %v820
        %v881 = vpack.c.b16 %v829, %v825
        %v882 = vpack.c.b16 %v830, %v826
        %v883 = vpack.c.b16 %v831, %v827
        %v884 = vpack.c.b16 %v832, %v828
        %v885 = vpack.c.b16 %v837, %v833
        %v886 = vpack.c.b16 %v838, %v834
        %v887 = vpack.c.b16 %v839, %v835
        %v888 = vpack.c.b16 %v840, %v836
        %v889 = vpack.c.b16 %v845, %v841
        %v890 = vpack.c.b16 %v846, %v842
        %v891 = vpack.c.b16 %v847, %v843
        %v892 = vpack.c.b16 %v848, %v844
        %v893 = vpack.c.b16 %v853, %v849
        %v894 = vpack.c.b16 %v854, %v850
        %v895 = vpack.c.b16 %v855, %v851
        %v896 = vpack.c.b16 %v856, %v852
        %v897 = vpack.c.b16 %v861, %v857
        %v898 = vpack.c.b16 %v862, %v858
        %v899 = vpack.c.b16 %v863, %v859
        %v900 = vpack.c.b16 %v864, %v860
        %v901 = vpack.c.b16 %v869, %v865
        %v902 = vpack.c.b16 %v870, %v866
        %v903 = vpack.c.b16 %v871, %v867
        %v904 = vpack.c.b16 %v872, %v868
        %937 = vmatprep.subr.bf16.mxu0 %v874
        %938 = vmatpush1.bf16.msra.mxu0 %v873
        %939 = vmatprep.subr.bf16.mxu0 %v878
        %940 = vmatpush1.bf16.msra.mxu0 %v877
        %941 = vmatprep.subr.bf16.mxu0 %v882
        %942 = vmatpush1.bf16.msra.mxu0 %v881
        %943 = vmatprep.subr.bf16.mxu0 %v886
        %944 = vmatpush1.bf16.msra.mxu0 %v885
        %945 = vmatprep.subr.bf16.mxu0 %v890
        %946 = vmatpush1.bf16.msra.mxu0 %v889
        %947 = vmatprep.subr.bf16.mxu0 %v894
        %948 = vmatpush1.bf16.msra.mxu0 %v893
        %949 = vmatprep.subr.bf16.mxu0 %v898
        %950 = vmatpush1.bf16.msra.mxu0 %v897
        %951 = vmatprep.subr.bf16.mxu0 %v902
        %952 = vmatpush1.bf16.msra.mxu0 %v901
        %953 = vmatprep.subr.bf16.mxu0 0
        %954 = vmatpush1.bf16.msra.mxu0 0
        %955 = vmatprep.subr.bf16.mxu0 0
        %956 = vmatpush1.bf16.msra.mxu0 0
        %957 = vmatprep.subr.bf16.mxu0 0
        %958 = vmatpush1.bf16.msra.mxu0 0
        %959 = vmatprep.subr.bf16.mxu0 0
        %960 = vmatpush1.bf16.msra.mxu0 0
        %961 = vmatprep.subr.bf16.mxu0 0
        %962 = vmatpush1.bf16.msra.mxu0 0
        %963 = vmatprep.subr.bf16.mxu0 0
        %964 = vmatpush1.bf16.msra.mxu0 0
        %965 = vmatprep.subr.bf16.mxu0 0
        %966 = vmatpush1.bf16.msra.mxu0 0
        %967 = vmatprep.subr.bf16.mxu0 0
        %968 = vmatpush1.bf16.msra.mxu0 0
        %969 = vmatprep.mubr.bf16.mxu0 0
        %970 = vmatmul.mubr.bf16.gmra.mrb[0].mxu0 %v721
        %v971 = vpop.f32.mrb[0].mxu0
        %v972 = vadd.f32 %v760, %v971
        %v973 = vpop.f32.mrb[0].mxu0
        %v974 = vadd.f32 %v764, %v973
        %v975 = vpop.f32.mrb[0].mxu0
        %v976 = vpop.f32.mrb[0].mxu0
        %977 = vdwg.mxu0
        %978 = vmatprep.subr.bf16.mxu0 %v876
        %979 = vmatpush1.bf16.msra.mxu0 %v875
        %980 = vmatprep.subr.bf16.mxu0 %v880
        %981 = vmatpush1.bf16.msra.mxu0 %v879
        %982 = vmatprep.subr.bf16.mxu0 %v884
        %983 = vmatpush1.bf16.msra.mxu0 %v883
        %984 = vmatprep.subr.bf16.mxu0 %v888
        %985 = vmatpush1.bf16.msra.mxu0 %v887
        %986 = vmatprep.subr.bf16.mxu0 %v892
        %987 = vmatpush1.bf16.msra.mxu0 %v891
        %988 = vmatprep.subr.bf16.mxu0 %v896
        %989 = vmatpush1.bf16.msra.mxu0 %v895
        %990 = vmatprep.subr.bf16.mxu0 %v900
        %991 = vmatpush1.bf16.msra.mxu0 %v899
        %992 = vmatprep.subr.bf16.mxu0 %v904
        %993 = vmatpush1.bf16.msra.mxu0 %v903
        %994 = vmatprep.subr.bf16.mxu0 0
        %995 = vmatpush1.bf16.msra.mxu0 0
        %996 = vmatprep.subr.bf16.mxu0 0
        %997 = vmatpush1.bf16.msra.mxu0 0
        %998 = vmatprep.subr.bf16.mxu0 0
        %999 = vmatpush1.bf16.msra.mxu0 0
        %1000 = vmatprep.subr.bf16.mxu0 0
        %1001 = vmatpush1.bf16.msra.mxu0 0
        %1002 = vmatprep.subr.bf16.mxu0 0
        %1003 = vmatpush1.bf16.msra.mxu0 0
        %1004 = vmatprep.subr.bf16.mxu0 0
        %1005 = vmatpush1.bf16.msra.mxu0 0
        %1006 = vmatprep.subr.bf16.mxu0 0
        %1007 = vmatpush1.bf16.msra.mxu0 0
        %1008 = vmatprep.subr.bf16.mxu0 0
        %1009 = vmatpush1.bf16.msra.mxu0 0
        %1010 = vmatprep.mubr.bf16.mxu0 0
        %1011 = vmatmul.mubr.bf16.gmra.mrb[0].mxu0 %v721
        %v1012 = vpop.f32.mrb[0].mxu0
        %v1013 = vadd.f32 %v768, %v1012
        %v1014 = vpop.f32.mrb[0].mxu0
        %v1015 = vadd.f32 %v772, %v1014
        %v1016 = vpop.f32.mrb[0].mxu0
        %v1017 = vpop.f32.mrb[0].mxu0
        %1018 = vdwg.mxu0
        %v1019 = vpack.c.bf16 %v972, %v972
        %v1020 = vpack.c.bf16 %v974, %v974
        %v1021 = vpack.c.bf16 %v1013, %v1013
        %v1022 = vpack.c.bf16 %v1015, %v1015
        %v1023 = vmul.bf16 %v1019, 1056980736
        %v1024 = vmul.bf16 %v1020, 1056980736
        %v1025 = vmul.bf16 %v1021, 1056980736
        %v1026 = vmul.bf16 %v1022, 1056980736
        %v1027 = vmul.bf16 %v1019, %v1019
        %v1028 = vmul.bf16 %v1020, %v1020
        %v1029 = vmul.bf16 %v1021, %v1021
        %v1030 = vmul.bf16 %v1022, %v1022
        %v1031 = vmul.bf16 %v1027, %v1019
        %v1032 = vmul.bf16 %v1028, %v1020
        %v1033 = vmul.bf16 %v1029, %v1021
        %v1034 = vmul.bf16 %v1030, %v1022
        %v1035 = vmul.bf16 %v1031, 1027030327
        %v1036 = vmul.bf16 %v1032, 1027030327
        %v1037 = vmul.bf16 %v1033, 1027030327
        %v1038 = vmul.bf16 %v1034, 1027030327
        %v1039 = vadd.bf16 %v1019, %v1035
        %v1040 = vadd.bf16 %v1020, %v1036
        %v1041 = vadd.bf16 %v1021, %v1037
        %v1042 = vadd.bf16 %v1022, %v1038
        %v1043 = vmul.bf16 %v1039, 1061961548
        %v1044 = vmul.bf16 %v1040, 1061961548
        %v1045 = vmul.bf16 %v1041, 1061961548
        %v1046 = vmul.bf16 %v1042, 1061961548
        %v1047 = vtanh.bf16.pop %v1043
        %v1048 = vtanh.bf16.pop %v1044
        %v1049 = vtanh.bf16.pop %v1045
        %v1050 = vtanh.bf16.pop %v1046
        %v1051 = vadd.bf16 %v1047, 1065369472
        %v1052 = vadd.bf16 %v1048, 1065369472
        %v1053 = vadd.bf16 %v1049, 1065369472
        %v1054 = vadd.bf16 %v1050, 1065369472
        %v1055 = vmul.bf16 %v1023, %v1051
        %v1056 = vmul.bf16 %v1024, %v1052
        %v1057 = vmul.bf16 %v1025, %v1053
        %v1058 = vmul.bf16 %v1026, %v1054
        %v1059 = vld [vmem:[%s407] sm:$0xf]
        %v1060 = vld [vmem:[%s407 + $0x4] sm:$0xf]
        %v1061 = vld [vmem:[%s407 + $0x8] sm:$0xf]
        %v1062 = vld [vmem:[%s407 + $0xc] sm:$0xf]
        %v1063 = vld [vmem:[%s407 + $0x10] sm:$0xf]
        %v1064 = vld [vmem:[%s407 + $0x14] sm:$0xf]
        %v1065 = vld [vmem:[%s407 + $0x18] sm:$0xf]
        %v1066 = vld [vmem:[%s407 + $0x1c] sm:$0xf]
        %v1067 = vld [vmem:[%s407 + $0x20] sm:$0xf]
        %v1068 = vld [vmem:[%s407 + $0x24] sm:$0xf]
        %v1069 = vld [vmem:[%s407 + $0x28] sm:$0xf]
        %v1070 = vld [vmem:[%s407 + $0x2c] sm:$0xf]
        %v1071 = vld [vmem:[%s407 + $0x30] sm:$0xf]
        %v1072 = vld [vmem:[%s407 + $0x34] sm:$0xf]
        %v1073 = vld [vmem:[%s407 + $0x38] sm:$0xf]
        %v1074 = vld [vmem:[%s407 + $0x3c] sm:$0xf]
        %v1075 = vld [vmem:[%s407 + $0x40] sm:$0xf]
        %v1076 = vld [vmem:[%s407 + $0x44] sm:$0xf]
        %v1077 = vld [vmem:[%s407 + $0x48] sm:$0xf]
        %v1078 = vld [vmem:[%s407 + $0x4c] sm:$0xf]
        %v1079 = vld [vmem:[%s407 + $0x50] sm:$0xf]
        %v1080 = vld [vmem:[%s407 + $0x54] sm:$0xf]
        %v1081 = vld [vmem:[%s407 + $0x58] sm:$0xf]
        %v1082 = vld [vmem:[%s407 + $0x5c] sm:$0xf]
        %v1083 = vld [vmem:[%s407 + $0x60] sm:$0xf]
        %v1084 = vld [vmem:[%s407 + $0x64] sm:$0xf]
        %v1085 = vld [vmem:[%s407 + $0x68] sm:$0xf]
        %v1086 = vld [vmem:[%s407 + $0x6c] sm:$0xf]
        %v1087 = vld [vmem:[%s407 + $0x70] sm:$0xf]
        %v1088 = vld [vmem:[%s407 + $0x74] sm:$0xf]
        %v1089 = vld [vmem:[%s407 + $0x78] sm:$0xf]
        %v1090 = vld [vmem:[%s407 + $0x7c] sm:$0xf]
        %v1091 = vld [vmem:[%s407 + $0x80] sm:$0xf]
        %v1092 = vld [vmem:[%s407 + $0x84] sm:$0xf]
        %v1093 = vld [vmem:[%s407 + $0x88] sm:$0xf]
        %v1094 = vld [vmem:[%s407 + $0x8c] sm:$0xf]
        %v1095 = vld [vmem:[%s407 + $0x90] sm:$0xf]
        %v1096 = vld [vmem:[%s407 + $0x94] sm:$0xf]
        %v1097 = vld [vmem:[%s407 + $0x98] sm:$0xf]
        %v1098 = vld [vmem:[%s407 + $0x9c] sm:$0xf]
        %v1099 = vld [vmem:[%s407 + $0xa0] sm:$0xf]
        %v1100 = vld [vmem:[%s407 + $0xa4] sm:$0xf]
        %v1101 = vld [vmem:[%s407 + $0xa8] sm:$0xf]
        %v1102 = vld [vmem:[%s407 + $0xac] sm:$0xf]
        %v1103 = vld [vmem:[%s407 + $0xb0] sm:$0xf]
        %v1104 = vld [vmem:[%s407 + $0xb4] sm:$0xf]
        %v1105 = vld [vmem:[%s407 + $0xb8] sm:$0xf]
        %v1106 = vld [vmem:[%s407 + $0xbc] sm:$0xf]
        %v1107 = vld [vmem:[%s407 + $0xc0] sm:$0xf]
        %v1108 = vld [vmem:[%s407 + $0xc4] sm:$0xf]
        %v1109 = vld [vmem:[%s407 + $0xc8] sm:$0xf]
        %v1110 = vld [vmem:[%s407 + $0xcc] sm:$0xf]
        %v1111 = vld [vmem:[%s407 + $0xd0] sm:$0xf]
        %v1112 = vld [vmem:[%s407 + $0xd4] sm:$0xf]
        %v1113 = vld [vmem:[%s407 + $0xd8] sm:$0xf]
        %v1114 = vld [vmem:[%s407 + $0xdc] sm:$0xf]
        %v1115 = vld [vmem:[%s407 + $0xe0] sm:$0xf]
        %v1116 = vld [vmem:[%s407 + $0xe4] sm:$0xf]
        %v1117 = vld [vmem:[%s407 + $0xe8] sm:$0xf]
        %v1118 = vld [vmem:[%s407 + $0xec] sm:$0xf]
        %v1119 = vld [vmem:[%s407 + $0xf0] sm:$0xf]
        %v1120 = vld [vmem:[%s407 + $0xf4] sm:$0xf]
        %v1121 = vld [vmem:[%s407 + $0xf8] sm:$0xf]
        %v1122 = vld [vmem:[%s407 + $0xfc] sm:$0xf]
        %v1123 = vld [vmem:[%s416 + $0x3] ss:$0 sm:$0xff]
        %v1188 = vunpack.c.l.b16 %v1059
        %v1189 = vunpack.c.l.b16 %v1060
        %v1190 = vunpack.c.l.b16 %v1061
        %v1191 = vunpack.c.l.b16 %v1062
        %v1192 = vunpack.c.l.b16 %v1063
        %v1193 = vunpack.c.l.b16 %v1064
        %v1194 = vunpack.c.l.b16 %v1065
        %v1195 = vunpack.c.l.b16 %v1066
        %v1196 = vunpack.c.l.b16 %v1067
        %v1197 = vunpack.c.l.b16 %v1068
        %v1198 = vunpack.c.l.b16 %v1069
        %v1199 = vunpack.c.l.b16 %v1070
        %v1200 = vunpack.c.l.b16 %v1071
        %v1201 = vunpack.c.l.b16 %v1072
        %v1202 = vunpack.c.l.b16 %v1073
        %v1203 = vunpack.c.l.b16 %v1074
        %v1204 = vunpack.c.l.b16 %v1075
        %v1205 = vunpack.c.l.b16 %v1076
        %v1206 = vunpack.c.l.b16 %v1077
        %v1207 = vunpack.c.l.b16 %v1078
        %v1208 = vunpack.c.l.b16 %v1079
        %v1209 = vunpack.c.l.b16 %v1080
        %v1210 = vunpack.c.l.b16 %v1081
        %v1211 = vunpack.c.l.b16 %v1082
        %v1212 = vunpack.c.l.b16 %v1083
        %v1213 = vunpack.c.l.b16 %v1084
        %v1214 = vunpack.c.l.b16 %v1085
        %v1215 = vunpack.c.l.b16 %v1086
        %v1216 = vunpack.c.l.b16 %v1087
        %v1217 = vunpack.c.l.b16 %v1088
        %v1218 = vunpack.c.l.b16 %v1089
        %v1219 = vunpack.c.l.b16 %v1090
        %v1220 = vunpack.c.l.b16 %v1091
        %v1221 = vunpack.c.l.b16 %v1092
        %v1222 = vunpack.c.l.b16 %v1093
        %v1223 = vunpack.c.l.b16 %v1094
        %v1224 = vunpack.c.l.b16 %v1095
        %v1225 = vunpack.c.l.b16 %v1096
        %v1226 = vunpack.c.l.b16 %v1097
        %v1227 = vunpack.c.l.b16 %v1098
        %v1228 = vunpack.c.l.b16 %v1099
        %v1229 = vunpack.c.l.b16 %v1100
        %v1230 = vunpack.c.l.b16 %v1101
        %v1231 = vunpack.c.l.b16 %v1102
        %v1232 = vunpack.c.l.b16 %v1103
        %v1233 = vunpack.c.l.b16 %v1104
        %v1234 = vunpack.c.l.b16 %v1105
        %v1235 = vunpack.c.l.b16 %v1106
        %v1236 = vunpack.c.l.b16 %v1107
        %v1237 = vunpack.c.l.b16 %v1108
        %v1238 = vunpack.c.l.b16 %v1109
        %v1239 = vunpack.c.l.b16 %v1110
        %v1240 = vunpack.c.l.b16 %v1111
        %v1241 = vunpack.c.l.b16 %v1112
        %v1242 = vunpack.c.l.b16 %v1113
        %v1243 = vunpack.c.l.b16 %v1114
        %v1244 = vunpack.c.l.b16 %v1115
        %v1245 = vunpack.c.l.b16 %v1116
        %v1246 = vunpack.c.l.b16 %v1117
        %v1247 = vunpack.c.l.b16 %v1118
        %v1248 = vunpack.c.l.b16 %v1119
        %v1249 = vunpack.c.l.b16 %v1120
        %v1250 = vunpack.c.l.b16 %v1121
        %v1251 = vunpack.c.l.b16 %v1122
        %v1252 = vpack.c.b16 %v1189, %v1188
        %v1253 = vpack.c.b16 %v1191, %v1190
        %v1254 = vpack.c.b16 %v1193, %v1192
        %v1255 = vpack.c.b16 %v1195, %v1194
        %v1256 = vpack.c.b16 %v1197, %v1196
        %v1257 = vpack.c.b16 %v1199, %v1198
        %v1258 = vpack.c.b16 %v1201, %v1200
        %v1259 = vpack.c.b16 %v1203, %v1202
        %v1260 = vpack.c.b16 %v1205, %v1204
        %v1261 = vpack.c.b16 %v1207, %v1206
        %v1262 = vpack.c.b16 %v1209, %v1208
        %v1263 = vpack.c.b16 %v1211, %v1210
        %v1264 = vpack.c.b16 %v1213, %v1212
        %v1265 = vpack.c.b16 %v1215, %v1214
        %v1266 = vpack.c.b16 %v1217, %v1216
        %v1267 = vpack.c.b16 %v1219, %v1218
        %v1268 = vpack.c.b16 %v1221, %v1220
        %v1269 = vpack.c.b16 %v1223, %v1222
        %v1270 = vpack.c.b16 %v1225, %v1224
        %v1271 = vpack.c.b16 %v1227, %v1226
        %v1272 = vpack.c.b16 %v1229, %v1228
        %v1273 = vpack.c.b16 %v1231, %v1230
        %v1274 = vpack.c.b16 %v1233, %v1232
        %v1275 = vpack.c.b16 %v1235, %v1234
        %v1276 = vpack.c.b16 %v1237, %v1236
        %v1277 = vpack.c.b16 %v1239, %v1238
        %v1278 = vpack.c.b16 %v1241, %v1240
        %v1279 = vpack.c.b16 %v1243, %v1242
        %v1280 = vpack.c.b16 %v1245, %v1244
        %v1281 = vpack.c.b16 %v1247, %v1246
        %v1282 = vpack.c.b16 %v1249, %v1248
        %v1283 = vpack.c.b16 %v1251, %v1250
        %1316 = vmatprep.subr.bf16.mxu0 0
        %1317 = vmatpush1.bf16.msra.mxu0 %v1252
        %1318 = vmatprep.subr.bf16.mxu0 0
        %1319 = vmatpush1.bf16.msra.mxu0 %v1253
        %1320 = vmatprep.subr.bf16.mxu0 0
        %1321 = vmatpush1.bf16.msra.mxu0 %v1254
        %1322 = vmatprep.subr.bf16.mxu0 0
        %1323 = vmatpush1.bf16.msra.mxu0 %v1255
        %1324 = vmatprep.subr.bf16.mxu0 0
        %1325 = vmatpush1.bf16.msra.mxu0 %v1256
        %1326 = vmatprep.subr.bf16.mxu0 0
        %1327 = vmatpush1.bf16.msra.mxu0 %v1257
        %1328 = vmatprep.subr.bf16.mxu0 0
        %1329 = vmatpush1.bf16.msra.mxu0 %v1258
        %1330 = vmatprep.subr.bf16.mxu0 0
        %1331 = vmatpush1.bf16.msra.mxu0 %v1259
        %1332 = vmatprep.subr.bf16.mxu0 0
        %1333 = vmatpush1.bf16.msra.mxu0 %v1260
        %1334 = vmatprep.subr.bf16.mxu0 0
        %1335 = vmatpush1.bf16.msra.mxu0 %v1261
        %1336 = vmatprep.subr.bf16.mxu0 0
        %1337 = vmatpush1.bf16.msra.mxu0 %v1262
        %1338 = vmatprep.subr.bf16.mxu0 0
        %1339 = vmatpush1.bf16.msra.mxu0 %v1263
        %1340 = vmatprep.subr.bf16.mxu0 0
        %1341 = vmatpush1.bf16.msra.mxu0 %v1264
        %1342 = vmatprep.subr.bf16.mxu0 0
        %1343 = vmatpush1.bf16.msra.mxu0 %v1265
        %1344 = vmatprep.subr.bf16.mxu0 0
        %1345 = vmatpush1.bf16.msra.mxu0 %v1266
        %1346 = vmatprep.subr.bf16.mxu0 0
        %1347 = vmatpush1.bf16.msra.mxu0 %v1267
        %1348 = vmatprep.mubr.bf16.mxu0 %v1056
        %1349 = vmatmul.mubr.bf16.gmra.mrb[0].mxu0 %v1055
        %v1350 = vpop.f32.mrb[0].mxu0
        %v1351 = vadd.f32 %v1123, %v1350
        %v1352 = vpop.f32.mrb[0].mxu0
        %v1353 = vpop.f32.mrb[0].mxu0
        %v1354 = vpop.f32.mrb[0].mxu0
        %1355 = vdwg.mxu0
        %1356 = vmatprep.subr.bf16.mxu0 0
        %1357 = vmatpush1.bf16.msra.mxu0 %v1268
        %1358 = vmatprep.subr.bf16.mxu0 0
        %1359 = vmatpush1.bf16.msra.mxu0 %v1269
        %1360 = vmatprep.subr.bf16.mxu0 0
        %1361 = vmatpush1.bf16.msra.mxu0 %v1270
        %1362 = vmatprep.subr.bf16.mxu0 0
        %1363 = vmatpush1.bf16.msra.mxu0 %v1271
        %1364 = vmatprep.subr.bf16.mxu0 0
        %1365 = vmatpush1.bf16.msra.mxu0 %v1272
        %1366 = vmatprep.subr.bf16.mxu0 0
        %1367 = vmatpush1.bf16.msra.mxu0 %v1273
        %1368 = vmatprep.subr.bf16.mxu0 0
        %1369 = vmatpush1.bf16.msra.mxu0 %v1274
        %1370 = vmatprep.subr.bf16.mxu0 0
        %1371 = vmatpush1.bf16.msra.mxu0 %v1275
        %1372 = vmatprep.subr.bf16.mxu0 0
        %1373 = vmatpush1.bf16.msra.mxu0 %v1276
        %1374 = vmatprep.subr.bf16.mxu0 0
        %1375 = vmatpush1.bf16.msra.mxu0 %v1277
        %1376 = vmatprep.subr.bf16.mxu0 0
        %1377 = vmatpush1.bf16.msra.mxu0 %v1278
        %1378 = vmatprep.subr.bf16.mxu0 0
        %1379 = vmatpush1.bf16.msra.mxu0 %v1279
        %1380 = vmatprep.subr.bf16.mxu0 0
        %1381 = vmatpush1.bf16.msra.mxu0 %v1280
        %1382 = vmatprep.subr.bf16.mxu0 0
        %1383 = vmatpush1.bf16.msra.mxu0 %v1281
        %1384 = vmatprep.subr.bf16.mxu0 0
        %1385 = vmatpush1.bf16.msra.mxu0 %v1282
        %1386 = vmatprep.subr.bf16.mxu0 0
        %1387 = vmatpush1.bf16.msra.mxu0 %v1283
        %1388 = vmatprep.mubr.bf16.mxu0 %v1058
        %1389 = vmatmul.mubr.bf16.gmra.mrb[0].mxu0 %v1057
        %v1390 = vpop.f32.mrb[0].mxu0
        %v1391 = vadd.f32 %v1351, %v1390
        %v1392 = vpop.f32.mrb[0].mxu0
        %v1393 = vpop.f32.mrb[0].mxu0
        %v1394 = vpop.f32.mrb[0].mxu0
        %1395 = vdwg.mxu0
        %v1396 = vadd.f32 %v720, %v1391
        %v1397 = vld [vmem:[%s416 + $0x4] ss:$0 sm:$0xff]
        %v1398 = vld [vmem:[%s416 + $0x5] ss:$0 sm:$0xff]
        %1399 = vadd.xlane.f32.xlu0 %v1396
        %v1400 = vpop.xlane.xlu0 %1399
        %v1401 = vmul.f32 %v1400, %v709
        %v1402 = vsub.f32 %v1396, %v1401
        %v1403 = vmul.f32 %v1402, %v1402
        %1404 = vadd.xlane.f32.xlu0 %v1403
        %v1405 = vpop.xlane.xlu0 %1404
        %v1406 = vmul.f32 %v1405, %v709
        %v1407 = vadd.f32 %v1406, 1e-05
        %v1408 = vrsqrt.pop %v1407
        %v1409 = vmul.f32 %v1402, %v1408
        %v1410 = vmul.f32 %v1409, %v1397
        %v1411 = vadd.f32 %v1410, %v1398
        %1412 = vst [vmem:[#allocation2] sm:$0xff] %v1411
        %p1413 = scmp.eq.s32.totalorder %s29, 1
        // Predicated region
        $region85: #{tpu_custom_call.1} parent=55 // pred_check
          %p1414 = pneg %p1413
        $region86: #{tpu_custom_call.1} parent=55 // pred_check_branch
          %1416 = sbr.rel (%p1414) target = $region88
        $region87: #{tpu_custom_call.1} parent=55 // pred_region
          %v1417 = vld [vmem:[#allocation2] sm:$0xff]
          %v1418 = vpack.c.bf16 %v1417, %v1417
          %v1419 = vld [vmem:[#allocation8] sm:$0xf]
          %v1420 = vld [vmem:[#allocation8 + $0x4] sm:$0xf]
          %v1421 = vld [vmem:[#allocation8 + $0x8] sm:$0xf]
          %v1422 = vld [vmem:[#allocation8 + $0xc] sm:$0xf]
          %v1423 = vld [vmem:[#allocation8 + $0x10] sm:$0xf]
          %v1424 = vld [vmem:[#allocation8 + $0x14] sm:$0xf]
          %v1425 = vld [vmem:[#allocation8 + $0x18] sm:$0xf]
          %v1426 = vld [vmem:[#allocation8 + $0x1c] sm:$0xf]
          %v1427 = vld [vmem:[#allocation8 + $0x20] sm:$0xf]
          %v1428 = vld [vmem:[#allocation8 + $0x24] sm:$0xf]
          %v1429 = vld [vmem:[#allocation8 + $0x28] sm:$0xf]
          %v1430 = vld [vmem:[#allocation8 + $0x2c] sm:$0xf]
          %v1431 = vld [vmem:[#allocation8 + $0x30] sm:$0xf]
          %v1432 = vld [vmem:[#allocation8 + $0x34] sm:$0xf]
          %v1433 = vld [vmem:[#allocation8 + $0x38] sm:$0xf]
          %v1434 = vld [vmem:[#allocation8 + $0x3c] sm:$0xf]
          %v1435 = vld [vmem:[%s5] sm:$0x1]
          %v1437 = vlaneseq
          %v1438 = vshrl.u32 %v1437, 7
          %v1439 = vsub.s32 0, %v1438
          %v1440 = vrot.slane %v1435, %v1439
          %v1458 = vunpack.c.l.b16 %v1419
          %v1459 = vunpack.c.l.b16 %v1420
          %v1460 = vunpack.c.l.b16 %v1421
          %v1461 = vunpack.c.l.b16 %v1422
          %v1462 = vunpack.c.l.b16 %v1423
          %v1463 = vunpack.c.l.b16 %v1424
          %v1464 = vunpack.c.l.b16 %v1425
          %v1465 = vunpack.c.l.b16 %v1426
          %v1466 = vunpack.c.l.b16 %v1427
          %v1467 = vunpack.c.l.b16 %v1428
          %v1468 = vunpack.c.l.b16 %v1429
          %v1469 = vunpack.c.l.b16 %v1430
          %v1470 = vunpack.c.l.b16 %v1431
          %v1471 = vunpack.c.l.b16 %v1432
          %v1472 = vunpack.c.l.b16 %v1433
          %v1473 = vunpack.c.l.b16 %v1434
          %v1474 = vpack.c.b16 %v1459, %v1458
          %v1475 = vpack.c.b16 %v1461, %v1460
          %v1476 = vpack.c.b16 %v1463, %v1462
          %v1477 = vpack.c.b16 %v1465, %v1464
          %v1478 = vpack.c.b16 %v1467, %v1466
          %v1479 = vpack.c.b16 %v1469, %v1468
          %v1480 = vpack.c.b16 %v1471, %v1470
          %v1481 = vpack.c.b16 %v1473, %v1472
          %1490 = vmatprep.subr.bf16.mxu0 0
          %1491 = vmatpush1.bf16.msra.mxu0 %v1474
          %1492 = vmatprep.subr.bf16.mxu0 0
          %1493 = vmatpush1.bf16.msra.mxu0 %v1475
          %1494 = vmatprep.subr.bf16.mxu0 0
          %1495 = vmatpush1.bf16.msra.mxu0 %v1476
          %1496 = vmatprep.subr.bf16.mxu0 0
          %1497 = vmatpush1.bf16.msra.mxu0 %v1477
          %1498 = vmatprep.subr.bf16.mxu0 0
          %1499 = vmatpush1.bf16.msra.mxu0 %v1478
          %1500 = vmatprep.subr.bf16.mxu0 0
          %1501 = vmatpush1.bf16.msra.mxu0 %v1479
          %1502 = vmatprep.subr.bf16.mxu0 0
          %1503 = vmatpush1.bf16.msra.mxu0 %v1480
          %1504 = vmatprep.subr.bf16.mxu0 0
          %1505 = vmatpush1.bf16.msra.mxu0 %v1481
          %1506 = vmatprep.subr.bf16.mxu0 0
          %1507 = vmatpush1.bf16.msra.mxu0 0
          %1508 = vmatprep.subr.bf16.mxu0 0
          %1509 = vmatpush1.bf16.msra.mxu0 0
          %1510 = vmatprep.subr.bf16.mxu0 0
          %1511 = vmatpush1.bf16.msra.mxu0 0
          %1512 = vmatprep.subr.bf16.mxu0 0
          %1513 = vmatpush1.bf16.msra.mxu0 0
          %1514 = vmatprep.subr.bf16.mxu0 0
          %1515 = vmatpush1.bf16.msra.mxu0 0
          %1516 = vmatprep.subr.bf16.mxu0 0
          %1517 = vmatpush1.bf16.msra.mxu0 0
          %1518 = vmatprep.subr.bf16.mxu0 0
          %1519 = vmatpush1.bf16.msra.mxu0 0
          %1520 = vmatprep.subr.bf16.mxu0 0
          %1521 = vmatpush1.bf16.msra.mxu0 0
          %1522 = vmatprep.mubr.bf16.mxu0 0
          %1523 = vmatmul.mubr.bf16.gmra.mrb[0].mxu0 %v1418
          %v1524 = vpop.f32.mrb[0].mxu0
          %v1525 = vadd.f32 %v1440, %v1524
          %v1526 = vpop.f32.mrb[0].mxu0
          %v1527 = vpop.f32.mrb[0].mxu0
          %v1528 = vpop.f32.mrb[0].mxu0
          %1529 = vdwg.mxu0
          %1530 = vst [vmem:[#allocation14] sm:$0xff] %v1525
        $region88: #{tpu_custom_call.1} parent=55 // pred_fallthru
          _
        // Predicated region
        $region89: #{tpu_custom_call.1} parent=55 // pred_check
          %p1531 = pneg %p246
        $region90: #{tpu_custom_call.1} parent=55 // pred_check_branch
          %1533 = sbr.rel (%p1531) target = $region92
        $region91: #{tpu_custom_call.1} parent=55 // pred_region
          %s1535 = ssub.s32 128, 128
          %1536 = vsyncadd [#allocation5], %s1535
          %s1538 = sshll.u32 [#allocation14], 4
          %s1539 = int_to_ptr.vmem [resolvable:$true] %s1538
          %1541 = dma.vmem_to_hbm [thread:$0]  %s1539, 128, %s9, [#allocation5]
        $region92: #{tpu_custom_call.1} parent=55 // pred_fallthru
          _
        // Predicated region
        $region93: #{tpu_custom_call.1} parent=55 // pred_check
          %p1542 = pneg %p246
        $region94: #{tpu_custom_call.1} parent=55 // pred_check_branch
          %1544 = sbr.rel (%p1542) target = $region96
        $region95: #{tpu_custom_call.1} parent=55 // pred_region
          %1545 = dma.done [#allocation5], 128
        $region96: #{tpu_custom_call.1} parent=55 // pred_fallthru
          _
      $region56: #{tpu_custom_call.1} parent=5 // pred_fallthru
        _
      %p1546 = scmp.le.s32.totalorder 2, %s24
      // Predicated region
      $region97: #{tpu_custom_call.1} parent=5 // pred_check
        %p1547 = pneg %p1546
      $region98: #{tpu_custom_call.1} parent=5 // pred_check_branch
        %1549 = sbr.rel (%p1547) target = $region100
      $region99: #{tpu_custom_call.1} parent=5 // pred_region
        %s1550 = ssub.s32 %s24, 2
      $region100: #{tpu_custom_call.1} parent=5 // pred_fallthru
        _
    $region6: #{tpu_custom_call.1} parent=1 // loop_footer
      %s28 = sadd.s32 1, %s24
    $region7: #{tpu_custom_call.1} parent=1 // loop_footer_branch
      %23 = sbr.rel target = $region3
    $region8: #{tpu_custom_call.1} parent=1 // loop_exit
      _
    %1551 = vsyncpa [#allocation4], 1
    %s1552 = scalar_lea.sflag [#allocation4], 1
    %1553 = vsyncpa %s1552, 1
    %1554 = vsyncpa [#allocation7], 1
    %1555 = vsyncpa [#allocation10], 1
    %s1556 = scalar_lea.sflag [#allocation10], 1
    %1557 = vsyncpa %s1556, 1
    %1558 = vsyncpa [#allocation13], 1
    %s1559 = scalar_lea.sflag [#allocation13], 1
    %1560 = vsyncpa %s1559, 1
    %1561 = vsyncpa [#allocation5], 1
    %s1562 = scalar_lea.sflag [#allocation5], 1
    %1563 = vsyncpa %s1562, 1

</llo_original>
